<compile_context>
chip_gen: v7x
topology: tpu7x:2x2x1
jax: 0.10.0
libtpu: 0.0.40
codegen_flags: <defaults>
</compile_context>

<pallas_src>
import math
from collections import namedtuple

import numpy as np
import jax
import jax.numpy as jnp
from jax import lax
from jax.experimental import pallas as pl
from jax.experimental.pallas import tpu as pltpu


# Per-layer static configuration (Python ints / strings -> baked into the kernel).
LayerCfg = namedtuple(
    "LayerCfg", ["k", "pad", "stride", "act", "h_in", "in_cols", "h_out", "out_cols"]
)

# (kernel_size, stride, padding, activation)
GEN_DEFS = ((3, 1, 1, "relu"), (3, 1, 1, "relu"), (3, 1, 1, "tanh"))
DISC_DEFS = ((3, 2, 1, "leaky_relu"), (3, 2, 1, "leaky_relu"), (1, 1, 0, "none"))


def _apply_act(x, act):
    if act == "relu":
        return jnp.maximum(x, 0.0)
    if act == "leaky_relu":
        # TODO(synk): torch.nn.LeakyReLU defaults to 0.01; CycleGAN discs use 0.2.
        return jnp.where(x >= 0.0, x, 0.2 * x)
    if act == "tanh":
        return jnp.tanh(x)
    return x


# ----------------------------------------------------------------------------
# Fused multi-layer conv network kernel
# ----------------------------------------------------------------------------
def _make_fused_kernel(cfgs):
    """Fused conv-stack kernel. One grid step == one batch element.

    Refs:
      x_ref    : (1, H, W*Cin)  f32      (lane-dense flattened NHWC row)
      per layer: band_ref (K, Win*Cin, Wout*Cout) bf16, bias_ref (1, Wout*Cout) f32
      o_ref    : (1, Hout, Wout*Cout) f32
      pad_ref  : (rows, cols) f32 VMEM scratch. The current activation lives at
                 rows [1 : 1+h_in), cols [0 : in_cols); everything else is zero,
                 which supplies the H-direction zero padding (W padding and W
                 stride are folded into the band matrices).
    """
    n_layers = len(cfgs)

    def kernel(x_ref, *rest):
        band_refs = rest[0:2 * n_layers:2]
        bias_refs = rest[1:2 * n_layers:2]
        o_ref = rest[2 * n_layers]
        pad_ref = rest[2 * n_layers + 1]

        # Stage the input activation into the zero-bordered VMEM scratch.
        c0 = cfgs[0]
        pad_ref[...] = jnp.zeros_like(pad_ref)
        pad_ref[1:1 + c0.h_in, 0:c0.in_cols] = x_ref[0].astype(pad_ref.dtype)

        for li, c in enumerate(cfgs):
            band = band_refs[li]
            h_s1 = c.h_in + 2 * c.pad - c.k + 1   # stride-1-in-H output rows
            acc = jnp.zeros((h_s1, c.out_cols), jnp.float32)
            # K_h shifted matmuls; W taps / stride / padding live in the band.
            for dh in range(c.k):
                r0 = 1 - c.pad + dh
                xin = pad_ref[r0:r0 + h_s1, 0:c.in_cols]
                acc = acc + jnp.dot(
                    xin.astype(jnp.bfloat16), band[dh],
                    preferred_element_type=jnp.float32)
            acc = acc + bias_refs[li][...]
            acc = _apply_act(acc, c.act)

            if c.stride > 1:
                # In-kernel H subsampling as a tiny 0/1 selection matmul
                # (keeps everything a plain 2-D MXU dot; exact stride-2 rows).
                row = lax.broadcasted_iota(jnp.int32, (c.h_out, h_s1), 1)
                tgt = c.stride * lax.broadcasted_iota(jnp.int32, (c.h_out, h_s1), 0)
                sel = (row == tgt).astype(jnp.float32)
                acc = jnp.dot(sel, acc, preferred_element_type=jnp.float32)

            if li + 1 < n_layers:
                # acc is fully materialized -> safe to recycle the scratch.
                pad_ref[...] = jnp.zeros_like(pad_ref)
                pad_ref[1:1 + c.h_out, 0:c.out_cols] = acc
            else:
                o_ref[0] = acc.astype(o_ref.dtype)

    return kernel


# ----------------------------------------------------------------------------
# Host-side banded-weight construction and network builder
# ----------------------------------------------------------------------------
def _build_band(w, w_in, stride, pad):
    """Block-Toeplitz ("banded") weight matrix for the W axis of a conv.

    w: (KH, KW, Cin, Cout). Returns (band, w_out) with
      band[dh, wi*Cin+ci, wo*Cout+co] = w[dh, wi - (stride*wo - pad), ci, co]
    (zero outside the 0 <= dw < KW band), so a plain 2-D matmul against the
    flattened (H, W*Cin) activation performs the conv along W, including zero
    padding and stride, exactly.
    """
    kh, kw, cin, cout = w.shape
    w_out = (w_in + 2 * pad - kw) // stride + 1
    sel = np.zeros((kw, w_in, w_out), np.float32)
    for wo in range(w_out):
        for dw in range(kw):
            wi = stride * wo - pad + dw
            if 0 <= wi < w_in:
                sel[dw, wi, wo] = 1.0
    band = jnp.einsum("kiw,hkco->hicwo", jnp.asarray(sel), w)
    return band.reshape(kh, w_in * cin, w_out * cout), w_out


def make_fused_network(conv_params, layer_defs, H, W, in_ch):
    """Build a forward(x_nhwc) -> y_nhwc that runs the whole conv stack in one
    pallas_call (intermediates stay in VMEM)."""
    cfgs, bands, biases = [], [], []
    h_in, w_in, cin = H, W, in_ch
    for (w, b), (k, stride, pad, act) in zip(conv_params, layer_defs):
        cout = w.shape[-1]
        band, w_out = _build_band(w, w_in, stride, pad)
        h_out = (h_in + 2 * pad - k) // stride + 1
        bands.append(band.astype(jnp.bfloat16))                       # bf16 MXU operands
        biases.append(jnp.tile(b, w_out).reshape(1, w_out * cout).astype(jnp.float32))
        cfgs.append(LayerCfg(k=k, pad=pad, stride=stride, act=act,
                             h_in=h_in, in_cols=w_in * cin,
                             h_out=h_out, out_cols=w_out * cout))
        h_in, w_in, cin = h_out, w_out, cout
    out_h, out_w, out_c = h_in, w_in, cin

    pad_rows = max(c.h_in for c in cfgs) + 2
    pad_cols = ((max(c.in_cols for c in cfgs) + 127) // 128) * 128    # lane-align scratch

    cfgs = tuple(cfgs)
    last = cfgs[-1]
    kernel = _make_fused_kernel(cfgs)

    def forward(x_nhwc):
        n = x_nhwc.shape[0]
        x2d = x_nhwc.reshape(n, H, W * in_ch)       # lane-dense (H, W*C) layout

        in_specs = [pl.BlockSpec((1, H, W * in_ch), lambda i: (i, 0, 0))]
        operands = [x2d]
        for band, brow in zip(bands, biases):
            in_specs.append(pl.BlockSpec(band.shape, lambda i: (0, 0, 0)))
            operands.append(band)
            in_specs.append(pl.BlockSpec(brow.shape, lambda i: (0, 0)))
            operands.append(brow)

        out = pl.pallas_call(
            kernel,
            out_shape=jax.ShapeDtypeStruct((n, last.h_out, last.out_cols), jnp.float32),
            grid_spec=pltpu.PrefetchScalarGridSpec(
                num_scalar_prefetch=0,
                grid=(n,),                             # batch -> both v7x TensorCores
                in_specs=in_specs,
                out_specs=pl.BlockSpec((1, last.h_out, last.out_cols),
                                       lambda i: (i, 0, 0)),
                scratch_shapes=[pltpu.VMEM((pad_rows, pad_cols), jnp.float32)],
            ),
            compiler_params=pltpu.CompilerParams(
                dimension_semantics=("parallel",)),
        )(*operands)
        return out.reshape(n, out_h, out_w, out_c)

    return forward


# ----------------------------------------------------------------------------
# Parameter init (deterministic, synthetic)
# ----------------------------------------------------------------------------
def _init_conv(key, kh, kw, cin, cout):
    kw_key, kb_key = jax.random.split(key)
    fan_in = kh * kw * cin
    w = jax.random.normal(kw_key, (kh, kw, cin, cout), jnp.float32) / math.sqrt(fan_in)
    b = 0.05 * jax.random.normal(kb_key, (cout,), jnp.float32)
    return w, b


def init_generator_params(key, in_ch=3, hidden=8):
    k1, k2, k3 = jax.random.split(key, 3)
    return [_init_conv(k1, 3, 3, in_ch, hidden),
            _init_conv(k2, 3, 3, hidden, hidden),
            _init_conv(k3, 3, 3, hidden, in_ch)]


def init_discriminator_params(key, in_ch=3, hidden=8):
    k1, k2, k3 = jax.random.split(key, 3)
    return [_init_conv(k1, 3, 3, in_ch, hidden),
            _init_conv(k2, 3, 3, hidden, hidden),
            _init_conv(k3, 1, 1, hidden, 1)]


def init_cyclegan_params(key, in_ch=3, hidden=8):
    kmg, kmd, kig, kid = jax.random.split(key, 4)
    return {
        "monet_gen": init_generator_params(kmg, in_ch, hidden),
        "monet_disc": init_discriminator_params(kmd, in_ch, hidden),
        "img_gen": init_generator_params(kig, in_ch, hidden),
        "img_disc": init_discriminator_params(kid, in_ch, hidden),
    }


# ----------------------------------------------------------------------------
# CycleGAN forward (mirrors CycleGAN.forward(img, monet_img); NCHW I/O)
# ----------------------------------------------------------------------------
def build_cycle_gan(params, H, W, in_ch=3):
    monet_gen = make_fused_network(params["monet_gen"], GEN_DEFS, H, W, in_ch)
    img_gen = make_fused_network(params["img_gen"], GEN_DEFS, H, W, in_ch)
    monet_disc = make_fused_network(params["monet_disc"], DISC_DEFS, H, W, in_ch)
    img_disc = make_fused_network(params["img_disc"], DISC_DEFS, H, W, in_ch)

    to_nhwc = lambda t: jnp.transpose(t, (0, 2, 3, 1))
    to_nchw = lambda t: jnp.transpose(t, (0, 3, 1, 2))

    @jax.jit
    def forward(img_nchw, monet_nchw):
        # Single NCHW<->NHWC transpose pair at the API boundary; NHWC inside.
        img = to_nhwc(img_nchw)
        monet = to_nhwc(monet_nchw)
        n = img.shape[0]

        # Independent applications of the same network are batched into one
        # fused call each -> 6 pallas_calls per CycleGAN forward.
        mg = monet_gen(jnp.concatenate([img, monet], axis=0))
        fake_monet, identity_monet = mg[:n], mg[n:]
        ig = img_gen(jnp.concatenate([monet, img], axis=0))
        fake_img, identity_img = ig[:n], ig[n:]

        cycled_monet = monet_gen(fake_img)
        cycled_img = img_gen(fake_monet)

        md = monet_disc(jnp.concatenate([monet, fake_monet], axis=0))
        real_monet_disc, fake_monet_disc = md[:n], md[n:]
        dd = img_disc(jnp.concatenate([img, fake_img], axis=0))
        real_img_disc, fake_img_disc = dd[:n], dd[n:]

        img_output = {
            "fake_img": to_nchw(fake_img),
            "cycled_img": to_nchw(cycled_img),
            "identity_img": to_nchw(identity_img),
            "real_img_disc": to_nchw(real_img_disc),
            "fake_img_disc": to_nchw(fake_img_disc),
        }
        monet_output = {
            "fake_monet": to_nchw(fake_monet),
            "cycled_monet": to_nchw(cycled_monet),
            "identity_monet": to_nchw(identity_monet),
            "real_monet_disc": to_nchw(real_monet_disc),
            "fake_monet_disc": to_nchw(fake_monet_disc),
        }
        return {**img_output, **monet_output}

    return forward


# ----------------------------------------------------------------------------
# Pure-JAX f32 reference (correctness check for the fused Pallas kernels)
# ----------------------------------------------------------------------------
def _reference_net(conv_params, layer_defs, x_nhwc):
    x = x_nhwc
    for (w, b), (k, stride, pad, act) in zip(conv_params, layer_defs):
        x = lax.conv_general_dilated(
            x, w, window_strides=(stride, stride),
            padding=[(pad, pad), (pad, pad)],
            dimension_numbers=("NHWC", "HWIO", "NHWC"))
        x = _apply_act(x + b, act)
    return x


# ----------------------------------------------------------------------------
# Main
# ----------------------------------------------------------------------------
if __name__ == "__main__":
    key = jax.random.PRNGKey(0)
    k_param, k_img, k_monet = jax.random.split(key, 3)

    B, C, H, W = 2, 3, 16, 16  # small RGB images, CycleGAN-consistent
    img = jax.random.uniform(k_img, (B, C, H, W), jnp.float32, -1.0, 1.0)
    monet_img = jax.random.uniform(k_monet, (B, C, H, W), jnp.float32, -1.0, 1.0)

    params = init_cyclegan_params(k_param, in_ch=C, hidden=8)
    cycle_gan_forward = build_cycle_gan(params, H, W, in_ch=C)

    out = jax.block_until_ready(cycle_gan_forward(img, monet_img))

    # Shape checks (generators: image-sized; discriminators: 4x-downsampled map)
    assert out["fake_monet"].shape == (B, C, H, W)
    assert out["cycled_img"].shape == (B, C, H, W)
    assert out["identity_monet"].shape == (B, C, H, W)
    assert out["real_img_disc"].shape == (B, 1, H // 4, W // 4)
    assert out["fake_monet_disc"].shape == (B, 1, H // 4, W // 4)
    assert all(bool(jnp.all(jnp.isfinite(v))) for v in out.values())

    # Numerical check against a pure-JAX f32 reference (bf16 MXU tolerance).
    to_nhwc = lambda t: jnp.transpose(t, (0, 2, 3, 1))
    to_nchw = lambda t: jnp.transpose(t, (0, 3, 1, 2))
    ref_fake_monet = to_nchw(_reference_net(params["monet_gen"], GEN_DEFS, to_nhwc(img)))
    ref_real_img_disc = to_nchw(_reference_net(params["img_disc"], DISC_DEFS, to_nhwc(img)))
    assert jnp.allclose(out["fake_monet"], ref_fake_monet, atol=5e-2, rtol=5e-2)
    assert jnp.allclose(out["real_img_disc"], ref_real_img_disc, atol=5e-2, rtol=5e-2)

    print("KERNEL_OK")
</pallas_src>

<mosaic_0001>
module attributes {stable_mosaic.version = 11 : i64} {
  func.func @kernel(%arg0: i32, %arg1: memref<1x16x48xf32, #tpu.memory_space<vmem>>, %arg2: memref<3x48x128xbf16, #tpu.memory_space<vmem>>, %arg3: memref<1x128xf32, #tpu.memory_space<vmem>>, %arg4: memref<3x128x128xbf16, #tpu.memory_space<vmem>>, %arg5: memref<1x128xf32, #tpu.memory_space<vmem>>, %arg6: memref<3x128x48xbf16, #tpu.memory_space<vmem>>, %arg7: memref<1x48xf32, #tpu.memory_space<vmem>>, %arg8: memref<1x16x48xf32, #tpu.memory_space<vmem>>, %arg9: memref<18x128xf32, #tpu.memory_space<vmem>>) attributes {dimension_semantics = [#tpu.dimension_semantics<parallel>], iteration_bounds = array<i64: 4>, scalar_prefetch = 0 : i64, scratch_operands = 1 : i64, tpu.core_type = #tpu.core_type<tc>, window_params = [{transform_indices = @transform_0, window_bounds = array<i64: 1, 16, 48>}, {pipeline_mode = #tpu.pipeline_mode<synchronous>, transform_indices = @transform_1, window_bounds = array<i64: 3, 48, 128>}, {pipeline_mode = #tpu.pipeline_mode<synchronous>, transform_indices = @transform_2, window_bounds = array<i64: 1, 128>}, {pipeline_mode = #tpu.pipeline_mode<synchronous>, transform_indices = @transform_3, window_bounds = array<i64: 3, 128, 128>}, {pipeline_mode = #tpu.pipeline_mode<synchronous>, transform_indices = @transform_4, window_bounds = array<i64: 1, 128>}, {pipeline_mode = #tpu.pipeline_mode<synchronous>, transform_indices = @transform_5, window_bounds = array<i64: 3, 128, 48>}, {pipeline_mode = #tpu.pipeline_mode<synchronous>, transform_indices = @transform_6, window_bounds = array<i64: 1, 48>}, {transform_indices = @transform_7, window_bounds = array<i64: 1, 16, 48>}]} {
    %cst = arith.constant 0.000000e+00 : f32
    %0 = vector.broadcast %cst : f32 to vector<18x128xf32>
    %c0 = arith.constant 0 : index
    %c0_0 = arith.constant 0 : index
    %1 = vector.load %arg9[%c0, %c0_0] : memref<18x128xf32, #tpu.memory_space<vmem>>, vector<18x128xf32>
    tpu.vector_store %arg9[%c0, %c0_0], %0 {strides = array<i32>} : memref<18x128xf32, #tpu.memory_space<vmem>>, vector<18x128xf32>,
    %c0_1 = arith.constant 0 : index
    %c0_2 = arith.constant 0 : index
    %c0_3 = arith.constant 0 : index
    %2 = vector.load %arg1[%c0_1, %c0_2, %c0_3] : memref<1x16x48xf32, #tpu.memory_space<vmem>>, vector<1x16x48xf32>
    %3 = vector.shape_cast %2 : vector<1x16x48xf32> to vector<16x48xf32>
    %c1 = arith.constant 1 : index
    %c0_4 = arith.constant 0 : index
    %4 = vector.load %arg9[%c1, %c0_4] : memref<18x128xf32, #tpu.memory_space<vmem>>, vector<16x48xf32>
    tpu.vector_store %arg9[%c1, %c0_4], %3 {strides = array<i32>} : memref<18x128xf32, #tpu.memory_space<vmem>>, vector<16x48xf32>,
    %cst_5 = arith.constant 0.000000e+00 : f32
    %5 = vector.broadcast %cst_5 : f32 to vector<16x128xf32>
    %c0_6 = arith.constant 0 : index
    %c0_7 = arith.constant 0 : index
    %6 = vector.load %arg9[%c0_6, %c0_7] : memref<18x128xf32, #tpu.memory_space<vmem>>, vector<16x48xf32>
    %7 = arith.truncf %6 : vector<16x48xf32> to vector<16x48xbf16>
    %c0_8 = arith.constant 0 : index
    %c0_9 = arith.constant 0 : index
    %c0_10 = arith.constant 0 : index
    %8 = vector.load %arg2[%c0_8, %c0_9, %c0_10] : memref<3x48x128xbf16, #tpu.memory_space<vmem>>, vector<1x48x128xbf16>
    %9 = vector.shape_cast %8 : vector<1x48x128xbf16> to vector<48x128xbf16>
    %cst_11 = arith.constant dense<0.000000e+00> : vector<16x128xf32>
    %10 = tpu.matmul %7, %9, %cst_11 {dimension_numbers = #tpu.dot_dimension_numbers<[1], [0], [0], [1], [0, 0, 1, 1], [], []>} : vector<16x48xbf16>, vector<48x128xbf16>, vector<16x128xf32> -> vector<16x128xf32>
    %11 = arith.addf %5, %10 : vector<16x128xf32>
    %c1_12 = arith.constant 1 : index
    %c0_13 = arith.constant 0 : index
    %12 = vector.load %arg9[%c1_12, %c0_13] : memref<18x128xf32, #tpu.memory_space<vmem>>, vector<16x48xf32>
    %13 = arith.truncf %12 : vector<16x48xf32> to vector<16x48xbf16>
    %c1_14 = arith.constant 1 : index
    %c0_15 = arith.constant 0 : index
    %c0_16 = arith.constant 0 : index
    %14 = vector.load %arg2[%c1_14, %c0_15, %c0_16] : memref<3x48x128xbf16, #tpu.memory_space<vmem>>, vector<1x48x128xbf16>
    %15 = vector.shape_cast %14 : vector<1x48x128xbf16> to vector<48x128xbf16>
    %cst_17 = arith.constant dense<0.000000e+00> : vector<16x128xf32>
    %16 = tpu.matmul %13, %15, %cst_17 {dimension_numbers = #tpu.dot_dimension_numbers<[1], [0], [0], [1], [0, 0, 1, 1], [], []>} : vector<16x48xbf16>, vector<48x128xbf16>, vector<16x128xf32> -> vector<16x128xf32>
    %17 = arith.addf %11, %16 : vector<16x128xf32>
    %c2 = arith.constant 2 : index
    %c0_18 = arith.constant 0 : index
    %18 = vector.load %arg9[%c2, %c0_18] : memref<18x128xf32, #tpu.memory_space<vmem>>, vector<16x48xf32>
    %19 = arith.truncf %18 : vector<16x48xf32> to vector<16x48xbf16>
    %c2_19 = arith.constant 2 : index
    %c0_20 = arith.constant 0 : index
    %c0_21 = arith.constant 0 : index
    %20 = vector.load %arg2[%c2_19, %c0_20, %c0_21] : memref<3x48x128xbf16, #tpu.memory_space<vmem>>, vector<1x48x128xbf16>
    %21 = vector.shape_cast %20 : vector<1x48x128xbf16> to vector<48x128xbf16>
    %cst_22 = arith.constant dense<0.000000e+00> : vector<16x128xf32>
    %22 = tpu.matmul %19, %21, %cst_22 {dimension_numbers = #tpu.dot_dimension_numbers<[1], [0], [0], [1], [0, 0, 1, 1], [], []>} : vector<16x48xbf16>, vector<48x128xbf16>, vector<16x128xf32> -> vector<16x128xf32>
    %23 = arith.addf %17, %22 : vector<16x128xf32>
    %c0_23 = arith.constant 0 : index
    %c0_24 = arith.constant 0 : index
    %24 = vector.load %arg3[%c0_23, %c0_24] : memref<1x128xf32, #tpu.memory_space<vmem>>, vector<1x128xf32>
    %25 = vector.broadcast %24 : vector<1x128xf32> to vector<16x128xf32>
    %26 = arith.addf %23, %25 : vector<16x128xf32>
    %cst_25 = arith.constant 0.000000e+00 : f32
    %27 = vector.broadcast %cst_25 : f32 to vector<16x128xf32>
    %28 = arith.maximumf %26, %27 : vector<16x128xf32>
    %cst_26 = arith.constant 0.000000e+00 : f32
    %29 = vector.broadcast %cst_26 : f32 to vector<18x128xf32>
    %c0_27 = arith.constant 0 : index
    %c0_28 = arith.constant 0 : index
    %30 = vector.load %arg9[%c0_27, %c0_28] : memref<18x128xf32, #tpu.memory_space<vmem>>, vector<18x128xf32>
    tpu.vector_store %arg9[%c0_27, %c0_28], %29 {strides = array<i32>} : memref<18x128xf32, #tpu.memory_space<vmem>>, vector<18x128xf32>,
    %c1_29 = arith.constant 1 : index
    %c0_30 = arith.constant 0 : index
    %31 = vector.load %arg9[%c1_29, %c0_30] : memref<18x128xf32, #tpu.memory_space<vmem>>, vector<16x128xf32>
    tpu.vector_store %arg9[%c1_29, %c0_30], %28 {strides = array<i32>} : memref<18x128xf32, #tpu.memory_space<vmem>>, vector<16x128xf32>,
    %cst_31 = arith.constant 0.000000e+00 : f32
    %32 = vector.broadcast %cst_31 : f32 to vector<16x128xf32>
    %c0_32 = arith.constant 0 : index
    %c0_33 = arith.constant 0 : index
    %33 = vector.load %arg9[%c0_32, %c0_33] : memref<18x128xf32, #tpu.memory_space<vmem>>, vector<16x128xf32>
    %34 = arith.truncf %33 : vector<16x128xf32> to vector<16x128xbf16>
    %c0_34 = arith.constant 0 : index
    %c0_35 = arith.constant 0 : index
    %c0_36 = arith.constant 0 : index
    %35 = vector.load %arg4[%c0_34, %c0_35, %c0_36] : memref<3x128x128xbf16, #tpu.memory_space<vmem>>, vector<1x128x128xbf16>
    %36 = vector.shape_cast %35 : vector<1x128x128xbf16> to vector<128x128xbf16>
    %cst_37 = arith.constant dense<0.000000e+00> : vector<16x128xf32>
    %37 = tpu.matmul %34, %36, %cst_37 {dimension_numbers = #tpu.dot_dimension_numbers<[1], [0], [0], [1], [0, 0, 1, 1], [], []>} : vector<16x128xbf16>, vector<128x128xbf16>, vector<16x128xf32> -> vector<16x128xf32>
    %38 = arith.addf %32, %37 : vector<16x128xf32>
    %c1_38 = arith.constant 1 : index
    %c0_39 = arith.constant 0 : index
    %39 = vector.load %arg9[%c1_38, %c0_39] : memref<18x128xf32, #tpu.memory_space<vmem>>, vector<16x128xf32>
    %40 = arith.truncf %39 : vector<16x128xf32> to vector<16x128xbf16>
    %c1_40 = arith.constant 1 : index
    %c0_41 = arith.constant 0 : index
    %c0_42 = arith.constant 0 : index
    %41 = vector.load %arg4[%c1_40, %c0_41, %c0_42] : memref<3x128x128xbf16, #tpu.memory_space<vmem>>, vector<1x128x128xbf16>
    %42 = vector.shape_cast %41 : vector<1x128x128xbf16> to vector<128x128xbf16>
    %cst_43 = arith.constant dense<0.000000e+00> : vector<16x128xf32>
    %43 = tpu.matmul %40, %42, %cst_43 {dimension_numbers = #tpu.dot_dimension_numbers<[1], [0], [0], [1], [0, 0, 1, 1], [], []>} : vector<16x128xbf16>, vector<128x128xbf16>, vector<16x128xf32> -> vector<16x128xf32>
    %44 = arith.addf %38, %43 : vector<16x128xf32>
    %c2_44 = arith.constant 2 : index
    %c0_45 = arith.constant 0 : index
    %45 = vector.load %arg9[%c2_44, %c0_45] : memref<18x128xf32, #tpu.memory_space<vmem>>, vector<16x128xf32>
    %46 = arith.truncf %45 : vector<16x128xf32> to vector<16x128xbf16>
    %c2_46 = arith.constant 2 : index
    %c0_47 = arith.constant 0 : index
    %c0_48 = arith.constant 0 : index
    %47 = vector.load %arg4[%c2_46, %c0_47, %c0_48] : memref<3x128x128xbf16, #tpu.memory_space<vmem>>, vector<1x128x128xbf16>
    %48 = vector.shape_cast %47 : vector<1x128x128xbf16> to vector<128x128xbf16>
    %cst_49 = arith.constant dense<0.000000e+00> : vector<16x128xf32>
    %49 = tpu.matmul %46, %48, %cst_49 {dimension_numbers = #tpu.dot_dimension_numbers<[1], [0], [0], [1], [0, 0, 1, 1], [], []>} : vector<16x128xbf16>, vector<128x128xbf16>, vector<16x128xf32> -> vector<16x128xf32>
    %50 = arith.addf %44, %49 : vector<16x128xf32>
    %c0_50 = arith.constant 0 : index
    %c0_51 = arith.constant 0 : index
    %51 = vector.load %arg5[%c0_50, %c0_51] : memref<1x128xf32, #tpu.memory_space<vmem>>, vector<1x128xf32>
    %52 = vector.broadcast %51 : vector<1x128xf32> to vector<16x128xf32>
    %53 = arith.addf %50, %52 : vector<16x128xf32>
    %cst_52 = arith.constant 0.000000e+00 : f32
    %54 = vector.broadcast %cst_52 : f32 to vector<16x128xf32>
    %55 = arith.maximumf %53, %54 : vector<16x128xf32>
    %cst_53 = arith.constant 0.000000e+00 : f32
    %56 = vector.broadcast %cst_53 : f32 to vector<18x128xf32>
    %c0_54 = arith.constant 0 : index
    %c0_55 = arith.constant 0 : index
    %57 = vector.load %arg9[%c0_54, %c0_55] : memref<18x128xf32, #tpu.memory_space<vmem>>, vector<18x128xf32>
    tpu.vector_store %arg9[%c0_54, %c0_55], %56 {strides = array<i32>} : memref<18x128xf32, #tpu.memory_space<vmem>>, vector<18x128xf32>,
    %c1_56 = arith.constant 1 : index
    %c0_57 = arith.constant 0 : index
    %58 = vector.load %arg9[%c1_56, %c0_57] : memref<18x128xf32, #tpu.memory_space<vmem>>, vector<16x128xf32>
    tpu.vector_store %arg9[%c1_56, %c0_57], %55 {strides = array<i32>} : memref<18x128xf32, #tpu.memory_space<vmem>>, vector<16x128xf32>,
    %cst_58 = arith.constant 0.000000e+00 : f32
    %59 = vector.broadcast %cst_58 : f32 to vector<16x48xf32>
    %c0_59 = arith.constant 0 : index
    %c0_60 = arith.constant 0 : index
    %60 = vector.load %arg9[%c0_59, %c0_60] : memref<18x128xf32, #tpu.memory_space<vmem>>, vector<16x128xf32>
    %61 = arith.truncf %60 : vector<16x128xf32> to vector<16x128xbf16>
    %c0_61 = arith.constant 0 : index
    %c0_62 = arith.constant 0 : index
    %c0_63 = arith.constant 0 : index
    %62 = vector.load %arg6[%c0_61, %c0_62, %c0_63] : memref<3x128x48xbf16, #tpu.memory_space<vmem>>, vector<1x128x48xbf16>
    %63 = vector.shape_cast %62 : vector<1x128x48xbf16> to vector<128x48xbf16>
    %cst_64 = arith.constant dense<0.000000e+00> : vector<16x48xf32>
    %64 = tpu.matmul %61, %63, %cst_64 {dimension_numbers = #tpu.dot_dimension_numbers<[1], [0], [0], [1], [0, 0, 1, 1], [], []>} : vector<16x128xbf16>, vector<128x48xbf16>, vector<16x48xf32> -> vector<16x48xf32>
    %65 = arith.addf %59, %64 : vector<16x48xf32>
    %c1_65 = arith.constant 1 : index
    %c0_66 = arith.constant 0 : index
    %66 = vector.load %arg9[%c1_65, %c0_66] : memref<18x128xf32, #tpu.memory_space<vmem>>, vector<16x128xf32>
    %67 = arith.truncf %66 : vector<16x128xf32> to vector<16x128xbf16>
    %c1_67 = arith.constant 1 : index
    %c0_68 = arith.constant 0 : index
    %c0_69 = arith.constant 0 : index
    %68 = vector.load %arg6[%c1_67, %c0_68, %c0_69] : memref<3x128x48xbf16, #tpu.memory_space<vmem>>, vector<1x128x48xbf16>
    %69 = vector.shape_cast %68 : vector<1x128x48xbf16> to vector<128x48xbf16>
    %cst_70 = arith.constant dense<0.000000e+00> : vector<16x48xf32>
    %70 = tpu.matmul %67, %69, %cst_70 {dimension_numbers = #tpu.dot_dimension_numbers<[1], [0], [0], [1], [0, 0, 1, 1], [], []>} : vector<16x128xbf16>, vector<128x48xbf16>, vector<16x48xf32> -> vector<16x48xf32>
    %71 = arith.addf %65, %70 : vector<16x48xf32>
    %c2_71 = arith.constant 2 : index
    %c0_72 = arith.constant 0 : index
    %72 = vector.load %arg9[%c2_71, %c0_72] : memref<18x128xf32, #tpu.memory_space<vmem>>, vector<16x128xf32>
    %73 = arith.truncf %72 : vector<16x128xf32> to vector<16x128xbf16>
    %c2_73 = arith.constant 2 : index
    %c0_74 = arith.constant 0 : index
    %c0_75 = arith.constant 0 : index
    %74 = vector.load %arg6[%c2_73, %c0_74, %c0_75] : memref<3x128x48xbf16, #tpu.memory_space<vmem>>, vector<1x128x48xbf16>
    %75 = vector.shape_cast %74 : vector<1x128x48xbf16> to vector<128x48xbf16>
    %cst_76 = arith.constant dense<0.000000e+00> : vector<16x48xf32>
    %76 = tpu.matmul %73, %75, %cst_76 {dimension_numbers = #tpu.dot_dimension_numbers<[1], [0], [0], [1], [0, 0, 1, 1], [], []>} : vector<16x128xbf16>, vector<128x48xbf16>, vector<16x48xf32> -> vector<16x48xf32>
    %77 = arith.addf %71, %76 : vector<16x48xf32>
    %c0_77 = arith.constant 0 : index
    %c0_78 = arith.constant 0 : index
    %78 = vector.load %arg7[%c0_77, %c0_78] : memref<1x48xf32, #tpu.memory_space<vmem>>, vector<1x48xf32>
    %79 = vector.broadcast %78 : vector<1x48xf32> to vector<16x48xf32>
    %80 = arith.addf %77, %79 : vector<16x48xf32>
    %81 = math.tanh %80 : vector<16x48xf32>
    %c0_79 = arith.constant 0 : index
    %c0_80 = arith.constant 0 : index
    %c0_81 = arith.constant 0 : index
    %82 = vector.load %arg8[%c0_79, %c0_80, %c0_81] : memref<1x16x48xf32, #tpu.memory_space<vmem>>, vector<1x16x48xf32>
    %83 = vector.shape_cast %82 : vector<1x16x48xf32> to vector<16x48xf32>
    %84 = vector.shape_cast %81 : vector<16x48xf32> to vector<1x16x48xf32>
    tpu.vector_store %arg8[%c0_79, %c0_80, %c0_81], %84 {strides = array<i32>} : memref<1x16x48xf32, #tpu.memory_space<vmem>>, vector<1x16x48xf32>,
    return
  }
  func.func @transform_0(%arg0: i32) -> (i32, i32, i32) {
    %c0_i32 = arith.constant 0 : i32
    %c0_i32_0 = arith.constant 0 : i32
    %c0_i32_1 = arith.constant 0 : i32
    return %arg0, %c0_i32, %c0_i32_0 : i32, i32, i32
  }
  func.func @transform_1(%arg0: i32) -> (i32, i32, i32) {
    %c0_i32 = arith.constant 0 : i32
    %c0_i32_0 = arith.constant 0 : i32
    %c0_i32_1 = arith.constant 0 : i32
    %c0_i32_2 = arith.constant 0 : i32
    return %c0_i32, %c0_i32_0, %c0_i32_1 : i32, i32, i32
  }
  func.func @transform_2(%arg0: i32) -> (i32, i32) {
    %c0_i32 = arith.constant 0 : i32
    %c0_i32_0 = arith.constant 0 : i32
    %c0_i32_1 = arith.constant 0 : i32
    return %c0_i32, %c0_i32_0 : i32, i32
  }
  func.func @transform_3(%arg0: i32) -> (i32, i32, i32) {
    %c0_i32 = arith.constant 0 : i32
    %c0_i32_0 = arith.constant 0 : i32
    %c0_i32_1 = arith.constant 0 : i32
    %c0_i32_2 = arith.constant 0 : i32
    return %c0_i32, %c0_i32_0, %c0_i32_1 : i32, i32, i32
  }
  func.func @transform_4(%arg0: i32) -> (i32, i32) {
    %c0_i32 = arith.constant 0 : i32
    %c0_i32_0 = arith.constant 0 : i32
    %c0_i32_1 = arith.constant 0 : i32
    return %c0_i32, %c0_i32_0 : i32, i32
  }
  func.func @transform_5(%arg0: i32) -> (i32, i32, i32) {
    %c0_i32 = arith.constant 0 : i32
    %c0_i32_0 = arith.constant 0 : i32
    %c0_i32_1 = arith.constant 0 : i32
    %c0_i32_2 = arith.constant 0 : i32
    return %c0_i32, %c0_i32_0, %c0_i32_1 : i32, i32, i32
  }
  func.func @transform_6(%arg0: i32) -> (i32, i32) {
    %c0_i32 = arith.constant 0 : i32
    %c0_i32_0 = arith.constant 0 : i32
    %c0_i32_1 = arith.constant 0 : i32
    return %c0_i32, %c0_i32_0 : i32, i32
  }
  func.func @transform_7(%arg0: i32) -> (i32, i32, i32) {
    %c0_i32 = arith.constant 0 : i32
    %c0_i32_0 = arith.constant 0 : i32
    %c0_i32_1 = arith.constant 0 : i32
    return %arg0, %c0_i32, %c0_i32_0 : i32, i32, i32
  }
}

module attributes {stable_mosaic.version = 11 : i64} {
  func.func @kernel(%arg0: i32, %arg1: memref<1x16x48xf32, #tpu.memory_space<vmem>>, %arg2: memref<3x48x64xbf16, #tpu.memory_space<vmem>>, %arg3: memref<1x64xf32, #tpu.memory_space<vmem>>, %arg4: memref<3x64x32xbf16, #tpu.memory_space<vmem>>, %arg5: memref<1x32xf32, #tpu.memory_space<vmem>>, %arg6: memref<1x32x4xbf16, #tpu.memory_space<vmem>>, %arg7: memref<1x4xf32, #tpu.memory_space<vmem>>, %arg8: memref<1x4x4xf32, #tpu.memory_space<vmem>>, %arg9: memref<18x128xf32, #tpu.memory_space<vmem>>) attributes {dimension_semantics = [#tpu.dimension_semantics<parallel>], iteration_bounds = array<i64: 4>, scalar_prefetch = 0 : i64, scratch_operands = 1 : i64, tpu.core_type = #tpu.core_type<tc>, window_params = [{transform_indices = @transform_0, window_bounds = array<i64: 1, 16, 48>}, {pipeline_mode = #tpu.pipeline_mode<synchronous>, transform_indices = @transform_1, window_bounds = array<i64: 3, 48, 64>}, {pipeline_mode = #tpu.pipeline_mode<synchronous>, transform_indices = @transform_2, window_bounds = array<i64: 1, 64>}, {pipeline_mode = #tpu.pipeline_mode<synchronous>, transform_indices = @transform_3, window_bounds = array<i64: 3, 64, 32>}, {pipeline_mode = #tpu.pipeline_mode<synchronous>, transform_indices = @transform_4, window_bounds = array<i64: 1, 32>}, {pipeline_mode = #tpu.pipeline_mode<synchronous>, transform_indices = @transform_5, window_bounds = array<i64: 1, 32, 4>}, {pipeline_mode = #tpu.pipeline_mode<synchronous>, transform_indices = @transform_6, window_bounds = array<i64: 1, 4>}, {transform_indices = @transform_7, window_bounds = array<i64: 1, 4, 4>}]} {
    %cst = arith.constant 0.000000e+00 : f32
    %0 = vector.broadcast %cst : f32 to vector<18x128xf32>
    %c0 = arith.constant 0 : index
    %c0_0 = arith.constant 0 : index
    %1 = vector.load %arg9[%c0, %c0_0] : memref<18x128xf32, #tpu.memory_space<vmem>>, vector<18x128xf32>
    tpu.vector_store %arg9[%c0, %c0_0], %0 {strides = array<i32>} : memref<18x128xf32, #tpu.memory_space<vmem>>, vector<18x128xf32>,
    %c0_1 = arith.constant 0 : index
    %c0_2 = arith.constant 0 : index
    %c0_3 = arith.constant 0 : index
    %2 = vector.load %arg1[%c0_1, %c0_2, %c0_3] : memref<1x16x48xf32, #tpu.memory_space<vmem>>, vector<1x16x48xf32>
    %3 = vector.shape_cast %2 : vector<1x16x48xf32> to vector<16x48xf32>
    %c1 = arith.constant 1 : index
    %c0_4 = arith.constant 0 : index
    %4 = vector.load %arg9[%c1, %c0_4] : memref<18x128xf32, #tpu.memory_space<vmem>>, vector<16x48xf32>
    tpu.vector_store %arg9[%c1, %c0_4], %3 {strides = array<i32>} : memref<18x128xf32, #tpu.memory_space<vmem>>, vector<16x48xf32>,
    %cst_5 = arith.constant 0.000000e+00 : f32
    %5 = vector.broadcast %cst_5 : f32 to vector<16x64xf32>
    %c0_6 = arith.constant 0 : index
    %c0_7 = arith.constant 0 : index
    %6 = vector.load %arg9[%c0_6, %c0_7] : memref<18x128xf32, #tpu.memory_space<vmem>>, vector<16x48xf32>
    %7 = arith.truncf %6 : vector<16x48xf32> to vector<16x48xbf16>
    %c0_8 = arith.constant 0 : index
    %c0_9 = arith.constant 0 : index
    %c0_10 = arith.constant 0 : index
    %8 = vector.load %arg2[%c0_8, %c0_9, %c0_10] : memref<3x48x64xbf16, #tpu.memory_space<vmem>>, vector<1x48x64xbf16>
    %9 = vector.shape_cast %8 : vector<1x48x64xbf16> to vector<48x64xbf16>
    %cst_11 = arith.constant dense<0.000000e+00> : vector<16x64xf32>
    %10 = tpu.matmul %7, %9, %cst_11 {dimension_numbers = #tpu.dot_dimension_numbers<[1], [0], [0], [1], [0, 0, 1, 1], [], []>} : vector<16x48xbf16>, vector<48x64xbf16>, vector<16x64xf32> -> vector<16x64xf32>
    %11 = arith.addf %5, %10 : vector<16x64xf32>
    %c1_12 = arith.constant 1 : index
    %c0_13 = arith.constant 0 : index
    %12 = vector.load %arg9[%c1_12, %c0_13] : memref<18x128xf32, #tpu.memory_space<vmem>>, vector<16x48xf32>
    %13 = arith.truncf %12 : vector<16x48xf32> to vector<16x48xbf16>
    %c1_14 = arith.constant 1 : index
    %c0_15 = arith.constant 0 : index
    %c0_16 = arith.constant 0 : index
    %14 = vector.load %arg2[%c1_14, %c0_15, %c0_16] : memref<3x48x64xbf16, #tpu.memory_space<vmem>>, vector<1x48x64xbf16>
    %15 = vector.shape_cast %14 : vector<1x48x64xbf16> to vector<48x64xbf16>
    %cst_17 = arith.constant dense<0.000000e+00> : vector<16x64xf32>
    %16 = tpu.matmul %13, %15, %cst_17 {dimension_numbers = #tpu.dot_dimension_numbers<[1], [0], [0], [1], [0, 0, 1, 1], [], []>} : vector<16x48xbf16>, vector<48x64xbf16>, vector<16x64xf32> -> vector<16x64xf32>
    %17 = arith.addf %11, %16 : vector<16x64xf32>
    %c2 = arith.constant 2 : index
    %c0_18 = arith.constant 0 : index
    %18 = vector.load %arg9[%c2, %c0_18] : memref<18x128xf32, #tpu.memory_space<vmem>>, vector<16x48xf32>
    %19 = arith.truncf %18 : vector<16x48xf32> to vector<16x48xbf16>
    %c2_19 = arith.constant 2 : index
    %c0_20 = arith.constant 0 : index
    %c0_21 = arith.constant 0 : index
    %20 = vector.load %arg2[%c2_19, %c0_20, %c0_21] : memref<3x48x64xbf16, #tpu.memory_space<vmem>>, vector<1x48x64xbf16>
    %21 = vector.shape_cast %20 : vector<1x48x64xbf16> to vector<48x64xbf16>
    %cst_22 = arith.constant dense<0.000000e+00> : vector<16x64xf32>
    %22 = tpu.matmul %19, %21, %cst_22 {dimension_numbers = #tpu.dot_dimension_numbers<[1], [0], [0], [1], [0, 0, 1, 1], [], []>} : vector<16x48xbf16>, vector<48x64xbf16>, vector<16x64xf32> -> vector<16x64xf32>
    %23 = arith.addf %17, %22 : vector<16x64xf32>
    %c0_23 = arith.constant 0 : index
    %c0_24 = arith.constant 0 : index
    %24 = vector.load %arg3[%c0_23, %c0_24] : memref<1x64xf32, #tpu.memory_space<vmem>>, vector<1x64xf32>
    %25 = vector.broadcast %24 : vector<1x64xf32> to vector<16x64xf32>
    %26 = arith.addf %23, %25 : vector<16x64xf32>
    %cst_25 = arith.constant 0.000000e+00 : f32
    %27 = vector.broadcast %cst_25 : f32 to vector<16x64xf32>
    %28 = arith.cmpf oge, %26, %27 : vector<16x64xf32>
    %cst_26 = arith.constant 2.000000e-01 : f32
    %29 = vector.broadcast %cst_26 : f32 to vector<16x64xf32>
    %30 = arith.mulf %29, %26 : vector<16x64xf32>
    %31 = arith.select %28, %26, %30 : vector<16x64xi1>, vector<16x64xf32>
    %32 = tpu.iota {dimensions = array<i32: 1>} : vector<8x16xi32>
    %33 = tpu.iota {dimensions = array<i32: 0>} : vector<8x16xi32>
    %c2_i32 = arith.constant 2 : i32
    %34 = vector.broadcast %c2_i32 : i32 to vector<8x16xi32>
    %35 = arith.muli %34, %33 : vector<8x16xi32>
    %36 = arith.cmpi eq, %32, %35 : vector<8x16xi32>
    %37 = arith.extui %36 : vector<8x16xi1> to vector<8x16xi32>
    %38 = arith.sitofp %37 : vector<8x16xi32> to vector<8x16xf32>
    %cst_27 = arith.constant dense<0.000000e+00> : vector<8x64xf32>
    %39 = tpu.matmul %38, %31, %cst_27 {dimension_numbers = #tpu.dot_dimension_numbers<[1], [0], [0], [1], [0, 0, 1, 1], [], []>} : vector<8x16xf32>, vector<16x64xf32>, vector<8x64xf32> -> vector<8x64xf32>
    %cst_28 = arith.constant 0.000000e+00 : f32
    %40 = vector.broadcast %cst_28 : f32 to vector<18x128xf32>
    %c0_29 = arith.constant 0 : index
    %c0_30 = arith.constant 0 : index
    %41 = vector.load %arg9[%c0_29, %c0_30] : memref<18x128xf32, #tpu.memory_space<vmem>>, vector<18x128xf32>
    tpu.vector_store %arg9[%c0_29, %c0_30], %40 {strides = array<i32>} : memref<18x128xf32, #tpu.memory_space<vmem>>, vector<18x128xf32>,
    %c1_31 = arith.constant 1 : index
    %c0_32 = arith.constant 0 : index
    %42 = vector.load %arg9[%c1_31, %c0_32] : memref<18x128xf32, #tpu.memory_space<vmem>>, vector<8x64xf32>
    tpu.vector_store %arg9[%c1_31, %c0_32], %39 {strides = array<i32>} : memref<18x128xf32, #tpu.memory_space<vmem>>, vector<8x64xf32>,
    %cst_33 = arith.constant 0.000000e+00 : f32
    %43 = vector.broadcast %cst_33 : f32 to vector<8x32xf32>
    %c0_34 = arith.constant 0 : index
    %c0_35 = arith.constant 0 : index
    %44 = vector.load %arg9[%c0_34, %c0_35] : memref<18x128xf32, #tpu.memory_space<vmem>>, vector<8x64xf32>
    %45 = arith.truncf %44 : vector<8x64xf32> to vector<8x64xbf16>
    %c0_36 = arith.constant 0 : index
    %c0_37 = arith.constant 0 : index
    %c0_38 = arith.constant 0 : index
    %46 = vector.load %arg4[%c0_36, %c0_37, %c0_38] : memref<3x64x32xbf16, #tpu.memory_space<vmem>>, vector<1x64x32xbf16>
    %47 = vector.shape_cast %46 : vector<1x64x32xbf16> to vector<64x32xbf16>
    %cst_39 = arith.constant dense<0.000000e+00> : vector<8x32xf32>
    %48 = tpu.matmul %45, %47, %cst_39 {dimension_numbers = #tpu.dot_dimension_numbers<[1], [0], [0], [1], [0, 0, 1, 1], [], []>} : vector<8x64xbf16>, vector<64x32xbf16>, vector<8x32xf32> -> vector<8x32xf32>
    %49 = arith.addf %43, %48 : vector<8x32xf32>
    %c1_40 = arith.constant 1 : index
    %c0_41 = arith.constant 0 : index
    %50 = vector.load %arg9[%c1_40, %c0_41] : memref<18x128xf32, #tpu.memory_space<vmem>>, vector<8x64xf32>
    %51 = arith.truncf %50 : vector<8x64xf32> to vector<8x64xbf16>
    %c1_42 = arith.constant 1 : index
    %c0_43 = arith.constant 0 : index
    %c0_44 = arith.constant 0 : index
    %52 = vector.load %arg4[%c1_42, %c0_43, %c0_44] : memref<3x64x32xbf16, #tpu.memory_space<vmem>>, vector<1x64x32xbf16>
    %53 = vector.shape_cast %52 : vector<1x64x32xbf16> to vector<64x32xbf16>
    %cst_45 = arith.constant dense<0.000000e+00> : vector<8x32xf32>
    %54 = tpu.matmul %51, %53, %cst_45 {dimension_numbers = #tpu.dot_dimension_numbers<[1], [0], [0], [1], [0, 0, 1, 1], [], []>} : vector<8x64xbf16>, vector<64x32xbf16>, vector<8x32xf32> -> vector<8x32xf32>
    %55 = arith.addf %49, %54 : vector<8x32xf32>
    %c2_46 = arith.constant 2 : index
    %c0_47 = arith.constant 0 : index
    %56 = vector.load %arg9[%c2_46, %c0_47] : memref<18x128xf32, #tpu.memory_space<vmem>>, vector<8x64xf32>
    %57 = arith.truncf %56 : vector<8x64xf32> to vector<8x64xbf16>
    %c2_48 = arith.constant 2 : index
    %c0_49 = arith.constant 0 : index
    %c0_50 = arith.constant 0 : index
    %58 = vector.load %arg4[%c2_48, %c0_49, %c0_50] : memref<3x64x32xbf16, #tpu.memory_space<vmem>>, vector<1x64x32xbf16>
    %59 = vector.shape_cast %58 : vector<1x64x32xbf16> to vector<64x32xbf16>
    %cst_51 = arith.constant dense<0.000000e+00> : vector<8x32xf32>
    %60 = tpu.matmul %57, %59, %cst_51 {dimension_numbers = #tpu.dot_dimension_numbers<[1], [0], [0], [1], [0, 0, 1, 1], [], []>} : vector<8x64xbf16>, vector<64x32xbf16>, vector<8x32xf32> -> vector<8x32xf32>
    %61 = arith.addf %55, %60 : vector<8x32xf32>
    %c0_52 = arith.constant 0 : index
    %c0_53 = arith.constant 0 : index
    %62 = vector.load %arg5[%c0_52, %c0_53] : memref<1x32xf32, #tpu.memory_space<vmem>>, vector<1x32xf32>
    %63 = vector.broadcast %62 : vector<1x32xf32> to vector<8x32xf32>
    %64 = arith.addf %61, %63 : vector<8x32xf32>
    %cst_54 = arith.constant 0.000000e+00 : f32
    %65 = vector.broadcast %cst_54 : f32 to vector<8x32xf32>
    %66 = arith.cmpf oge, %64, %65 : vector<8x32xf32>
    %cst_55 = arith.constant 2.000000e-01 : f32
    %67 = vector.broadcast %cst_55 : f32 to vector<8x32xf32>
    %68 = arith.mulf %67, %64 : vector<8x32xf32>
    %69 = arith.select %66, %64, %68 : vector<8x32xi1>, vector<8x32xf32>
    %70 = tpu.iota {dimensions = array<i32: 1>} : vector<4x8xi32>
    %71 = tpu.iota {dimensions = array<i32: 0>} : vector<4x8xi32>
    %c2_i32_56 = arith.constant 2 : i32
    %72 = vector.broadcast %c2_i32_56 : i32 to vector<4x8xi32>
    %73 = arith.muli %72, %71 : vector<4x8xi32>
    %74 = arith.cmpi eq, %70, %73 : vector<4x8xi32>
    %75 = arith.extui %74 : vector<4x8xi1> to vector<4x8xi32>
    %76 = arith.sitofp %75 : vector<4x8xi32> to vector<4x8xf32>
    %cst_57 = arith.constant dense<0.000000e+00> : vector<4x32xf32>
    %77 = tpu.matmul %76, %69, %cst_57 {dimension_numbers = #tpu.dot_dimension_numbers<[1], [0], [0], [1], [0, 0, 1, 1], [], []>} : vector<4x8xf32>, vector<8x32xf32>, vector<4x32xf32> -> vector<4x32xf32>
    %cst_58 = arith.constant 0.000000e+00 : f32
    %78 = vector.broadcast %cst_58 : f32 to vector<18x128xf32>
    %c0_59 = arith.constant 0 : index
    %c0_60 = arith.constant 0 : index
    %79 = vector.load %arg9[%c0_59, %c0_60] : memref<18x128xf32, #tpu.memory_space<vmem>>, vector<18x128xf32>
    tpu.vector_store %arg9[%c0_59, %c0_60], %78 {strides = array<i32>} : memref<18x128xf32, #tpu.memory_space<vmem>>, vector<18x128xf32>,
    %c1_61 = arith.constant 1 : index
    %c0_62 = arith.constant 0 : index
    %80 = vector.load %arg9[%c1_61, %c0_62] : memref<18x128xf32, #tpu.memory_space<vmem>>, vector<4x32xf32>
    tpu.vector_store %arg9[%c1_61, %c0_62], %77 {strides = array<i32>} : memref<18x128xf32, #tpu.memory_space<vmem>>, vector<4x32xf32>,
    %cst_63 = arith.constant 0.000000e+00 : f32
    %81 = vector.broadcast %cst_63 : f32 to vector<4x4xf32>
    %c1_64 = arith.constant 1 : index
    %c0_65 = arith.constant 0 : index
    %82 = vector.load %arg9[%c1_64, %c0_65] : memref<18x128xf32, #tpu.memory_space<vmem>>, vector<4x32xf32>
    %83 = arith.truncf %82 : vector<4x32xf32> to vector<4x32xbf16>
    %c0_66 = arith.constant 0 : index
    %c0_67 = arith.constant 0 : index
    %c0_68 = arith.constant 0 : index
    %84 = vector.load %arg6[%c0_66, %c0_67, %c0_68] : memref<1x32x4xbf16, #tpu.memory_space<vmem>>, vector<1x32x4xbf16>
    %85 = vector.shape_cast %84 : vector<1x32x4xbf16> to vector<32x4xbf16>
    %cst_69 = arith.constant dense<0.000000e+00> : vector<4x4xf32>
    %86 = tpu.matmul %83, %85, %cst_69 {dimension_numbers = #tpu.dot_dimension_numbers<[1], [0], [0], [1], [0, 0, 1, 1], [], []>} : vector<4x32xbf16>, vector<32x4xbf16>, vector<4x4xf32> -> vector<4x4xf32>
    %87 = arith.addf %81, %86 : vector<4x4xf32>
    %c0_70 = arith.constant 0 : index
    %c0_71 = arith.constant 0 : index
    %88 = vector.load %arg7[%c0_70, %c0_71] : memref<1x4xf32, #tpu.memory_space<vmem>>, vector<1x4xf32>
    %89 = vector.broadcast %88 : vector<1x4xf32> to vector<4x4xf32>
    %90 = arith.addf %87, %89 : vector<4x4xf32>
    %c0_72 = arith.constant 0 : index
    %c0_73 = arith.constant 0 : index
    %c0_74 = arith.constant 0 : index
    %91 = vector.load %arg8[%c0_72, %c0_73, %c0_74] : memref<1x4x4xf32, #tpu.memory_space<vmem>>, vector<1x4x4xf32>
    %92 = vector.shape_cast %91 : vector<1x4x4xf32> to vector<4x4xf32>
    %93 = vector.shape_cast %90 : vector<4x4xf32> to vector<1x4x4xf32>
    tpu.vector_store %arg8[%c0_72, %c0_73, %c0_74], %93 {strides = array<i32>} : memref<1x4x4xf32, #tpu.memory_space<vmem>>, vector<1x4x4xf32>,
    return
  }
  func.func @transform_0(%arg0: i32) -> (i32, i32, i32) {
    %c0_i32 = arith.constant 0 : i32
    %c0_i32_0 = arith.constant 0 : i32
    %c0_i32_1 = arith.constant 0 : i32
    return %arg0, %c0_i32, %c0_i32_0 : i32, i32, i32
  }
  func.func @transform_1(%arg0: i32) -> (i32, i32, i32) {
    %c0_i32 = arith.constant 0 : i32
    %c0_i32_0 = arith.constant 0 : i32
    %c0_i32_1 = arith.constant 0 : i32
    %c0_i32_2 = arith.constant 0 : i32
    return %c0_i32, %c0_i32_0, %c0_i32_1 : i32, i32, i32
  }
  func.func @transform_2(%arg0: i32) -> (i32, i32) {
    %c0_i32 = arith.constant 0 : i32
    %c0_i32_0 = arith.constant 0 : i32
    %c0_i32_1 = arith.constant 0 : i32
    return %c0_i32, %c0_i32_0 : i32, i32
  }
  func.func @transform_3(%arg0: i32) -> (i32, i32, i32) {
    %c0_i32 = arith.constant 0 : i32
    %c0_i32_0 = arith.constant 0 : i32
    %c0_i32_1 = arith.constant 0 : i32
    %c0_i32_2 = arith.constant 0 : i32
    return %c0_i32, %c0_i32_0, %c0_i32_1 : i32, i32, i32
  }
  func.func @transform_4(%arg0: i32) -> (i32, i32) {
    %c0_i32 = arith.constant 0 : i32
    %c0_i32_0 = arith.constant 0 : i32
    %c0_i32_1 = arith.constant 0 : i32
    return %c0_i32, %c0_i32_0 : i32, i32
  }
  func.func @transform_5(%arg0: i32) -> (i32, i32, i32) {
    %c0_i32 = arith.constant 0 : i32
    %c0_i32_0 = arith.constant 0 : i32
    %c0_i32_1 = arith.constant 0 : i32
    %c0_i32_2 = arith.constant 0 : i32
    return %c0_i32, %c0_i32_0, %c0_i32_1 : i32, i32, i32
  }
  func.func @transform_6(%arg0: i32) -> (i32, i32) {
    %c0_i32 = arith.constant 0 : i32
    %c0_i32_0 = arith.constant 0 : i32
    %c0_i32_1 = arith.constant 0 : i32
    return %c0_i32, %c0_i32_0 : i32, i32
  }
  func.func @transform_7(%arg0: i32) -> (i32, i32, i32) {
    %c0_i32 = arith.constant 0 : i32
    %c0_i32_0 = arith.constant 0 : i32
    %c0_i32_1 = arith.constant 0 : i32
    return %arg0, %c0_i32, %c0_i32_0 : i32, i32, i32
  }
}

module attributes {stable_mosaic.version = 11 : i64} {
  func.func @kernel(%arg0: i32, %arg1: memref<1x16x48xf32, #tpu.memory_space<vmem>>, %arg2: memref<3x48x128xbf16, #tpu.memory_space<vmem>>, %arg3: memref<1x128xf32, #tpu.memory_space<vmem>>, %arg4: memref<3x128x128xbf16, #tpu.memory_space<vmem>>, %arg5: memref<1x128xf32, #tpu.memory_space<vmem>>, %arg6: memref<3x128x48xbf16, #tpu.memory_space<vmem>>, %arg7: memref<1x48xf32, #tpu.memory_space<vmem>>, %arg8: memref<1x16x48xf32, #tpu.memory_space<vmem>>, %arg9: memref<18x128xf32, #tpu.memory_space<vmem>>) attributes {dimension_semantics = [#tpu.dimension_semantics<parallel>], iteration_bounds = array<i64: 2>, scalar_prefetch = 0 : i64, scratch_operands = 1 : i64, tpu.core_type = #tpu.core_type<tc>, window_params = [{transform_indices = @transform_0, window_bounds = array<i64: 1, 16, 48>}, {pipeline_mode = #tpu.pipeline_mode<synchronous>, transform_indices = @transform_1, window_bounds = array<i64: 3, 48, 128>}, {pipeline_mode = #tpu.pipeline_mode<synchronous>, transform_indices = @transform_2, window_bounds = array<i64: 1, 128>}, {pipeline_mode = #tpu.pipeline_mode<synchronous>, transform_indices = @transform_3, window_bounds = array<i64: 3, 128, 128>}, {pipeline_mode = #tpu.pipeline_mode<synchronous>, transform_indices = @transform_4, window_bounds = array<i64: 1, 128>}, {pipeline_mode = #tpu.pipeline_mode<synchronous>, transform_indices = @transform_5, window_bounds = array<i64: 3, 128, 48>}, {pipeline_mode = #tpu.pipeline_mode<synchronous>, transform_indices = @transform_6, window_bounds = array<i64: 1, 48>}, {transform_indices = @transform_7, window_bounds = array<i64: 1, 16, 48>}]} {
    %cst = arith.constant 0.000000e+00 : f32
    %0 = vector.broadcast %cst : f32 to vector<18x128xf32>
    %c0 = arith.constant 0 : index
    %c0_0 = arith.constant 0 : index
    %1 = vector.load %arg9[%c0, %c0_0] : memref<18x128xf32, #tpu.memory_space<vmem>>, vector<18x128xf32>
    tpu.vector_store %arg9[%c0, %c0_0], %0 {strides = array<i32>} : memref<18x128xf32, #tpu.memory_space<vmem>>, vector<18x128xf32>,
    %c0_1 = arith.constant 0 : index
    %c0_2 = arith.constant 0 : index
    %c0_3 = arith.constant 0 : index
    %2 = vector.load %arg1[%c0_1, %c0_2, %c0_3] : memref<1x16x48xf32, #tpu.memory_space<vmem>>, vector<1x16x48xf32>
    %3 = vector.shape_cast %2 : vector<1x16x48xf32> to vector<16x48xf32>
    %c1 = arith.constant 1 : index
    %c0_4 = arith.constant 0 : index
    %4 = vector.load %arg9[%c1, %c0_4] : memref<18x128xf32, #tpu.memory_space<vmem>>, vector<16x48xf32>
    tpu.vector_store %arg9[%c1, %c0_4], %3 {strides = array<i32>} : memref<18x128xf32, #tpu.memory_space<vmem>>, vector<16x48xf32>,
    %cst_5 = arith.constant 0.000000e+00 : f32
    %5 = vector.broadcast %cst_5 : f32 to vector<16x128xf32>
    %c0_6 = arith.constant 0 : index
    %c0_7 = arith.constant 0 : index
    %6 = vector.load %arg9[%c0_6, %c0_7] : memref<18x128xf32, #tpu.memory_space<vmem>>, vector<16x48xf32>
    %7 = arith.truncf %6 : vector<16x48xf32> to vector<16x48xbf16>
    %c0_8 = arith.constant 0 : index
    %c0_9 = arith.constant 0 : index
    %c0_10 = arith.constant 0 : index
    %8 = vector.load %arg2[%c0_8, %c0_9, %c0_10] : memref<3x48x128xbf16, #tpu.memory_space<vmem>>, vector<1x48x128xbf16>
    %9 = vector.shape_cast %8 : vector<1x48x128xbf16> to vector<48x128xbf16>
    %cst_11 = arith.constant dense<0.000000e+00> : vector<16x128xf32>
    %10 = tpu.matmul %7, %9, %cst_11 {dimension_numbers = #tpu.dot_dimension_numbers<[1], [0], [0], [1], [0, 0, 1, 1], [], []>} : vector<16x48xbf16>, vector<48x128xbf16>, vector<16x128xf32> -> vector<16x128xf32>
    %11 = arith.addf %5, %10 : vector<16x128xf32>
    %c1_12 = arith.constant 1 : index
    %c0_13 = arith.constant 0 : index
    %12 = vector.load %arg9[%c1_12, %c0_13] : memref<18x128xf32, #tpu.memory_space<vmem>>, vector<16x48xf32>
    %13 = arith.truncf %12 : vector<16x48xf32> to vector<16x48xbf16>
    %c1_14 = arith.constant 1 : index
    %c0_15 = arith.constant 0 : index
    %c0_16 = arith.constant 0 : index
    %14 = vector.load %arg2[%c1_14, %c0_15, %c0_16] : memref<3x48x128xbf16, #tpu.memory_space<vmem>>, vector<1x48x128xbf16>
    %15 = vector.shape_cast %14 : vector<1x48x128xbf16> to vector<48x128xbf16>
    %cst_17 = arith.constant dense<0.000000e+00> : vector<16x128xf32>
    %16 = tpu.matmul %13, %15, %cst_17 {dimension_numbers = #tpu.dot_dimension_numbers<[1], [0], [0], [1], [0, 0, 1, 1], [], []>} : vector<16x48xbf16>, vector<48x128xbf16>, vector<16x128xf32> -> vector<16x128xf32>
    %17 = arith.addf %11, %16 : vector<16x128xf32>
    %c2 = arith.constant 2 : index
    %c0_18 = arith.constant 0 : index
    %18 = vector.load %arg9[%c2, %c0_18] : memref<18x128xf32, #tpu.memory_space<vmem>>, vector<16x48xf32>
    %19 = arith.truncf %18 : vector<16x48xf32> to vector<16x48xbf16>
    %c2_19 = arith.constant 2 : index
    %c0_20 = arith.constant 0 : index
    %c0_21 = arith.constant 0 : index
    %20 = vector.load %arg2[%c2_19, %c0_20, %c0_21] : memref<3x48x128xbf16, #tpu.memory_space<vmem>>, vector<1x48x128xbf16>
    %21 = vector.shape_cast %20 : vector<1x48x128xbf16> to vector<48x128xbf16>
    %cst_22 = arith.constant dense<0.000000e+00> : vector<16x128xf32>
    %22 = tpu.matmul %19, %21, %cst_22 {dimension_numbers = #tpu.dot_dimension_numbers<[1], [0], [0], [1], [0, 0, 1, 1], [], []>} : vector<16x48xbf16>, vector<48x128xbf16>, vector<16x128xf32> -> vector<16x128xf32>
    %23 = arith.addf %17, %22 : vector<16x128xf32>
    %c0_23 = arith.constant 0 : index
    %c0_24 = arith.constant 0 : index
    %24 = vector.load %arg3[%c0_23, %c0_24] : memref<1x128xf32, #tpu.memory_space<vmem>>, vector<1x128xf32>
    %25 = vector.broadcast %24 : vector<1x128xf32> to vector<16x128xf32>
    %26 = arith.addf %23, %25 : vector<16x128xf32>
    %cst_25 = arith.constant 0.000000e+00 : f32
    %27 = vector.broadcast %cst_25 : f32 to vector<16x128xf32>
    %28 = arith.maximumf %26, %27 : vector<16x128xf32>
    %cst_26 = arith.constant 0.000000e+00 : f32
    %29 = vector.broadcast %cst_26 : f32 to vector<18x128xf32>
    %c0_27 = arith.constant 0 : index
    %c0_28 = arith.constant 0 : index
    %30 = vector.load %arg9[%c0_27, %c0_28] : memref<18x128xf32, #tpu.memory_space<vmem>>, vector<18x128xf32>
    tpu.vector_store %arg9[%c0_27, %c0_28], %29 {strides = array<i32>} : memref<18x128xf32, #tpu.memory_space<vmem>>, vector<18x128xf32>,
    %c1_29 = arith.constant 1 : index
    %c0_30 = arith.constant 0 : index
    %31 = vector.load %arg9[%c1_29, %c0_30] : memref<18x128xf32, #tpu.memory_space<vmem>>, vector<16x128xf32>
    tpu.vector_store %arg9[%c1_29, %c0_30], %28 {strides = array<i32>} : memref<18x128xf32, #tpu.memory_space<vmem>>, vector<16x128xf32>,
    %cst_31 = arith.constant 0.000000e+00 : f32
    %32 = vector.broadcast %cst_31 : f32 to vector<16x128xf32>
    %c0_32 = arith.constant 0 : index
    %c0_33 = arith.constant 0 : index
    %33 = vector.load %arg9[%c0_32, %c0_33] : memref<18x128xf32, #tpu.memory_space<vmem>>, vector<16x128xf32>
    %34 = arith.truncf %33 : vector<16x128xf32> to vector<16x128xbf16>
    %c0_34 = arith.constant 0 : index
    %c0_35 = arith.constant 0 : index
    %c0_36 = arith.constant 0 : index
    %35 = vector.load %arg4[%c0_34, %c0_35, %c0_36] : memref<3x128x128xbf16, #tpu.memory_space<vmem>>, vector<1x128x128xbf16>
    %36 = vector.shape_cast %35 : vector<1x128x128xbf16> to vector<128x128xbf16>
    %cst_37 = arith.constant dense<0.000000e+00> : vector<16x128xf32>
    %37 = tpu.matmul %34, %36, %cst_37 {dimension_numbers = #tpu.dot_dimension_numbers<[1], [0], [0], [1], [0, 0, 1, 1], [], []>} : vector<16x128xbf16>, vector<128x128xbf16>, vector<16x128xf32> -> vector<16x128xf32>
    %38 = arith.addf %32, %37 : vector<16x128xf32>
    %c1_38 = arith.constant 1 : index
    %c0_39 = arith.constant 0 : index
    %39 = vector.load %arg9[%c1_38, %c0_39] : memref<18x128xf32, #tpu.memory_space<vmem>>, vector<16x128xf32>
    %40 = arith.truncf %39 : vector<16x128xf32> to vector<16x128xbf16>
    %c1_40 = arith.constant 1 : index
    %c0_41 = arith.constant 0 : index
    %c0_42 = arith.constant 0 : index
    %41 = vector.load %arg4[%c1_40, %c0_41, %c0_42] : memref<3x128x128xbf16, #tpu.memory_space<vmem>>, vector<1x128x128xbf16>
    %42 = vector.shape_cast %41 : vector<1x128x128xbf16> to vector<128x128xbf16>
    %cst_43 = arith.constant dense<0.000000e+00> : vector<16x128xf32>
    %43 = tpu.matmul %40, %42, %cst_43 {dimension_numbers = #tpu.dot_dimension_numbers<[1], [0], [0], [1], [0, 0, 1, 1], [], []>} : vector<16x128xbf16>, vector<128x128xbf16>, vector<16x128xf32> -> vector<16x128xf32>
    %44 = arith.addf %38, %43 : vector<16x128xf32>
    %c2_44 = arith.constant 2 : index
    %c0_45 = arith.constant 0 : index
    %45 = vector.load %arg9[%c2_44, %c0_45] : memref<18x128xf32, #tpu.memory_space<vmem>>, vector<16x128xf32>
    %46 = arith.truncf %45 : vector<16x128xf32> to vector<16x128xbf16>
    %c2_46 = arith.constant 2 : index
    %c0_47 = arith.constant 0 : index
    %c0_48 = arith.constant 0 : index
    %47 = vector.load %arg4[%c2_46, %c0_47, %c0_48] : memref<3x128x128xbf16, #tpu.memory_space<vmem>>, vector<1x128x128xbf16>
    %48 = vector.shape_cast %47 : vector<1x128x128xbf16> to vector<128x128xbf16>
    %cst_49 = arith.constant dense<0.000000e+00> : vector<16x128xf32>
    %49 = tpu.matmul %46, %48, %cst_49 {dimension_numbers = #tpu.dot_dimension_numbers<[1], [0], [0], [1], [0, 0, 1, 1], [], []>} : vector<16x128xbf16>, vector<128x128xbf16>, vector<16x128xf32> -> vector<16x128xf32>
    %50 = arith.addf %44, %49 : vector<16x128xf32>
    %c0_50 = arith.constant 0 : index
    %c0_51 = arith.constant 0 : index
    %51 = vector.load %arg5[%c0_50, %c0_51] : memref<1x128xf32, #tpu.memory_space<vmem>>, vector<1x128xf32>
    %52 = vector.broadcast %51 : vector<1x128xf32> to vector<16x128xf32>
    %53 = arith.addf %50, %52 : vector<16x128xf32>
    %cst_52 = arith.constant 0.000000e+00 : f32
    %54 = vector.broadcast %cst_52 : f32 to vector<16x128xf32>
    %55 = arith.maximumf %53, %54 : vector<16x128xf32>
    %cst_53 = arith.constant 0.000000e+00 : f32
    %56 = vector.broadcast %cst_53 : f32 to vector<18x128xf32>
    %c0_54 = arith.constant 0 : index
    %c0_55 = arith.constant 0 : index
    %57 = vector.load %arg9[%c0_54, %c0_55] : memref<18x128xf32, #tpu.memory_space<vmem>>, vector<18x128xf32>
    tpu.vector_store %arg9[%c0_54, %c0_55], %56 {strides = array<i32>} : memref<18x128xf32, #tpu.memory_space<vmem>>, vector<18x128xf32>,
    %c1_56 = arith.constant 1 : index
    %c0_57 = arith.constant 0 : index
    %58 = vector.load %arg9[%c1_56, %c0_57] : memref<18x128xf32, #tpu.memory_space<vmem>>, vector<16x128xf32>
    tpu.vector_store %arg9[%c1_56, %c0_57], %55 {strides = array<i32>} : memref<18x128xf32, #tpu.memory_space<vmem>>, vector<16x128xf32>,
    %cst_58 = arith.constant 0.000000e+00 : f32
    %59 = vector.broadcast %cst_58 : f32 to vector<16x48xf32>
    %c0_59 = arith.constant 0 : index
    %c0_60 = arith.constant 0 : index
    %60 = vector.load %arg9[%c0_59, %c0_60] : memref<18x128xf32, #tpu.memory_space<vmem>>, vector<16x128xf32>
    %61 = arith.truncf %60 : vector<16x128xf32> to vector<16x128xbf16>
    %c0_61 = arith.constant 0 : index
    %c0_62 = arith.constant 0 : index
    %c0_63 = arith.constant 0 : index
    %62 = vector.load %arg6[%c0_61, %c0_62, %c0_63] : memref<3x128x48xbf16, #tpu.memory_space<vmem>>, vector<1x128x48xbf16>
    %63 = vector.shape_cast %62 : vector<1x128x48xbf16> to vector<128x48xbf16>
    %cst_64 = arith.constant dense<0.000000e+00> : vector<16x48xf32>
    %64 = tpu.matmul %61, %63, %cst_64 {dimension_numbers = #tpu.dot_dimension_numbers<[1], [0], [0], [1], [0, 0, 1, 1], [], []>} : vector<16x128xbf16>, vector<128x48xbf16>, vector<16x48xf32> -> vector<16x48xf32>
    %65 = arith.addf %59, %64 : vector<16x48xf32>
    %c1_65 = arith.constant 1 : index
    %c0_66 = arith.constant 0 : index
    %66 = vector.load %arg9[%c1_65, %c0_66] : memref<18x128xf32, #tpu.memory_space<vmem>>, vector<16x128xf32>
    %67 = arith.truncf %66 : vector<16x128xf32> to vector<16x128xbf16>
    %c1_67 = arith.constant 1 : index
    %c0_68 = arith.constant 0 : index
    %c0_69 = arith.constant 0 : index
    %68 = vector.load %arg6[%c1_67, %c0_68, %c0_69] : memref<3x128x48xbf16, #tpu.memory_space<vmem>>, vector<1x128x48xbf16>
    %69 = vector.shape_cast %68 : vector<1x128x48xbf16> to vector<128x48xbf16>
    %cst_70 = arith.constant dense<0.000000e+00> : vector<16x48xf32>
    %70 = tpu.matmul %67, %69, %cst_70 {dimension_numbers = #tpu.dot_dimension_numbers<[1], [0], [0], [1], [0, 0, 1, 1], [], []>} : vector<16x128xbf16>, vector<128x48xbf16>, vector<16x48xf32> -> vector<16x48xf32>
    %71 = arith.addf %65, %70 : vector<16x48xf32>
    %c2_71 = arith.constant 2 : index
    %c0_72 = arith.constant 0 : index
    %72 = vector.load %arg9[%c2_71, %c0_72] : memref<18x128xf32, #tpu.memory_space<vmem>>, vector<16x128xf32>
    %73 = arith.truncf %72 : vector<16x128xf32> to vector<16x128xbf16>
    %c2_73 = arith.constant 2 : index
    %c0_74 = arith.constant 0 : index
    %c0_75 = arith.constant 0 : index
    %74 = vector.load %arg6[%c2_73, %c0_74, %c0_75] : memref<3x128x48xbf16, #tpu.memory_space<vmem>>, vector<1x128x48xbf16>
    %75 = vector.shape_cast %74 : vector<1x128x48xbf16> to vector<128x48xbf16>
    %cst_76 = arith.constant dense<0.000000e+00> : vector<16x48xf32>
    %76 = tpu.matmul %73, %75, %cst_76 {dimension_numbers = #tpu.dot_dimension_numbers<[1], [0], [0], [1], [0, 0, 1, 1], [], []>} : vector<16x128xbf16>, vector<128x48xbf16>, vector<16x48xf32> -> vector<16x48xf32>
    %77 = arith.addf %71, %76 : vector<16x48xf32>
    %c0_77 = arith.constant 0 : index
    %c0_78 = arith.constant 0 : index
    %78 = vector.load %arg7[%c0_77, %c0_78] : memref<1x48xf32, #tpu.memory_space<vmem>>, vector<1x48xf32>
    %79 = vector.broadcast %78 : vector<1x48xf32> to vector<16x48xf32>
    %80 = arith.addf %77, %79 : vector<16x48xf32>
    %81 = math.tanh %80 : vector<16x48xf32>
    %c0_79 = arith.constant 0 : index
    %c0_80 = arith.constant 0 : index
    %c0_81 = arith.constant 0 : index
    %82 = vector.load %arg8[%c0_79, %c0_80, %c0_81] : memref<1x16x48xf32, #tpu.memory_space<vmem>>, vector<1x16x48xf32>
    %83 = vector.shape_cast %82 : vector<1x16x48xf32> to vector<16x48xf32>
    %84 = vector.shape_cast %81 : vector<16x48xf32> to vector<1x16x48xf32>
    tpu.vector_store %arg8[%c0_79, %c0_80, %c0_81], %84 {strides = array<i32>} : memref<1x16x48xf32, #tpu.memory_space<vmem>>, vector<1x16x48xf32>,
    return
  }
  func.func @transform_0(%arg0: i32) -> (i32, i32, i32) {
    %c0_i32 = arith.constant 0 : i32
    %c0_i32_0 = arith.constant 0 : i32
    %c0_i32_1 = arith.constant 0 : i32
    return %arg0, %c0_i32, %c0_i32_0 : i32, i32, i32
  }
  func.func @transform_1(%arg0: i32) -> (i32, i32, i32) {
    %c0_i32 = arith.constant 0 : i32
    %c0_i32_0 = arith.constant 0 : i32
    %c0_i32_1 = arith.constant 0 : i32
    %c0_i32_2 = arith.constant 0 : i32
    return %c0_i32, %c0_i32_0, %c0_i32_1 : i32, i32, i32
  }
  func.func @transform_2(%arg0: i32) -> (i32, i32) {
    %c0_i32 = arith.constant 0 : i32
    %c0_i32_0 = arith.constant 0 : i32
    %c0_i32_1 = arith.constant 0 : i32
    return %c0_i32, %c0_i32_0 : i32, i32
  }
  func.func @transform_3(%arg0: i32) -> (i32, i32, i32) {
    %c0_i32 = arith.constant 0 : i32
    %c0_i32_0 = arith.constant 0 : i32
    %c0_i32_1 = arith.constant 0 : i32
    %c0_i32_2 = arith.constant 0 : i32
    return %c0_i32, %c0_i32_0, %c0_i32_1 : i32, i32, i32
  }
  func.func @transform_4(%arg0: i32) -> (i32, i32) {
    %c0_i32 = arith.constant 0 : i32
    %c0_i32_0 = arith.constant 0 : i32
    %c0_i32_1 = arith.constant 0 : i32
    return %c0_i32, %c0_i32_0 : i32, i32
  }
  func.func @transform_5(%arg0: i32) -> (i32, i32, i32) {
    %c0_i32 = arith.constant 0 : i32
    %c0_i32_0 = arith.constant 0 : i32
    %c0_i32_1 = arith.constant 0 : i32
    %c0_i32_2 = arith.constant 0 : i32
    return %c0_i32, %c0_i32_0, %c0_i32_1 : i32, i32, i32
  }
  func.func @transform_6(%arg0: i32) -> (i32, i32) {
    %c0_i32 = arith.constant 0 : i32
    %c0_i32_0 = arith.constant 0 : i32
    %c0_i32_1 = arith.constant 0 : i32
    return %c0_i32, %c0_i32_0 : i32, i32
  }
  func.func @transform_7(%arg0: i32) -> (i32, i32, i32) {
    %c0_i32 = arith.constant 0 : i32
    %c0_i32_0 = arith.constant 0 : i32
    %c0_i32_1 = arith.constant 0 : i32
    return %arg0, %c0_i32, %c0_i32_0 : i32, i32, i32
  }
}

</mosaic_0001>

<llo_original>
// kernel: forward.7
$region0: #{forward.7}
  #allocation0 [shape = 'u32[]', space=smem, size = 0x4, offset = 0x4, fixed_abs, tag = 'smem constant byte address 0x4 - core index']
  #allocation1 [shape = 'u32[144,128]{1,0:T(1,128)}', space=vmem, size = 0x12000, scoped, tag = 'internal scratch']
  #allocation2 [shape = 'f32[18,128]{1,0:T(8,128)}', space=vmem, size = 0x3000, scoped, tag = 'scratch operand']
  %s0 = inlined_call_operand.vmem [shape: f32[4,16,48], index: 0, kind: input, shape index: {}]
  %s1 = inlined_call_operand.vmem [shape: bf16[3,48,128], index: 1, kind: input, shape index: {}]
  %s2 = inlined_call_operand.vmem [shape: f32[1,128], index: 2, kind: input, shape index: {}]
  %s3 = inlined_call_operand.vmem [shape: bf16[3,128,128], index: 3, kind: input, shape index: {}]
  %s4 = inlined_call_operand.vmem [shape: f32[1,128], index: 4, kind: input, shape index: {}]
  %s5 = inlined_call_operand.vmem [shape: bf16[3,128,48], index: 5, kind: input, shape index: {}]
  %s6 = inlined_call_operand.vmem [shape: f32[1,48], index: 6, kind: input, shape index: {}]
  %s7 = inlined_call_operand.vmem [shape: f32[4,16,48], index: 7, kind: output, shape index: {}]
  %s8 = sld [smem:[#allocation0]]
  $region61: #{forward.7} parent=0
    _
  %s10 = ssub.s32 1, %s8
  %s11 = scalar_select 0, %s10, %s8
  loop: start=0, step=1, limit=6
  $region2: #{forward.7} parent=0 // loop_pre_header
    _
  $region3: #{forward.7} parent=0 // loop_header
    %s13 = sphi 0, %s17
    %p14 = scmp.ge.s32.totalorder %s13, 6
    %s23 = sphi 0, %s25
    %s26 = sphi 0, %s23
    %s27 = sphi 0, %s26
    %s43 = sphi 0, %s27
    %s47 = sphi 0, %s47
    %s49 = sphi 0, %s47
    %s50 = sphi 0, %s49
    %s64 = sphi 0, %s50
    %s68 = sphi 0, %s68
    %s70 = sphi 0, %s68
    %s71 = sphi 0, %s70
    %s85 = sphi 0, %s71
    %s89 = sphi 0, %s89
    %s91 = sphi 0, %s89
    %s92 = sphi 0, %s91
    %s106 = sphi 0, %s92
    %s110 = sphi 0, %s110
    %s112 = sphi 0, %s110
    %s113 = sphi 0, %s112
    %s127 = sphi 0, %s113
    %s131 = sphi 0, %s131
    %s133 = sphi 0, %s131
    %s134 = sphi 0, %s133
    %s148 = sphi 0, %s134
    %s152 = sphi 0, %s152
    %s154 = sphi 0, %s152
    %s155 = sphi 0, %s154
    %s169 = sphi 0, %s155
    %s175 = sphi 0, %s177
    %s178 = sphi 0, %s175
    %s179 = sphi 0, %s178
    %s195 = sphi 0, %s179
  $region4: #{forward.7} parent=0 // loop_header_branch
    %16 = sbr.rel (%p14) target = $region8
  $region5: #{forward.7} parent=0 // loop_body
    %s18 = ssub.s32 %s13, 1
    %s19 = ssub.s32 %s13, 2
    %s20 = sadd.s32 %s13, 1
    %s21 = ssub.s32 %s13, %s20
    %p22 = scmp.eq.s32.totalorder %s21, 0
    %s24 = sadd.s32 %s23, 1
    %s25 = scalar_select %p22, %s23, %s24
    %p28 = pneg %p22
    %p29 = scmp.eq.s32.totalorder %s13, 3
    %p30 = por %p28, %p29
    %p31 = scmp.ne.s32.totalorder %s23, %s26
    %p32 = scmp.eq.s32.totalorder %s13, 0
    %p33 = por %p31, %p32
    %p34 = scmp.ne.s32.totalorder %s23, %s26
    %p35 = scmp.eq.s32.totalorder %s18, 3
    %p36 = por %p34, %p35
    %p37 = scmp.ne.s32.totalorder %s26, %s27
    %p38 = scmp.eq.s32.totalorder %s18, 0
    %p39 = por %p37, %p38
    %p40 = scmp.ne.s32.totalorder %s26, %s27
    %p41 = scmp.eq.s32.totalorder %s19, 3
    %p42 = por %p40, %p41
    %p44 = scmp.ne.s32.totalorder %s27, %s43
    %p45 = scmp.eq.s32.totalorder %s19, 0
    %p46 = por %p44, %p45
    %s48 = sadd.s32 %s47, 1
    %p51 = scmp.eq.s32.totalorder %s13, 3
    %p52 = scmp.ne.s32.totalorder %s47, %s49
    %p53 = scmp.eq.s32.totalorder %s13, 0
    %p54 = por %p52, %p53
    %p55 = scmp.ne.s32.totalorder %s47, %s49
    %p56 = scmp.eq.s32.totalorder %s18, 3
    %p57 = por %p55, %p56
    %p58 = scmp.ne.s32.totalorder %s49, %s50
    %p59 = scmp.eq.s32.totalorder %s18, 0
    %p60 = por %p58, %p59
    %p61 = scmp.ne.s32.totalorder %s49, %s50
    %p62 = scmp.eq.s32.totalorder %s19, 3
    %p63 = por %p61, %p62
    %p65 = scmp.ne.s32.totalorder %s50, %s64
    %p66 = scmp.eq.s32.totalorder %s19, 0
    %p67 = por %p65, %p66
    %s69 = sadd.s32 %s68, 1
    %p72 = scmp.eq.s32.totalorder %s13, 3
    %p73 = scmp.ne.s32.totalorder %s68, %s70
    %p74 = scmp.eq.s32.totalorder %s13, 0
    %p75 = por %p73, %p74
    %p76 = scmp.ne.s32.totalorder %s68, %s70
    %p77 = scmp.eq.s32.totalorder %s18, 3
    %p78 = por %p76, %p77
    %p79 = scmp.ne.s32.totalorder %s70, %s71
    %p80 = scmp.eq.s32.totalorder %s18, 0
    %p81 = por %p79, %p80
    %p82 = scmp.ne.s32.totalorder %s70, %s71
    %p83 = scmp.eq.s32.totalorder %s19, 3
    %p84 = por %p82, %p83
    %p86 = scmp.ne.s32.totalorder %s71, %s85
    %p87 = scmp.eq.s32.totalorder %s19, 0
    %p88 = por %p86, %p87
    %s90 = sadd.s32 %s89, 1
    %p93 = scmp.eq.s32.totalorder %s13, 3
    %p94 = scmp.ne.s32.totalorder %s89, %s91
    %p95 = scmp.eq.s32.totalorder %s13, 0
    %p96 = por %p94, %p95
    %p97 = scmp.ne.s32.totalorder %s89, %s91
    %p98 = scmp.eq.s32.totalorder %s18, 3
    %p99 = por %p97, %p98
    %p100 = scmp.ne.s32.totalorder %s91, %s92
    %p101 = scmp.eq.s32.totalorder %s18, 0
    %p102 = por %p100, %p101
    %p103 = scmp.ne.s32.totalorder %s91, %s92
    %p104 = scmp.eq.s32.totalorder %s19, 3
    %p105 = por %p103, %p104
    %p107 = scmp.ne.s32.totalorder %s92, %s106
    %p108 = scmp.eq.s32.totalorder %s19, 0
    %p109 = por %p107, %p108
    %s111 = sadd.s32 %s110, 1
    %p114 = scmp.eq.s32.totalorder %s13, 3
    %p115 = scmp.ne.s32.totalorder %s110, %s112
    %p116 = scmp.eq.s32.totalorder %s13, 0
    %p117 = por %p115, %p116
    %p118 = scmp.ne.s32.totalorder %s110, %s112
    %p119 = scmp.eq.s32.totalorder %s18, 3
    %p120 = por %p118, %p119
    %p121 = scmp.ne.s32.totalorder %s112, %s113
    %p122 = scmp.eq.s32.totalorder %s18, 0
    %p123 = por %p121, %p122
    %p124 = scmp.ne.s32.totalorder %s112, %s113
    %p125 = scmp.eq.s32.totalorder %s19, 3
    %p126 = por %p124, %p125
    %p128 = scmp.ne.s32.totalorder %s113, %s127
    %p129 = scmp.eq.s32.totalorder %s19, 0
    %p130 = por %p128, %p129
    %s132 = sadd.s32 %s131, 1
    %p135 = scmp.eq.s32.totalorder %s13, 3
    %p136 = scmp.ne.s32.totalorder %s131, %s133
    %p137 = scmp.eq.s32.totalorder %s13, 0
    %p138 = por %p136, %p137
    %p139 = scmp.ne.s32.totalorder %s131, %s133
    %p140 = scmp.eq.s32.totalorder %s18, 3
    %p141 = por %p139, %p140
    %p142 = scmp.ne.s32.totalorder %s133, %s134
    %p143 = scmp.eq.s32.totalorder %s18, 0
    %p144 = por %p142, %p143
    %p145 = scmp.ne.s32.totalorder %s133, %s134
    %p146 = scmp.eq.s32.totalorder %s19, 3
    %p147 = por %p145, %p146
    %p149 = scmp.ne.s32.totalorder %s134, %s148
    %p150 = scmp.eq.s32.totalorder %s19, 0
    %p151 = por %p149, %p150
    %s153 = sadd.s32 %s152, 1
    %p156 = scmp.eq.s32.totalorder %s13, 3
    %p157 = scmp.ne.s32.totalorder %s152, %s154
    %p158 = scmp.eq.s32.totalorder %s13, 0
    %p159 = por %p157, %p158
    %p160 = scmp.ne.s32.totalorder %s152, %s154
    %p161 = scmp.eq.s32.totalorder %s18, 3
    %p162 = por %p160, %p161
    %p163 = scmp.ne.s32.totalorder %s154, %s155
    %p164 = scmp.eq.s32.totalorder %s18, 0
    %p165 = por %p163, %p164
    %p166 = scmp.ne.s32.totalorder %s154, %s155
    %p167 = scmp.eq.s32.totalorder %s19, 3
    %p168 = por %p166, %p167
    %p170 = scmp.ne.s32.totalorder %s155, %s169
    %p171 = scmp.eq.s32.totalorder %s19, 0
    %p172 = por %p170, %p171
    %s173 = ssub.s32 %s13, %s20
    %p174 = scmp.eq.s32.totalorder %s173, 0
    %s176 = sadd.s32 %s175, 1
    %s177 = scalar_select %p174, %s175, %s176
    %p180 = pneg %p174
    %p181 = scmp.eq.s32.totalorder %s13, 3
    %p182 = por %p180, %p181
    %p183 = scmp.ne.s32.totalorder %s175, %s178
    %p184 = scmp.eq.s32.totalorder %s13, 0
    %p185 = por %p183, %p184
    %p186 = scmp.ne.s32.totalorder %s175, %s178
    %p187 = scmp.eq.s32.totalorder %s18, 3
    %p188 = por %p186, %p187
    %p189 = scmp.ne.s32.totalorder %s178, %s179
    %p190 = scmp.eq.s32.totalorder %s18, 0
    %p191 = por %p189, %p190
    %p192 = scmp.ne.s32.totalorder %s178, %s179
    %p193 = scmp.eq.s32.totalorder %s19, 3
    %p194 = por %p192, %p193
    %p196 = scmp.ne.s32.totalorder %s179, %s195
    %p197 = scmp.eq.s32.totalorder %s19, 0
    %p198 = por %p196, %p197
    %p199 = scmp.le.s32.totalorder 1, %s13
    %p200 = scmp.lt.s32.totalorder %s13, 5
    %p201 = pnand %p199, %p200
    %p202 = pneg %p201
    // Predicated region
    $region9: #{forward.7} parent=5 // pred_check
      _
    $region10: #{forward.7} parent=5 // pred_check_branch
      %204 = sbr.rel (%p201) target = $region12
    $region11: #{forward.7} parent=5 // pred_region
      %s205 = ssub.s32 %s13, 1
      // Predicated region
      $region13: #{forward.7} parent=11 // pred_check
        %p206 = pneg %p60
      $region14: #{forward.7} parent=11 // pred_check_branch
        %208 = sbr.rel (%p206) target = $region16
      $region15: #{forward.7} parent=11 // pred_region
        _
      $region16: #{forward.7} parent=11 // pred_fallthru
        _
      // Predicated region
      $region17: #{forward.7} parent=11 // pred_check
        %p209 = pneg %p81
      $region18: #{forward.7} parent=11 // pred_check_branch
        %211 = sbr.rel (%p209) target = $region20
      $region19: #{forward.7} parent=11 // pred_region
        _
      $region20: #{forward.7} parent=11 // pred_fallthru
        _
      // Predicated region
      $region21: #{forward.7} parent=11 // pred_check
        %p212 = pneg %p102
      $region22: #{forward.7} parent=11 // pred_check_branch
        %214 = sbr.rel (%p212) target = $region24
      $region23: #{forward.7} parent=11 // pred_region
        _
      $region24: #{forward.7} parent=11 // pred_fallthru
        _
      // Predicated region
      $region25: #{forward.7} parent=11 // pred_check
        %p215 = pneg %p123
      $region26: #{forward.7} parent=11 // pred_check_branch
        %217 = sbr.rel (%p215) target = $region28
      $region27: #{forward.7} parent=11 // pred_region
        _
      $region28: #{forward.7} parent=11 // pred_fallthru
        _
      // Predicated region
      $region29: #{forward.7} parent=11 // pred_check
        %p218 = pneg %p144
      $region30: #{forward.7} parent=11 // pred_check_branch
        %220 = sbr.rel (%p218) target = $region32
      $region31: #{forward.7} parent=11 // pred_region
        _
      $region32: #{forward.7} parent=11 // pred_fallthru
        _
      // Predicated region
      $region33: #{forward.7} parent=11 // pred_check
        %p221 = pneg %p165
      $region34: #{forward.7} parent=11 // pred_check_branch
        %223 = sbr.rel (%p221) target = $region36
      $region35: #{forward.7} parent=11 // pred_region
        _
      $region36: #{forward.7} parent=11 // pred_fallthru
        _
    $region12: #{forward.7} parent=5 // pred_fallthru
      _
    %p224 = scmp.lt.s32.totalorder %s13, 4
    // Predicated region
    $region37: #{forward.7} parent=5 // pred_check
      %p225 = pneg %p224
    $region38: #{forward.7} parent=5 // pred_check_branch
      %227 = sbr.rel (%p225) target = $region40
    $region39: #{forward.7} parent=5 // pred_region
      // Predicated region
      $region41: #{forward.7} parent=39 // pred_check
        %p228 = pneg %p33
      $region42: #{forward.7} parent=39 // pred_check_branch
        %230 = sbr.rel (%p228) target = $region44
      $region43: #{forward.7} parent=39 // pred_region
        %p231 = scmp.lt.s32.totalorder %s13, 3
        %s232 = scalar_select %p231, %s13, 3
        %s233 = smul.addr %s232, 2
        %s234 = smul.addr %s233, 8
        %s235 = scalar_lea.vmem %s0, %s234
      $region44: #{forward.7} parent=39 // pred_fallthru
        _
    $region40: #{forward.7} parent=5 // pred_fallthru
      _
    %p236 = scmp.le.s32.totalorder 1, %s13
    %p237 = scmp.lt.s32.totalorder %s13, 5
    %p238 = pnand %p236, %p237
    %p239 = pneg %p238
    // Predicated region
    $region45: #{forward.7} parent=5 // pred_check
      _
    $region46: #{forward.7} parent=5 // pred_check_branch
      %241 = sbr.rel (%p238) target = $region48
    $region47: #{forward.7} parent=5 // pred_region
      %s242 = ssub.s32 %s13, 1
      %p243 = scmp.lt.s32.totalorder %s18, 3
      %s244 = scalar_select %p243, %s18, 3
      %s245 = smul.addr %s244, 2
      %s246 = smul.addr %s245, 8
      %s247 = scalar_lea.vmem %s0, %s246
      %p248 = pneg %p39
      %p249 = pneg %p36
      %p250 = pneg %p60
      %p251 = pneg %p57
      %p252 = pneg %p81
      %p253 = pneg %p78
      %p254 = pneg %p102
      %p255 = pneg %p99
      %p256 = pneg %p123
      %p257 = pneg %p120
      %p258 = pneg %p144
      %p259 = pneg %p141
      %p260 = pneg %p165
      %p261 = pneg %p162
      %p262 = pneg %p191
      %p263 = pneg %p188
      %p264 = scmp.lt.s32.totalorder %s18, 3
      %s265 = scalar_select %p264, %s18, 3
      %s266 = smul.addr %s265, 2
      %s267 = smul.addr %s266, 8
      %s268 = scalar_lea.vmem %s7, %s267
      %p269 = scmp.lt.s32.totalorder %s18, 3
      %s270 = scalar_select %p269, %s18, 3
      %s271 = smul.addr %s270, 2
      %s272 = smul.addr %s271, 8
      %s273 = scalar_lea.vmem %s0, %s272
      %p274 = scmp.lt.s32.totalorder %s18, 3
      %s275 = scalar_select %p274, %s18, 3
      %s276 = smul.addr %s275, 2
      %s277 = smul.addr %s276, 8
      %s278 = scalar_lea.vmem %s7, %s277
      %280 = vst [vmem:[#allocation2] sm:$0xff] 0.0
      %281 = vst [vmem:[#allocation2 + $0x8] sm:$0xff] 0.0
      %282 = vst [vmem:[#allocation2 + $0x10] sm:$0x3] 0.0
      %v283 = vld [vmem:[%s273] sm:$0xff]
      %v284 = vld [vmem:[%s273 + $0x8] sm:$0xff]
      %vm285 = vcmask 392192
      %286 = vst.msk [vmem:[#allocation2 + $0x1] sm:$0xff] %vm285, %v283
      %287 = vst.msk [vmem:[#allocation2 + $0x9] sm:$0xff] %vm285, %v284
      %v288 = vld [vmem:[#allocation2] sm:$0xff]
      %v289 = vld [vmem:[#allocation2 + $0x8] sm:$0xff]
      %v290 = vpack.c.bf16 %v289, %v288
      %v291 = vld [vmem:[%s1] sm:$0xf]
      %v292 = vld [vmem:[%s1 + $0x4] sm:$0xf]
      %v293 = vld [vmem:[%s1 + $0x8] sm:$0xf]
      %v294 = vld [vmem:[%s1 + $0xc] sm:$0xf]
      %v295 = vld [vmem:[%s1 + $0x10] sm:$0xf]
      %v296 = vld [vmem:[%s1 + $0x14] sm:$0xf]
      %v297 = vld [vmem:[#allocation2 + $0x1] sm:$0xff]
      %v298 = vld [vmem:[#allocation2 + $0x9] sm:$0xff]
      %v299 = vpack.c.bf16 %v298, %v297
      %s300 = scalar_lea.vmem %s1, 24
      %v301 = vld [vmem:[%s300] sm:$0xf]
      %v302 = vld [vmem:[%s300 + $0x4] sm:$0xf]
      %v303 = vld [vmem:[%s300 + $0x8] sm:$0xf]
      %v304 = vld [vmem:[%s300 + $0xc] sm:$0xf]
      %v305 = vld [vmem:[%s300 + $0x10] sm:$0xf]
      %v306 = vld [vmem:[%s300 + $0x14] sm:$0xf]
      %v313 = vunpack.c.l.b16 %v301
      %v314 = vunpack.c.l.b16 %v302
      %v315 = vunpack.c.l.b16 %v303
      %v316 = vunpack.c.l.b16 %v304
      %v317 = vunpack.c.l.b16 %v305
      %v318 = vunpack.c.l.b16 %v306
      %v319 = vpack.c.b16 %v314, %v313
      %v320 = vpack.c.b16 %v316, %v315
      %v321 = vpack.c.b16 %v318, %v317
      %v326 = vsel %vm285, %v299, 0
      %328 = vmatprep.subr.bf16.mxu0 0
      %329 = vmatpush1.bf16.msra.mxu0 %v319
      %330 = vmatprep.subr.bf16.mxu0 0
      %331 = vmatpush1.bf16.msra.mxu0 %v320
      %332 = vmatprep.subr.bf16.mxu0 0
      %333 = vmatpush1.bf16.msra.mxu0 %v321
      %334 = vmatprep.subr.bf16.mxu0 0
      %335 = vmatpush1.bf16.msra.mxu0 0
      %336 = vmatprep.subr.bf16.mxu0 0
      %337 = vmatpush1.bf16.msra.mxu0 0
      %338 = vmatprep.subr.bf16.mxu0 0
      %339 = vmatpush1.bf16.msra.mxu0 0
      %340 = vmatprep.subr.bf16.mxu0 0
      %341 = vmatpush1.bf16.msra.mxu0 0
      %342 = vmatprep.subr.bf16.mxu0 0
      %343 = vmatpush1.bf16.msra.mxu0 0
      %344 = vmatprep.subr.bf16.mxu0 0
      %345 = vmatpush1.bf16.msra.mxu0 0
      %346 = vmatprep.subr.bf16.mxu0 0
      %347 = vmatpush1.bf16.msra.mxu0 0
      %348 = vmatprep.subr.bf16.mxu0 0
      %349 = vmatpush1.bf16.msra.mxu0 0
      %350 = vmatprep.subr.bf16.mxu0 0
      %351 = vmatpush1.bf16.msra.mxu0 0
      %352 = vmatprep.subr.bf16.mxu0 0
      %353 = vmatpush1.bf16.msra.mxu0 0
      %354 = vmatprep.subr.bf16.mxu0 0
      %355 = vmatpush1.bf16.msra.mxu0 0
      %356 = vmatprep.subr.bf16.mxu0 0
      %357 = vmatpush1.bf16.msra.mxu0 0
      %358 = vmatprep.subr.bf16.mxu0 0
      %359 = vmatpush1.bf16.msra.mxu0 0
      %360 = vmatprep.mubr.bf16.mxu0 0
      %361 = vmatmul.mubr.bf16.gmra.mrb[0].mxu0 %v326
      %v362 = vpop.f32.mrb[0].mxu0
      %v363 = vadd.f32 0.0, %v362
      %v364 = vpop.f32.mrb[0].mxu0
      %v365 = vpop.f32.mrb[0].mxu0
      %v366 = vadd.f32 0.0, %v365
      %v367 = vpop.f32.mrb[0].mxu0
      %368 = vdwg.mxu0
      %v375 = vunpack.c.l.b16 %v291
      %v376 = vunpack.c.l.b16 %v292
      %v377 = vunpack.c.l.b16 %v293
      %v378 = vunpack.c.l.b16 %v294
      %v379 = vunpack.c.l.b16 %v295
      %v380 = vunpack.c.l.b16 %v296
      %v381 = vpack.c.b16 %v376, %v375
      %v382 = vpack.c.b16 %v378, %v377
      %v383 = vpack.c.b16 %v380, %v379
      %v388 = vsel %vm285, %v290, 0
      %390 = vmatprep.subr.bf16.mxu0 0
      %391 = vmatpush1.bf16.msra.mxu0 %v381
      %392 = vmatprep.subr.bf16.mxu0 0
      %393 = vmatpush1.bf16.msra.mxu0 %v382
      %394 = vmatprep.subr.bf16.mxu0 0
      %395 = vmatpush1.bf16.msra.mxu0 %v383
      %396 = vmatprep.subr.bf16.mxu0 0
      %397 = vmatpush1.bf16.msra.mxu0 0
      %398 = vmatprep.subr.bf16.mxu0 0
      %399 = vmatpush1.bf16.msra.mxu0 0
      %400 = vmatprep.subr.bf16.mxu0 0
      %401 = vmatpush1.bf16.msra.mxu0 0
      %402 = vmatprep.subr.bf16.mxu0 0
      %403 = vmatpush1.bf16.msra.mxu0 0
      %404 = vmatprep.subr.bf16.mxu0 0
      %405 = vmatpush1.bf16.msra.mxu0 0
      %406 = vmatprep.subr.bf16.mxu0 0
      %407 = vmatpush1.bf16.msra.mxu0 0
      %408 = vmatprep.subr.bf16.mxu0 0
      %409 = vmatpush1.bf16.msra.mxu0 0
      %410 = vmatprep.subr.bf16.mxu0 0
      %411 = vmatpush1.bf16.msra.mxu0 0
      %412 = vmatprep.subr.bf16.mxu0 0
      %413 = vmatpush1.bf16.msra.mxu0 0
      %414 = vmatprep.subr.bf16.mxu0 0
      %415 = vmatpush1.bf16.msra.mxu0 0
      %416 = vmatprep.subr.bf16.mxu0 0
      %417 = vmatpush1.bf16.msra.mxu0 0
      %418 = vmatprep.subr.bf16.mxu0 0
      %419 = vmatpush1.bf16.msra.mxu0 0
      %420 = vmatprep.subr.bf16.mxu0 0
      %421 = vmatpush1.bf16.msra.mxu0 0
      %422 = vmatprep.mubr.bf16.mxu0 0
      %423 = vmatmul.mubr.bf16.gmra.mrb[0].mxu0 %v388
      %v424 = vpop.f32.mrb[0].mxu0
      %v425 = vadd.f32 %v363, %v424
      %v426 = vpop.f32.mrb[0].mxu0
      %v427 = vpop.f32.mrb[0].mxu0
      %v428 = vadd.f32 %v366, %v427
      %v429 = vpop.f32.mrb[0].mxu0
      %430 = vdwg.mxu0
      %v431 = vld [vmem:[#allocation2 + $0x2] sm:$0xff]
      %v432 = vld [vmem:[#allocation2 + $0xa] sm:$0xff]
      %v433 = vpack.c.bf16 %v432, %v431
      %s434 = scalar_lea.vmem %s1, 48
      %v435 = vld [vmem:[%s434] sm:$0xf]
      %v436 = vld [vmem:[%s434 + $0x4] sm:$0xf]
      %v437 = vld [vmem:[%s434 + $0x8] sm:$0xf]
      %v438 = vld [vmem:[%s434 + $0xc] sm:$0xf]
      %v439 = vld [vmem:[%s434 + $0x10] sm:$0xf]
      %v440 = vld [vmem:[%s434 + $0x14] sm:$0xf]
      %v447 = vunpack.c.l.b16 %v435
      %v448 = vunpack.c.l.b16 %v436
      %v449 = vunpack.c.l.b16 %v437
      %v450 = vunpack.c.l.b16 %v438
      %v451 = vunpack.c.l.b16 %v439
      %v452 = vunpack.c.l.b16 %v440
      %v453 = vpack.c.b16 %v448, %v447
      %v454 = vpack.c.b16 %v450, %v449
      %v455 = vpack.c.b16 %v452, %v451
      %v460 = vsel %vm285, %v433, 0
      %462 = vmatprep.subr.bf16.mxu0 0
      %463 = vmatpush1.bf16.msra.mxu0 %v453
      %464 = vmatprep.subr.bf16.mxu0 0
      %465 = vmatpush1.bf16.msra.mxu0 %v454
      %466 = vmatprep.subr.bf16.mxu0 0
      %467 = vmatpush1.bf16.msra.mxu0 %v455
      %468 = vmatprep.subr.bf16.mxu0 0
      %469 = vmatpush1.bf16.msra.mxu0 0
      %470 = vmatprep.subr.bf16.mxu0 0
      %471 = vmatpush1.bf16.msra.mxu0 0
      %472 = vmatprep.subr.bf16.mxu0 0
      %473 = vmatpush1.bf16.msra.mxu0 0
      %474 = vmatprep.subr.bf16.mxu0 0
      %475 = vmatpush1.bf16.msra.mxu0 0
      %476 = vmatprep.subr.bf16.mxu0 0
      %477 = vmatpush1.bf16.msra.mxu0 0
      %478 = vmatprep.subr.bf16.mxu0 0
      %479 = vmatpush1.bf16.msra.mxu0 0
      %480 = vmatprep.subr.bf16.mxu0 0
      %481 = vmatpush1.bf16.msra.mxu0 0
      %482 = vmatprep.subr.bf16.mxu0 0
      %483 = vmatpush1.bf16.msra.mxu0 0
      %484 = vmatprep.subr.bf16.mxu0 0
      %485 = vmatpush1.bf16.msra.mxu0 0
      %486 = vmatprep.subr.bf16.mxu0 0
      %487 = vmatpush1.bf16.msra.mxu0 0
      %488 = vmatprep.subr.bf16.mxu0 0
      %489 = vmatpush1.bf16.msra.mxu0 0
      %490 = vmatprep.subr.bf16.mxu0 0
      %491 = vmatpush1.bf16.msra.mxu0 0
      %492 = vmatprep.subr.bf16.mxu0 0
      %493 = vmatpush1.bf16.msra.mxu0 0
      %494 = vmatprep.mubr.bf16.mxu0 0
      %495 = vmatmul.mubr.bf16.gmra.mrb[0].mxu0 %v460
      %v496 = vpop.f32.mrb[0].mxu0
      %v497 = vadd.f32 0.0, %v496
      %v498 = vpop.f32.mrb[0].mxu0
      %v499 = vpop.f32.mrb[0].mxu0
      %v500 = vadd.f32 0.0, %v499
      %v501 = vpop.f32.mrb[0].mxu0
      %502 = vdwg.mxu0
      %v503 = vadd.f32 %v425, %v497
      %v504 = vadd.f32 %v428, %v500
      %v505 = vld [vmem:[%s2] sm:$0x1]
      %v507 = vlaneseq
      %v508 = vshrl.u32 %v507, 7
      %v509 = vsub.s32 0, %v508
      %v510 = vrot.slane %v505, %v509
      %v512 = vadd.f32 %v503, %v510
      %v513 = vadd.f32 %v504, %v510
      %v514 = vmax.f32 %v512, 0.0
      %v515 = vmax.f32 %v513, 0.0
      %516 = vst [vmem:[#allocation2] sm:$0xff] 0.0
      %517 = vst [vmem:[#allocation2 + $0x8] sm:$0xff] 0.0
      %518 = vst [vmem:[#allocation2 + $0x10] sm:$0x3] 0.0
      %519 = vst [vmem:[#allocation2 + $0x1] sm:$0xff] %v514
      %520 = vst [vmem:[#allocation2 + $0x9] sm:$0xff] %v515
      %v521 = vld [vmem:[#allocation2] sm:$0xff]
      %v522 = vld [vmem:[#allocation2 + $0x8] sm:$0xff]
      %v523 = vpack.c.bf16 %v522, %v521
      %v524 = vld [vmem:[%s3] sm:$0xf]
      %v525 = vld [vmem:[%s3 + $0x4] sm:$0xf]
      %v526 = vld [vmem:[%s3 + $0x8] sm:$0xf]
      %v527 = vld [vmem:[%s3 + $0xc] sm:$0xf]
      %v528 = vld [vmem:[%s3 + $0x10] sm:$0xf]
      %v529 = vld [vmem:[%s3 + $0x14] sm:$0xf]
      %v530 = vld [vmem:[%s3 + $0x18] sm:$0xf]
      %v531 = vld [vmem:[%s3 + $0x1c] sm:$0xf]
      %v532 = vld [vmem:[%s3 + $0x20] sm:$0xf]
      %v533 = vld [vmem:[%s3 + $0x24] sm:$0xf]
      %v534 = vld [vmem:[%s3 + $0x28] sm:$0xf]
      %v535 = vld [vmem:[%s3 + $0x2c] sm:$0xf]
      %v536 = vld [vmem:[%s3 + $0x30] sm:$0xf]
      %v537 = vld [vmem:[%s3 + $0x34] sm:$0xf]
      %v538 = vld [vmem:[%s3 + $0x38] sm:$0xf]
      %v539 = vld [vmem:[%s3 + $0x3c] sm:$0xf]
      %v540 = vld [vmem:[#allocation2 + $0x1] sm:$0xff]
      %v541 = vld [vmem:[#allocation2 + $0x9] sm:$0xff]
      %v542 = vpack.c.bf16 %v541, %v540
      %s543 = scalar_lea.vmem %s3, 64
      %v544 = vld [vmem:[%s543] sm:$0xf]
      %v545 = vld [vmem:[%s543 + $0x4] sm:$0xf]
      %v546 = vld [vmem:[%s543 + $0x8] sm:$0xf]
      %v547 = vld [vmem:[%s543 + $0xc] sm:$0xf]
      %v548 = vld [vmem:[%s543 + $0x10] sm:$0xf]
      %v549 = vld [vmem:[%s543 + $0x14] sm:$0xf]
      %v550 = vld [vmem:[%s543 + $0x18] sm:$0xf]
      %v551 = vld [vmem:[%s543 + $0x1c] sm:$0xf]
      %v552 = vld [vmem:[%s543 + $0x20] sm:$0xf]
      %v553 = vld [vmem:[%s543 + $0x24] sm:$0xf]
      %v554 = vld [vmem:[%s543 + $0x28] sm:$0xf]
      %v555 = vld [vmem:[%s543 + $0x2c] sm:$0xf]
      %v556 = vld [vmem:[%s543 + $0x30] sm:$0xf]
      %v557 = vld [vmem:[%s543 + $0x34] sm:$0xf]
      %v558 = vld [vmem:[%s543 + $0x38] sm:$0xf]
      %v559 = vld [vmem:[%s543 + $0x3c] sm:$0xf]
      %v576 = vunpack.c.l.b16 %v544
      %v577 = vunpack.c.l.b16 %v545
      %v578 = vunpack.c.l.b16 %v546
      %v579 = vunpack.c.l.b16 %v547
      %v580 = vunpack.c.l.b16 %v548
      %v581 = vunpack.c.l.b16 %v549
      %v582 = vunpack.c.l.b16 %v550
      %v583 = vunpack.c.l.b16 %v551
      %v584 = vunpack.c.l.b16 %v552
      %v585 = vunpack.c.l.b16 %v553
      %v586 = vunpack.c.l.b16 %v554
      %v587 = vunpack.c.l.b16 %v555
      %v588 = vunpack.c.l.b16 %v556
      %v589 = vunpack.c.l.b16 %v557
      %v590 = vunpack.c.l.b16 %v558
      %v591 = vunpack.c.l.b16 %v559
      %v592 = vpack.c.b16 %v577, %v576
      %v593 = vpack.c.b16 %v579, %v578
      %v594 = vpack.c.b16 %v581, %v580
      %v595 = vpack.c.b16 %v583, %v582
      %v596 = vpack.c.b16 %v585, %v584
      %v597 = vpack.c.b16 %v587, %v586
      %v598 = vpack.c.b16 %v589, %v588
      %v599 = vpack.c.b16 %v591, %v590
      %608 = vmatprep.subr.bf16.mxu0 0
      %609 = vmatpush1.bf16.msra.mxu0 %v592
      %610 = vmatprep.subr.bf16.mxu0 0
      %611 = vmatpush1.bf16.msra.mxu0 %v593
      %612 = vmatprep.subr.bf16.mxu0 0
      %613 = vmatpush1.bf16.msra.mxu0 %v594
      %614 = vmatprep.subr.bf16.mxu0 0
      %615 = vmatpush1.bf16.msra.mxu0 %v595
      %616 = vmatprep.subr.bf16.mxu0 0
      %617 = vmatpush1.bf16.msra.mxu0 %v596
      %618 = vmatprep.subr.bf16.mxu0 0
      %619 = vmatpush1.bf16.msra.mxu0 %v597
      %620 = vmatprep.subr.bf16.mxu0 0
      %621 = vmatpush1.bf16.msra.mxu0 %v598
      %622 = vmatprep.subr.bf16.mxu0 0
      %623 = vmatpush1.bf16.msra.mxu0 %v599
      %624 = vmatprep.subr.bf16.mxu0 0
      %625 = vmatpush1.bf16.msra.mxu0 0
      %626 = vmatprep.subr.bf16.mxu0 0
      %627 = vmatpush1.bf16.msra.mxu0 0
      %628 = vmatprep.subr.bf16.mxu0 0
      %629 = vmatpush1.bf16.msra.mxu0 0
      %630 = vmatprep.subr.bf16.mxu0 0
      %631 = vmatpush1.bf16.msra.mxu0 0
      %632 = vmatprep.subr.bf16.mxu0 0
      %633 = vmatpush1.bf16.msra.mxu0 0
      %634 = vmatprep.subr.bf16.mxu0 0
      %635 = vmatpush1.bf16.msra.mxu0 0
      %636 = vmatprep.subr.bf16.mxu0 0
      %637 = vmatpush1.bf16.msra.mxu0 0
      %638 = vmatprep.subr.bf16.mxu0 0
      %639 = vmatpush1.bf16.msra.mxu0 0
      %640 = vmatprep.mubr.bf16.mxu0 0
      %641 = vmatmul.mubr.bf16.gmra.mrb[0].mxu0 %v542
      %v642 = vpop.f32.mrb[0].mxu0
      %v643 = vadd.f32 0.0, %v642
      %v644 = vpop.f32.mrb[0].mxu0
      %v645 = vpop.f32.mrb[0].mxu0
      %v646 = vadd.f32 0.0, %v645
      %v647 = vpop.f32.mrb[0].mxu0
      %648 = vdwg.mxu0
      %v665 = vunpack.c.l.b16 %v524
      %v666 = vunpack.c.l.b16 %v525
      %v667 = vunpack.c.l.b16 %v526
      %v668 = vunpack.c.l.b16 %v527
      %v669 = vunpack.c.l.b16 %v528
      %v670 = vunpack.c.l.b16 %v529
      %v671 = vunpack.c.l.b16 %v530
      %v672 = vunpack.c.l.b16 %v531
      %v673 = vunpack.c.l.b16 %v532
      %v674 = vunpack.c.l.b16 %v533
      %v675 = vunpack.c.l.b16 %v534
      %v676 = vunpack.c.l.b16 %v535
      %v677 = vunpack.c.l.b16 %v536
      %v678 = vunpack.c.l.b16 %v537
      %v679 = vunpack.c.l.b16 %v538
      %v680 = vunpack.c.l.b16 %v539
      %v681 = vpack.c.b16 %v666, %v665
      %v682 = vpack.c.b16 %v668, %v667
      %v683 = vpack.c.b16 %v670, %v669
      %v684 = vpack.c.b16 %v672, %v671
      %v685 = vpack.c.b16 %v674, %v673
      %v686 = vpack.c.b16 %v676, %v675
      %v687 = vpack.c.b16 %v678, %v677
      %v688 = vpack.c.b16 %v680, %v679
      %697 = vmatprep.subr.bf16.mxu0 0
      %698 = vmatpush1.bf16.msra.mxu0 %v681
      %699 = vmatprep.subr.bf16.mxu0 0
      %700 = vmatpush1.bf16.msra.mxu0 %v682
      %701 = vmatprep.subr.bf16.mxu0 0
      %702 = vmatpush1.bf16.msra.mxu0 %v683
      %703 = vmatprep.subr.bf16.mxu0 0
      %704 = vmatpush1.bf16.msra.mxu0 %v684
      %705 = vmatprep.subr.bf16.mxu0 0
      %706 = vmatpush1.bf16.msra.mxu0 %v685
      %707 = vmatprep.subr.bf16.mxu0 0
      %708 = vmatpush1.bf16.msra.mxu0 %v686
      %709 = vmatprep.subr.bf16.mxu0 0
      %710 = vmatpush1.bf16.msra.mxu0 %v687
      %711 = vmatprep.subr.bf16.mxu0 0
      %712 = vmatpush1.bf16.msra.mxu0 %v688
      %713 = vmatprep.subr.bf16.mxu0 0
      %714 = vmatpush1.bf16.msra.mxu0 0
      %715 = vmatprep.subr.bf16.mxu0 0
      %716 = vmatpush1.bf16.msra.mxu0 0
      %717 = vmatprep.subr.bf16.mxu0 0
      %718 = vmatpush1.bf16.msra.mxu0 0
      %719 = vmatprep.subr.bf16.mxu0 0
      %720 = vmatpush1.bf16.msra.mxu0 0
      %721 = vmatprep.subr.bf16.mxu0 0
      %722 = vmatpush1.bf16.msra.mxu0 0
      %723 = vmatprep.subr.bf16.mxu0 0
      %724 = vmatpush1.bf16.msra.mxu0 0
      %725 = vmatprep.subr.bf16.mxu0 0
      %726 = vmatpush1.bf16.msra.mxu0 0
      %727 = vmatprep.subr.bf16.mxu0 0
      %728 = vmatpush1.bf16.msra.mxu0 0
      %729 = vmatprep.mubr.bf16.mxu0 0
      %730 = vmatmul.mubr.bf16.gmra.mrb[0].mxu0 %v523
      %v731 = vpop.f32.mrb[0].mxu0
      %v732 = vadd.f32 %v643, %v731
      %v733 = vpop.f32.mrb[0].mxu0
      %v734 = vpop.f32.mrb[0].mxu0
      %v735 = vadd.f32 %v646, %v734
      %v736 = vpop.f32.mrb[0].mxu0
      %737 = vdwg.mxu0
      %v738 = vld [vmem:[#allocation2 + $0x2] sm:$0xff]
      %v739 = vld [vmem:[#allocation2 + $0xa] sm:$0xff]
      %v740 = vpack.c.bf16 %v739, %v738
      %s741 = scalar_lea.vmem %s3, 128
      %v742 = vld [vmem:[%s741] sm:$0xf]
      %v743 = vld [vmem:[%s741 + $0x4] sm:$0xf]
      %v744 = vld [vmem:[%s741 + $0x8] sm:$0xf]
      %v745 = vld [vmem:[%s741 + $0xc] sm:$0xf]
      %v746 = vld [vmem:[%s741 + $0x10] sm:$0xf]
      %v747 = vld [vmem:[%s741 + $0x14] sm:$0xf]
      %v748 = vld [vmem:[%s741 + $0x18] sm:$0xf]
      %v749 = vld [vmem:[%s741 + $0x1c] sm:$0xf]
      %v750 = vld [vmem:[%s741 + $0x20] sm:$0xf]
      %v751 = vld [vmem:[%s741 + $0x24] sm:$0xf]
      %v752 = vld [vmem:[%s741 + $0x28] sm:$0xf]
      %v753 = vld [vmem:[%s741 + $0x2c] sm:$0xf]
      %v754 = vld [vmem:[%s741 + $0x30] sm:$0xf]
      %v755 = vld [vmem:[%s741 + $0x34] sm:$0xf]
      %v756 = vld [vmem:[%s741 + $0x38] sm:$0xf]
      %v757 = vld [vmem:[%s741 + $0x3c] sm:$0xf]
      %v774 = vunpack.c.l.b16 %v742
      %v775 = vunpack.c.l.b16 %v743
      %v776 = vunpack.c.l.b16 %v744
      %v777 = vunpack.c.l.b16 %v745
      %v778 = vunpack.c.l.b16 %v746
      %v779 = vunpack.c.l.b16 %v747
      %v780 = vunpack.c.l.b16 %v748
      %v781 = vunpack.c.l.b16 %v749
      %v782 = vunpack.c.l.b16 %v750
      %v783 = vunpack.c.l.b16 %v751
      %v784 = vunpack.c.l.b16 %v752
      %v785 = vunpack.c.l.b16 %v753
      %v786 = vunpack.c.l.b16 %v754
      %v787 = vunpack.c.l.b16 %v755
      %v788 = vunpack.c.l.b16 %v756
      %v789 = vunpack.c.l.b16 %v757
      %v790 = vpack.c.b16 %v775, %v774
      %v791 = vpack.c.b16 %v777, %v776
      %v792 = vpack.c.b16 %v779, %v778
      %v793 = vpack.c.b16 %v781, %v780
      %v794 = vpack.c.b16 %v783, %v782
      %v795 = vpack.c.b16 %v785, %v784
      %v796 = vpack.c.b16 %v787, %v786
      %v797 = vpack.c.b16 %v789, %v788
      %806 = vmatprep.subr.bf16.mxu0 0
      %807 = vmatpush1.bf16.msra.mxu0 %v790
      %808 = vmatprep.subr.bf16.mxu0 0
      %809 = vmatpush1.bf16.msra.mxu0 %v791
      %810 = vmatprep.subr.bf16.mxu0 0
      %811 = vmatpush1.bf16.msra.mxu0 %v792
      %812 = vmatprep.subr.bf16.mxu0 0
      %813 = vmatpush1.bf16.msra.mxu0 %v793
      %814 = vmatprep.subr.bf16.mxu0 0
      %815 = vmatpush1.bf16.msra.mxu0 %v794
      %816 = vmatprep.subr.bf16.mxu0 0
      %817 = vmatpush1.bf16.msra.mxu0 %v795
      %818 = vmatprep.subr.bf16.mxu0 0
      %819 = vmatpush1.bf16.msra.mxu0 %v796
      %820 = vmatprep.subr.bf16.mxu0 0
      %821 = vmatpush1.bf16.msra.mxu0 %v797
      %822 = vmatprep.subr.bf16.mxu0 0
      %823 = vmatpush1.bf16.msra.mxu0 0
      %824 = vmatprep.subr.bf16.mxu0 0
      %825 = vmatpush1.bf16.msra.mxu0 0
      %826 = vmatprep.subr.bf16.mxu0 0
      %827 = vmatpush1.bf16.msra.mxu0 0
      %828 = vmatprep.subr.bf16.mxu0 0
      %829 = vmatpush1.bf16.msra.mxu0 0
      %830 = vmatprep.subr.bf16.mxu0 0
      %831 = vmatpush1.bf16.msra.mxu0 0
      %832 = vmatprep.subr.bf16.mxu0 0
      %833 = vmatpush1.bf16.msra.mxu0 0
      %834 = vmatprep.subr.bf16.mxu0 0
      %835 = vmatpush1.bf16.msra.mxu0 0
      %836 = vmatprep.subr.bf16.mxu0 0
      %837 = vmatpush1.bf16.msra.mxu0 0
      %838 = vmatprep.mubr.bf16.mxu0 0
      %839 = vmatmul.mubr.bf16.gmra.mrb[0].mxu0 %v740
      %v840 = vpop.f32.mrb[0].mxu0
      %v841 = vadd.f32 0.0, %v840
      %v842 = vpop.f32.mrb[0].mxu0
      %v843 = vpop.f32.mrb[0].mxu0
      %v844 = vadd.f32 0.0, %v843
      %v845 = vpop.f32.mrb[0].mxu0
      %846 = vdwg.mxu0
      %v847 = vadd.f32 %v732, %v841
      %v848 = vadd.f32 %v735, %v844
      %v849 = vld [vmem:[%s4] sm:$0x1]
      %v851 = vlaneseq
      %v852 = vshrl.u32 %v851, 7
      %v853 = vsub.s32 0, %v852
      %v854 = vrot.slane %v849, %v853
      %v856 = vadd.f32 %v847, %v854
      %v857 = vadd.f32 %v848, %v854
      %v858 = vmax.f32 %v856, 0.0
      %v859 = vmax.f32 %v857, 0.0
      %860 = vst [vmem:[#allocation2] sm:$0xff] 0.0
      %861 = vst [vmem:[#allocation2 + $0x8] sm:$0xff] 0.0
      %862 = vst [vmem:[#allocation2 + $0x10] sm:$0x3] 0.0
      %863 = vst [vmem:[#allocation2 + $0x1] sm:$0xff] %v858
      %864 = vst [vmem:[#allocation2 + $0x9] sm:$0xff] %v859
      %v865 = vld [vmem:[#allocation2] sm:$0xff]
      %v866 = vld [vmem:[#allocation2 + $0x8] sm:$0xff]
      %v867 = vpack.c.bf16 %v866, %v865
      %v868 = vld [vmem:[%s5] sm:$0xf]
      %v869 = vld [vmem:[%s5 + $0x4] sm:$0xf]
      %v870 = vld [vmem:[%s5 + $0x8] sm:$0xf]
      %v871 = vld [vmem:[%s5 + $0xc] sm:$0xf]
      %v872 = vld [vmem:[%s5 + $0x10] sm:$0xf]
      %v873 = vld [vmem:[%s5 + $0x14] sm:$0xf]
      %v874 = vld [vmem:[%s5 + $0x18] sm:$0xf]
      %v875 = vld [vmem:[%s5 + $0x1c] sm:$0xf]
      %v876 = vld [vmem:[%s5 + $0x20] sm:$0xf]
      %v877 = vld [vmem:[%s5 + $0x24] sm:$0xf]
      %v878 = vld [vmem:[%s5 + $0x28] sm:$0xf]
      %v879 = vld [vmem:[%s5 + $0x2c] sm:$0xf]
      %v880 = vld [vmem:[%s5 + $0x30] sm:$0xf]
      %v881 = vld [vmem:[%s5 + $0x34] sm:$0xf]
      %v882 = vld [vmem:[%s5 + $0x38] sm:$0xf]
      %v883 = vld [vmem:[%s5 + $0x3c] sm:$0xf]
      %v884 = vld [vmem:[#allocation2 + $0x1] sm:$0xff]
      %v885 = vld [vmem:[#allocation2 + $0x9] sm:$0xff]
      %v886 = vpack.c.bf16 %v885, %v884
      %s887 = scalar_lea.vmem %s5, 64
      %v888 = vld [vmem:[%s887] sm:$0xf]
      %v889 = vld [vmem:[%s887 + $0x4] sm:$0xf]
      %v890 = vld [vmem:[%s887 + $0x8] sm:$0xf]
      %v891 = vld [vmem:[%s887 + $0xc] sm:$0xf]
      %v892 = vld [vmem:[%s887 + $0x10] sm:$0xf]
      %v893 = vld [vmem:[%s887 + $0x14] sm:$0xf]
      %v894 = vld [vmem:[%s887 + $0x18] sm:$0xf]
      %v895 = vld [vmem:[%s887 + $0x1c] sm:$0xf]
      %v896 = vld [vmem:[%s887 + $0x20] sm:$0xf]
      %v897 = vld [vmem:[%s887 + $0x24] sm:$0xf]
      %v898 = vld [vmem:[%s887 + $0x28] sm:$0xf]
      %v899 = vld [vmem:[%s887 + $0x2c] sm:$0xf]
      %v900 = vld [vmem:[%s887 + $0x30] sm:$0xf]
      %v901 = vld [vmem:[%s887 + $0x34] sm:$0xf]
      %v902 = vld [vmem:[%s887 + $0x38] sm:$0xf]
      %v903 = vld [vmem:[%s887 + $0x3c] sm:$0xf]
      %v920 = vunpack.c.l.b16 %v888
      %v921 = vunpack.c.l.b16 %v889
      %v922 = vunpack.c.l.b16 %v890
      %v923 = vunpack.c.l.b16 %v891
      %v924 = vunpack.c.l.b16 %v892
      %v925 = vunpack.c.l.b16 %v893
      %v926 = vunpack.c.l.b16 %v894
      %v927 = vunpack.c.l.b16 %v895
      %v928 = vunpack.c.l.b16 %v896
      %v929 = vunpack.c.l.b16 %v897
      %v930 = vunpack.c.l.b16 %v898
      %v931 = vunpack.c.l.b16 %v899
      %v932 = vunpack.c.l.b16 %v900
      %v933 = vunpack.c.l.b16 %v901
      %v934 = vunpack.c.l.b16 %v902
      %v935 = vunpack.c.l.b16 %v903
      %v936 = vpack.c.b16 %v921, %v920
      %v937 = vpack.c.b16 %v923, %v922
      %v938 = vpack.c.b16 %v925, %v924
      %v939 = vpack.c.b16 %v927, %v926
      %v940 = vpack.c.b16 %v929, %v928
      %v941 = vpack.c.b16 %v931, %v930
      %v942 = vpack.c.b16 %v933, %v932
      %v943 = vpack.c.b16 %v935, %v934
      %952 = vmatprep.subr.bf16.mxu0 0
      %953 = vmatpush1.bf16.msra.mxu0 %v936
      %954 = vmatprep.subr.bf16.mxu0 0
      %955 = vmatpush1.bf16.msra.mxu0 %v937
      %956 = vmatprep.subr.bf16.mxu0 0
      %957 = vmatpush1.bf16.msra.mxu0 %v938
      %958 = vmatprep.subr.bf16.mxu0 0
      %959 = vmatpush1.bf16.msra.mxu0 %v939
      %960 = vmatprep.subr.bf16.mxu0 0
      %961 = vmatpush1.bf16.msra.mxu0 %v940
      %962 = vmatprep.subr.bf16.mxu0 0
      %963 = vmatpush1.bf16.msra.mxu0 %v941
      %964 = vmatprep.subr.bf16.mxu0 0
      %965 = vmatpush1.bf16.msra.mxu0 %v942
      %966 = vmatprep.subr.bf16.mxu0 0
      %967 = vmatpush1.bf16.msra.mxu0 %v943
      %968 = vmatprep.subr.bf16.mxu0 0
      %969 = vmatpush1.bf16.msra.mxu0 0
      %970 = vmatprep.subr.bf16.mxu0 0
      %971 = vmatpush1.bf16.msra.mxu0 0
      %972 = vmatprep.subr.bf16.mxu0 0
      %973 = vmatpush1.bf16.msra.mxu0 0
      %974 = vmatprep.subr.bf16.mxu0 0
      %975 = vmatpush1.bf16.msra.mxu0 0
      %976 = vmatprep.subr.bf16.mxu0 0
      %977 = vmatpush1.bf16.msra.mxu0 0
      %978 = vmatprep.subr.bf16.mxu0 0
      %979 = vmatpush1.bf16.msra.mxu0 0
      %980 = vmatprep.subr.bf16.mxu0 0
      %981 = vmatpush1.bf16.msra.mxu0 0
      %982 = vmatprep.subr.bf16.mxu0 0
      %983 = vmatpush1.bf16.msra.mxu0 0
      %984 = vmatprep.mubr.bf16.mxu0 0
      %985 = vmatmul.mubr.bf16.gmra.mrb[0].mxu0 %v886
      %v986 = vpop.f32.mrb[0].mxu0
      %v987 = vadd.f32 0.0, %v986
      %v988 = vpop.f32.mrb[0].mxu0
      %v989 = vpop.f32.mrb[0].mxu0
      %v990 = vadd.f32 0.0, %v989
      %v991 = vpop.f32.mrb[0].mxu0
      %992 = vdwg.mxu0
      %v1009 = vunpack.c.l.b16 %v868
      %v1010 = vunpack.c.l.b16 %v869
      %v1011 = vunpack.c.l.b16 %v870
      %v1012 = vunpack.c.l.b16 %v871
      %v1013 = vunpack.c.l.b16 %v872
      %v1014 = vunpack.c.l.b16 %v873
      %v1015 = vunpack.c.l.b16 %v874
      %v1016 = vunpack.c.l.b16 %v875
      %v1017 = vunpack.c.l.b16 %v876
      %v1018 = vunpack.c.l.b16 %v877
      %v1019 = vunpack.c.l.b16 %v878
      %v1020 = vunpack.c.l.b16 %v879
      %v1021 = vunpack.c.l.b16 %v880
      %v1022 = vunpack.c.l.b16 %v881
      %v1023 = vunpack.c.l.b16 %v882
      %v1024 = vunpack.c.l.b16 %v883
      %v1025 = vpack.c.b16 %v1010, %v1009
      %v1026 = vpack.c.b16 %v1012, %v1011
      %v1027 = vpack.c.b16 %v1014, %v1013
      %v1028 = vpack.c.b16 %v1016, %v1015
      %v1029 = vpack.c.b16 %v1018, %v1017
      %v1030 = vpack.c.b16 %v1020, %v1019
      %v1031 = vpack.c.b16 %v1022, %v1021
      %v1032 = vpack.c.b16 %v1024, %v1023
      %1041 = vmatprep.subr.bf16.mxu0 0
      %1042 = vmatpush1.bf16.msra.mxu0 %v1025
      %1043 = vmatprep.subr.bf16.mxu0 0
      %1044 = vmatpush1.bf16.msra.mxu0 %v1026
      %1045 = vmatprep.subr.bf16.mxu0 0
      %1046 = vmatpush1.bf16.msra.mxu0 %v1027
      %1047 = vmatprep.subr.bf16.mxu0 0
      %1048 = vmatpush1.bf16.msra.mxu0 %v1028
      %1049 = vmatprep.subr.bf16.mxu0 0
      %1050 = vmatpush1.bf16.msra.mxu0 %v1029
      %1051 = vmatprep.subr.bf16.mxu0 0
      %1052 = vmatpush1.bf16.msra.mxu0 %v1030
      %1053 = vmatprep.subr.bf16.mxu0 0
      %1054 = vmatpush1.bf16.msra.mxu0 %v1031
      %1055 = vmatprep.subr.bf16.mxu0 0
      %1056 = vmatpush1.bf16.msra.mxu0 %v1032
      %1057 = vmatprep.subr.bf16.mxu0 0
      %1058 = vmatpush1.bf16.msra.mxu0 0
      %1059 = vmatprep.subr.bf16.mxu0 0
      %1060 = vmatpush1.bf16.msra.mxu0 0
      %1061 = vmatprep.subr.bf16.mxu0 0
      %1062 = vmatpush1.bf16.msra.mxu0 0
      %1063 = vmatprep.subr.bf16.mxu0 0
      %1064 = vmatpush1.bf16.msra.mxu0 0
      %1065 = vmatprep.subr.bf16.mxu0 0
      %1066 = vmatpush1.bf16.msra.mxu0 0
      %1067 = vmatprep.subr.bf16.mxu0 0
      %1068 = vmatpush1.bf16.msra.mxu0 0
      %1069 = vmatprep.subr.bf16.mxu0 0
      %1070 = vmatpush1.bf16.msra.mxu0 0
      %1071 = vmatprep.subr.bf16.mxu0 0
      %1072 = vmatpush1.bf16.msra.mxu0 0
      %1073 = vmatprep.mubr.bf16.mxu0 0
      %1074 = vmatmul.mubr.bf16.gmra.mrb[0].mxu0 %v867
      %v1075 = vpop.f32.mrb[0].mxu0
      %v1076 = vadd.f32 %v987, %v1075
      %v1077 = vpop.f32.mrb[0].mxu0
      %v1078 = vpop.f32.mrb[0].mxu0
      %v1079 = vadd.f32 %v990, %v1078
      %v1080 = vpop.f32.mrb[0].mxu0
      %1081 = vdwg.mxu0
      %v1082 = vld [vmem:[#allocation2 + $0x2] sm:$0xff]
      %v1083 = vld [vmem:[#allocation2 + $0xa] sm:$0xff]
      %v1084 = vpack.c.bf16 %v1083, %v1082
      %s1085 = scalar_lea.vmem %s5, 128
      %v1086 = vld [vmem:[%s1085] sm:$0xf]
      %v1087 = vld [vmem:[%s1085 + $0x4] sm:$0xf]
      %v1088 = vld [vmem:[%s1085 + $0x8] sm:$0xf]
      %v1089 = vld [vmem:[%s1085 + $0xc] sm:$0xf]
      %v1090 = vld [vmem:[%s1085 + $0x10] sm:$0xf]
      %v1091 = vld [vmem:[%s1085 + $0x14] sm:$0xf]
      %v1092 = vld [vmem:[%s1085 + $0x18] sm:$0xf]
      %v1093 = vld [vmem:[%s1085 + $0x1c] sm:$0xf]
      %v1094 = vld [vmem:[%s1085 + $0x20] sm:$0xf]
      %v1095 = vld [vmem:[%s1085 + $0x24] sm:$0xf]
      %v1096 = vld [vmem:[%s1085 + $0x28] sm:$0xf]
      %v1097 = vld [vmem:[%s1085 + $0x2c] sm:$0xf]
      %v1098 = vld [vmem:[%s1085 + $0x30] sm:$0xf]
      %v1099 = vld [vmem:[%s1085 + $0x34] sm:$0xf]
      %v1100 = vld [vmem:[%s1085 + $0x38] sm:$0xf]
      %v1101 = vld [vmem:[%s1085 + $0x3c] sm:$0xf]
      %v1118 = vunpack.c.l.b16 %v1086
      %v1119 = vunpack.c.l.b16 %v1087
      %v1120 = vunpack.c.l.b16 %v1088
      %v1121 = vunpack.c.l.b16 %v1089
      %v1122 = vunpack.c.l.b16 %v1090
      %v1123 = vunpack.c.l.b16 %v1091
      %v1124 = vunpack.c.l.b16 %v1092
      %v1125 = vunpack.c.l.b16 %v1093
      %v1126 = vunpack.c.l.b16 %v1094
      %v1127 = vunpack.c.l.b16 %v1095
      %v1128 = vunpack.c.l.b16 %v1096
      %v1129 = vunpack.c.l.b16 %v1097
      %v1130 = vunpack.c.l.b16 %v1098
      %v1131 = vunpack.c.l.b16 %v1099
      %v1132 = vunpack.c.l.b16 %v1100
      %v1133 = vunpack.c.l.b16 %v1101
      %v1134 = vpack.c.b16 %v1119, %v1118
      %v1135 = vpack.c.b16 %v1121, %v1120
      %v1136 = vpack.c.b16 %v1123, %v1122
      %v1137 = vpack.c.b16 %v1125, %v1124
      %v1138 = vpack.c.b16 %v1127, %v1126
      %v1139 = vpack.c.b16 %v1129, %v1128
      %v1140 = vpack.c.b16 %v1131, %v1130
      %v1141 = vpack.c.b16 %v1133, %v1132
      %1150 = vmatprep.subr.bf16.mxu0 0
      %1151 = vmatpush1.bf16.msra.mxu0 %v1134
      %1152 = vmatprep.subr.bf16.mxu0 0
      %1153 = vmatpush1.bf16.msra.mxu0 %v1135
      %1154 = vmatprep.subr.bf16.mxu0 0
      %1155 = vmatpush1.bf16.msra.mxu0 %v1136
      %1156 = vmatprep.subr.bf16.mxu0 0
      %1157 = vmatpush1.bf16.msra.mxu0 %v1137
      %1158 = vmatprep.subr.bf16.mxu0 0
      %1159 = vmatpush1.bf16.msra.mxu0 %v1138
      %1160 = vmatprep.subr.bf16.mxu0 0
      %1161 = vmatpush1.bf16.msra.mxu0 %v1139
      %1162 = vmatprep.subr.bf16.mxu0 0
      %1163 = vmatpush1.bf16.msra.mxu0 %v1140
      %1164 = vmatprep.subr.bf16.mxu0 0
      %1165 = vmatpush1.bf16.msra.mxu0 %v1141
      %1166 = vmatprep.subr.bf16.mxu0 0
      %1167 = vmatpush1.bf16.msra.mxu0 0
      %1168 = vmatprep.subr.bf16.mxu0 0
      %1169 = vmatpush1.bf16.msra.mxu0 0
      %1170 = vmatprep.subr.bf16.mxu0 0
      %1171 = vmatpush1.bf16.msra.mxu0 0
      %1172 = vmatprep.subr.bf16.mxu0 0
      %1173 = vmatpush1.bf16.msra.mxu0 0
      %1174 = vmatprep.subr.bf16.mxu0 0
      %1175 = vmatpush1.bf16.msra.mxu0 0
      %1176 = vmatprep.subr.bf16.mxu0 0
      %1177 = vmatpush1.bf16.msra.mxu0 0
      %1178 = vmatprep.subr.bf16.mxu0 0
      %1179 = vmatpush1.bf16.msra.mxu0 0
      %1180 = vmatprep.subr.bf16.mxu0 0
      %1181 = vmatpush1.bf16.msra.mxu0 0
      %1182 = vmatprep.mubr.bf16.mxu0 0
      %1183 = vmatmul.mubr.bf16.gmra.mrb[0].mxu0 %v1084
      %v1184 = vpop.f32.mrb[0].mxu0
      %v1185 = vadd.f32 0.0, %v1184
      %v1186 = vpop.f32.mrb[0].mxu0
      %v1187 = vpop.f32.mrb[0].mxu0
      %v1188 = vadd.f32 0.0, %v1187
      %v1189 = vpop.f32.mrb[0].mxu0
      %1190 = vdwg.mxu0
      %v1191 = vadd.f32 %v1076, %v1185
      %v1192 = vadd.f32 %v1079, %v1188
      %v1193 = vld [vmem:[%s6] sm:$0x1]
      %v1195 = vlaneseq
      %v1196 = vshrl.u32 %v1195, 7
      %v1197 = vsub.s32 0, %v1196
      %v1198 = vrot.slane %v1193, %v1197
      %v1200 = vadd.f32 %v1191, %v1198
      %v1201 = vadd.f32 %v1192, %v1198
      %v1202 = vtanh.pop %v1200
      %v1203 = vtanh.pop %v1201
      %1204 = vst.msk [vmem:[%s278] sm:$0xff] %vm285, %v1202
      %1205 = vst.msk [vmem:[%s278 + $0x8] sm:$0xff] %vm285, %v1203
      %p1206 = scmp.lt.s32.totalorder %s18, 3
      %s1207 = scalar_select %p1206, %s18, 3
      %s1208 = smul.addr %s1207, 2
      %s1209 = smul.addr %s1208, 8
      %s1210 = scalar_lea.vmem %s7, %s1209
      // Predicated region
      $region49: #{forward.7} parent=47 // pred_check
        %p1211 = pneg %p188
      $region50: #{forward.7} parent=47 // pred_check_branch
        %1213 = sbr.rel (%p1211) target = $region52
      $region51: #{forward.7} parent=47 // pred_region
        _
      $region52: #{forward.7} parent=47 // pred_fallthru
        _
    $region48: #{forward.7} parent=5 // pred_fallthru
      _
    %p1214 = scmp.le.s32.totalorder 2, %s13
    // Predicated region
    $region53: #{forward.7} parent=5 // pred_check
      %p1215 = pneg %p1214
    $region54: #{forward.7} parent=5 // pred_check_branch
      %1217 = sbr.rel (%p1215) target = $region56
    $region55: #{forward.7} parent=5 // pred_region
      %s1218 = ssub.s32 %s13, 2
      // Predicated region
      $region57: #{forward.7} parent=55 // pred_check
        %p1219 = pneg %p194
      $region58: #{forward.7} parent=55 // pred_check_branch
        %1221 = sbr.rel (%p1219) target = $region60
      $region59: #{forward.7} parent=55 // pred_region
        %p1222 = scmp.lt.s32.totalorder %s19, 3
        %s1223 = scalar_select %p1222, %s19, 3
        %s1224 = smul.addr %s1223, 2
        %s1225 = smul.addr %s1224, 8
        %s1226 = scalar_lea.vmem %s7, %s1225
      $region60: #{forward.7} parent=55 // pred_fallthru
        _
    $region56: #{forward.7} parent=5 // pred_fallthru
      _
  $region6: #{forward.7} parent=0 // loop_footer
    %s17 = sadd.s32 1, %s13
  $region7: #{forward.7} parent=0 // loop_footer_branch
    %12 = sbr.rel target = $region3
  $region8: #{forward.7} parent=0 // loop_exit
    _

// kernel: forward.11
$region0: #{forward.11}
  #allocation0 [shape = 'u32[]', space=smem, size = 0x4, offset = 0x4, fixed_abs, tag = 'smem constant byte address 0x4 - core index']
  #allocation1 [shape = 'u32[144,128]{1,0:T(1,128)}', space=vmem, size = 0x12000, scoped, tag = 'internal scratch']
  #allocation2 [shape = 'f32[18,128]{1,0:T(8,128)}', space=vmem, size = 0x3000, scoped, tag = 'scratch operand']
  %s0 = inlined_call_operand.vmem [shape: f32[4,16,48], index: 0, kind: input, shape index: {}]
  %s1 = inlined_call_operand.vmem [shape: bf16[3,48,64], index: 1, kind: input, shape index: {}]
  %s2 = inlined_call_operand.vmem [shape: f32[1,64], index: 2, kind: input, shape index: {}]
  %s3 = inlined_call_operand.vmem [shape: bf16[3,64,32], index: 3, kind: input, shape index: {}]
  %s4 = inlined_call_operand.vmem [shape: f32[1,32], index: 4, kind: input, shape index: {}]
  %s5 = inlined_call_operand.vmem [shape: bf16[1,32,4], index: 5, kind: input, shape index: {}]
  %s6 = inlined_call_operand.vmem [shape: f32[1,4], index: 6, kind: input, shape index: {}]
  %s7 = inlined_call_operand.vmem [shape: f32[4,4,4], index: 7, kind: output, shape index: {}]
  %s8 = sld [smem:[#allocation0]]
  $region61: #{forward.11} parent=0
    _
  %s10 = ssub.s32 1, %s8
  %s11 = scalar_select 0, %s10, %s8
  loop: start=0, step=1, limit=6
  $region2: #{forward.11} parent=0 // loop_pre_header
    _
  $region3: #{forward.11} parent=0 // loop_header
    %s13 = sphi 0, %s17
    %p14 = scmp.ge.s32.totalorder %s13, 6
    %s23 = sphi 0, %s25
    %s26 = sphi 0, %s23
    %s27 = sphi 0, %s26
    %s43 = sphi 0, %s27
    %s47 = sphi 0, %s47
    %s49 = sphi 0, %s47
    %s50 = sphi 0, %s49
    %s64 = sphi 0, %s50
    %s68 = sphi 0, %s68
    %s70 = sphi 0, %s68
    %s71 = sphi 0, %s70
    %s85 = sphi 0, %s71
    %s89 = sphi 0, %s89
    %s91 = sphi 0, %s89
    %s92 = sphi 0, %s91
    %s106 = sphi 0, %s92
    %s110 = sphi 0, %s110
    %s112 = sphi 0, %s110
    %s113 = sphi 0, %s112
    %s127 = sphi 0, %s113
    %s131 = sphi 0, %s131
    %s133 = sphi 0, %s131
    %s134 = sphi 0, %s133
    %s148 = sphi 0, %s134
    %s152 = sphi 0, %s152
    %s154 = sphi 0, %s152
    %s155 = sphi 0, %s154
    %s169 = sphi 0, %s155
    %s175 = sphi 0, %s177
    %s178 = sphi 0, %s175
    %s179 = sphi 0, %s178
    %s195 = sphi 0, %s179
  $region4: #{forward.11} parent=0 // loop_header_branch
    %16 = sbr.rel (%p14) target = $region8
  $region5: #{forward.11} parent=0 // loop_body
    %s18 = ssub.s32 %s13, 1
    %s19 = ssub.s32 %s13, 2
    %s20 = sadd.s32 %s13, 1
    %s21 = ssub.s32 %s13, %s20
    %p22 = scmp.eq.s32.totalorder %s21, 0
    %s24 = sadd.s32 %s23, 1
    %s25 = scalar_select %p22, %s23, %s24
    %p28 = pneg %p22
    %p29 = scmp.eq.s32.totalorder %s13, 3
    %p30 = por %p28, %p29
    %p31 = scmp.ne.s32.totalorder %s23, %s26
    %p32 = scmp.eq.s32.totalorder %s13, 0
    %p33 = por %p31, %p32
    %p34 = scmp.ne.s32.totalorder %s23, %s26
    %p35 = scmp.eq.s32.totalorder %s18, 3
    %p36 = por %p34, %p35
    %p37 = scmp.ne.s32.totalorder %s26, %s27
    %p38 = scmp.eq.s32.totalorder %s18, 0
    %p39 = por %p37, %p38
    %p40 = scmp.ne.s32.totalorder %s26, %s27
    %p41 = scmp.eq.s32.totalorder %s19, 3
    %p42 = por %p40, %p41
    %p44 = scmp.ne.s32.totalorder %s27, %s43
    %p45 = scmp.eq.s32.totalorder %s19, 0
    %p46 = por %p44, %p45
    %s48 = sadd.s32 %s47, 1
    %p51 = scmp.eq.s32.totalorder %s13, 3
    %p52 = scmp.ne.s32.totalorder %s47, %s49
    %p53 = scmp.eq.s32.totalorder %s13, 0
    %p54 = por %p52, %p53
    %p55 = scmp.ne.s32.totalorder %s47, %s49
    %p56 = scmp.eq.s32.totalorder %s18, 3
    %p57 = por %p55, %p56
    %p58 = scmp.ne.s32.totalorder %s49, %s50
    %p59 = scmp.eq.s32.totalorder %s18, 0
    %p60 = por %p58, %p59
    %p61 = scmp.ne.s32.totalorder %s49, %s50
    %p62 = scmp.eq.s32.totalorder %s19, 3
    %p63 = por %p61, %p62
    %p65 = scmp.ne.s32.totalorder %s50, %s64
    %p66 = scmp.eq.s32.totalorder %s19, 0
    %p67 = por %p65, %p66
    %s69 = sadd.s32 %s68, 1
    %p72 = scmp.eq.s32.totalorder %s13, 3
    %p73 = scmp.ne.s32.totalorder %s68, %s70
    %p74 = scmp.eq.s32.totalorder %s13, 0
    %p75 = por %p73, %p74
    %p76 = scmp.ne.s32.totalorder %s68, %s70
    %p77 = scmp.eq.s32.totalorder %s18, 3
    %p78 = por %p76, %p77
    %p79 = scmp.ne.s32.totalorder %s70, %s71
    %p80 = scmp.eq.s32.totalorder %s18, 0
    %p81 = por %p79, %p80
    %p82 = scmp.ne.s32.totalorder %s70, %s71
    %p83 = scmp.eq.s32.totalorder %s19, 3
    %p84 = por %p82, %p83
    %p86 = scmp.ne.s32.totalorder %s71, %s85
    %p87 = scmp.eq.s32.totalorder %s19, 0
    %p88 = por %p86, %p87
    %s90 = sadd.s32 %s89, 1
    %p93 = scmp.eq.s32.totalorder %s13, 3
    %p94 = scmp.ne.s32.totalorder %s89, %s91
    %p95 = scmp.eq.s32.totalorder %s13, 0
    %p96 = por %p94, %p95
    %p97 = scmp.ne.s32.totalorder %s89, %s91
    %p98 = scmp.eq.s32.totalorder %s18, 3
    %p99 = por %p97, %p98
    %p100 = scmp.ne.s32.totalorder %s91, %s92
    %p101 = scmp.eq.s32.totalorder %s18, 0
    %p102 = por %p100, %p101
    %p103 = scmp.ne.s32.totalorder %s91, %s92
    %p104 = scmp.eq.s32.totalorder %s19, 3
    %p105 = por %p103, %p104
    %p107 = scmp.ne.s32.totalorder %s92, %s106
    %p108 = scmp.eq.s32.totalorder %s19, 0
    %p109 = por %p107, %p108
    %s111 = sadd.s32 %s110, 1
    %p114 = scmp.eq.s32.totalorder %s13, 3
    %p115 = scmp.ne.s32.totalorder %s110, %s112
    %p116 = scmp.eq.s32.totalorder %s13, 0
    %p117 = por %p115, %p116
    %p118 = scmp.ne.s32.totalorder %s110, %s112
    %p119 = scmp.eq.s32.totalorder %s18, 3
    %p120 = por %p118, %p119
    %p121 = scmp.ne.s32.totalorder %s112, %s113
    %p122 = scmp.eq.s32.totalorder %s18, 0
    %p123 = por %p121, %p122
    %p124 = scmp.ne.s32.totalorder %s112, %s113
    %p125 = scmp.eq.s32.totalorder %s19, 3
    %p126 = por %p124, %p125
    %p128 = scmp.ne.s32.totalorder %s113, %s127
    %p129 = scmp.eq.s32.totalorder %s19, 0
    %p130 = por %p128, %p129
    %s132 = sadd.s32 %s131, 1
    %p135 = scmp.eq.s32.totalorder %s13, 3
    %p136 = scmp.ne.s32.totalorder %s131, %s133
    %p137 = scmp.eq.s32.totalorder %s13, 0
    %p138 = por %p136, %p137
    %p139 = scmp.ne.s32.totalorder %s131, %s133
    %p140 = scmp.eq.s32.totalorder %s18, 3
    %p141 = por %p139, %p140
    %p142 = scmp.ne.s32.totalorder %s133, %s134
    %p143 = scmp.eq.s32.totalorder %s18, 0
    %p144 = por %p142, %p143
    %p145 = scmp.ne.s32.totalorder %s133, %s134
    %p146 = scmp.eq.s32.totalorder %s19, 3
    %p147 = por %p145, %p146
    %p149 = scmp.ne.s32.totalorder %s134, %s148
    %p150 = scmp.eq.s32.totalorder %s19, 0
    %p151 = por %p149, %p150
    %s153 = sadd.s32 %s152, 1
    %p156 = scmp.eq.s32.totalorder %s13, 3
    %p157 = scmp.ne.s32.totalorder %s152, %s154
    %p158 = scmp.eq.s32.totalorder %s13, 0
    %p159 = por %p157, %p158
    %p160 = scmp.ne.s32.totalorder %s152, %s154
    %p161 = scmp.eq.s32.totalorder %s18, 3
    %p162 = por %p160, %p161
    %p163 = scmp.ne.s32.totalorder %s154, %s155
    %p164 = scmp.eq.s32.totalorder %s18, 0
    %p165 = por %p163, %p164
    %p166 = scmp.ne.s32.totalorder %s154, %s155
    %p167 = scmp.eq.s32.totalorder %s19, 3
    %p168 = por %p166, %p167
    %p170 = scmp.ne.s32.totalorder %s155, %s169
    %p171 = scmp.eq.s32.totalorder %s19, 0
    %p172 = por %p170, %p171
    %s173 = ssub.s32 %s13, %s20
    %p174 = scmp.eq.s32.totalorder %s173, 0
    %s176 = sadd.s32 %s175, 1
    %s177 = scalar_select %p174, %s175, %s176
    %p180 = pneg %p174
    %p181 = scmp.eq.s32.totalorder %s13, 3
    %p182 = por %p180, %p181
    %p183 = scmp.ne.s32.totalorder %s175, %s178
    %p184 = scmp.eq.s32.totalorder %s13, 0
    %p185 = por %p183, %p184
    %p186 = scmp.ne.s32.totalorder %s175, %s178
    %p187 = scmp.eq.s32.totalorder %s18, 3
    %p188 = por %p186, %p187
    %p189 = scmp.ne.s32.totalorder %s178, %s179
    %p190 = scmp.eq.s32.totalorder %s18, 0
    %p191 = por %p189, %p190
    %p192 = scmp.ne.s32.totalorder %s178, %s179
    %p193 = scmp.eq.s32.totalorder %s19, 3
    %p194 = por %p192, %p193
    %p196 = scmp.ne.s32.totalorder %s179, %s195
    %p197 = scmp.eq.s32.totalorder %s19, 0
    %p198 = por %p196, %p197
    %p199 = scmp.le.s32.totalorder 1, %s13
    %p200 = scmp.lt.s32.totalorder %s13, 5
    %p201 = pnand %p199, %p200
    %p202 = pneg %p201
    // Predicated region
    $region9: #{forward.11} parent=5 // pred_check
      _
    $region10: #{forward.11} parent=5 // pred_check_branch
      %204 = sbr.rel (%p201) target = $region12
    $region11: #{forward.11} parent=5 // pred_region
      %s205 = ssub.s32 %s13, 1
      // Predicated region
      $region13: #{forward.11} parent=11 // pred_check
        %p206 = pneg %p60
      $region14: #{forward.11} parent=11 // pred_check_branch
        %208 = sbr.rel (%p206) target = $region16
      $region15: #{forward.11} parent=11 // pred_region
        _
      $region16: #{forward.11} parent=11 // pred_fallthru
        _
      // Predicated region
      $region17: #{forward.11} parent=11 // pred_check
        %p209 = pneg %p81
      $region18: #{forward.11} parent=11 // pred_check_branch
        %211 = sbr.rel (%p209) target = $region20
      $region19: #{forward.11} parent=11 // pred_region
        _
      $region20: #{forward.11} parent=11 // pred_fallthru
        _
      // Predicated region
      $region21: #{forward.11} parent=11 // pred_check
        %p212 = pneg %p102
      $region22: #{forward.11} parent=11 // pred_check_branch
        %214 = sbr.rel (%p212) target = $region24
      $region23: #{forward.11} parent=11 // pred_region
        _
      $region24: #{forward.11} parent=11 // pred_fallthru
        _
      // Predicated region
      $region25: #{forward.11} parent=11 // pred_check
        %p215 = pneg %p123
      $region26: #{forward.11} parent=11 // pred_check_branch
        %217 = sbr.rel (%p215) target = $region28
      $region27: #{forward.11} parent=11 // pred_region
        _
      $region28: #{forward.11} parent=11 // pred_fallthru
        _
      // Predicated region
      $region29: #{forward.11} parent=11 // pred_check
        %p218 = pneg %p144
      $region30: #{forward.11} parent=11 // pred_check_branch
        %220 = sbr.rel (%p218) target = $region32
      $region31: #{forward.11} parent=11 // pred_region
        _
      $region32: #{forward.11} parent=11 // pred_fallthru
        _
      // Predicated region
      $region33: #{forward.11} parent=11 // pred_check
        %p221 = pneg %p165
      $region34: #{forward.11} parent=11 // pred_check_branch
        %223 = sbr.rel (%p221) target = $region36
      $region35: #{forward.11} parent=11 // pred_region
        _
      $region36: #{forward.11} parent=11 // pred_fallthru
        _
    $region12: #{forward.11} parent=5 // pred_fallthru
      _
    %p224 = scmp.lt.s32.totalorder %s13, 4
    // Predicated region
    $region37: #{forward.11} parent=5 // pred_check
      %p225 = pneg %p224
    $region38: #{forward.11} parent=5 // pred_check_branch
      %227 = sbr.rel (%p225) target = $region40
    $region39: #{forward.11} parent=5 // pred_region
      // Predicated region
      $region41: #{forward.11} parent=39 // pred_check
        %p228 = pneg %p33
      $region42: #{forward.11} parent=39 // pred_check_branch
        %230 = sbr.rel (%p228) target = $region44
      $region43: #{forward.11} parent=39 // pred_region
        %p231 = scmp.lt.s32.totalorder %s13, 3
        %s232 = scalar_select %p231, %s13, 3
        %s233 = smul.addr %s232, 2
        %s234 = smul.addr %s233, 8
        %s235 = scalar_lea.vmem %s0, %s234
      $region44: #{forward.11} parent=39 // pred_fallthru
        _
    $region40: #{forward.11} parent=5 // pred_fallthru
      _
    %p236 = scmp.le.s32.totalorder 1, %s13
    %p237 = scmp.lt.s32.totalorder %s13, 5
    %p238 = pnand %p236, %p237
    %p239 = pneg %p238
    // Predicated region
    $region45: #{forward.11} parent=5 // pred_check
      _
    $region46: #{forward.11} parent=5 // pred_check_branch
      %241 = sbr.rel (%p238) target = $region48
    $region47: #{forward.11} parent=5 // pred_region
      %s242 = ssub.s32 %s13, 1
      %p243 = scmp.lt.s32.totalorder %s18, 3
      %s244 = scalar_select %p243, %s18, 3
      %s245 = smul.addr %s244, 2
      %s246 = smul.addr %s245, 8
      %s247 = scalar_lea.vmem %s0, %s246
      %p248 = pneg %p39
      %p249 = pneg %p36
      %p250 = pneg %p60
      %p251 = pneg %p57
      %p252 = pneg %p81
      %p253 = pneg %p78
      %p254 = pneg %p102
      %p255 = pneg %p99
      %p256 = pneg %p123
      %p257 = pneg %p120
      %p258 = pneg %p144
      %p259 = pneg %p141
      %p260 = pneg %p165
      %p261 = pneg %p162
      %p262 = pneg %p191
      %p263 = pneg %p188
      %p264 = scmp.lt.s32.totalorder %s18, 3
      %s265 = scalar_select %p264, %s18, 3
      %s266 = smul.addr %s265, 4
      %s267 = scalar_lea.vmem %s7, %s266
      %p268 = scmp.lt.s32.totalorder %s18, 3
      %s269 = scalar_select %p268, %s18, 3
      %s270 = smul.addr %s269, 2
      %s271 = smul.addr %s270, 8
      %s272 = scalar_lea.vmem %s0, %s271
      %p273 = scmp.lt.s32.totalorder %s18, 3
      %s274 = scalar_select %p273, %s18, 3
      %s275 = smul.addr %s274, 4
      %s276 = scalar_lea.vmem %s7, %s275
      %278 = vst [vmem:[#allocation2] sm:$0xff] 0.0
      %279 = vst [vmem:[#allocation2 + $0x8] sm:$0xff] 0.0
      %280 = vst [vmem:[#allocation2 + $0x10] sm:$0x3] 0.0
      %v281 = vld [vmem:[%s272] sm:$0xff]
      %v282 = vld [vmem:[%s272 + $0x8] sm:$0xff]
      %vm283 = vcmask 392192
      %284 = vst.msk [vmem:[#allocation2 + $0x1] sm:$0xff] %vm283, %v281
      %285 = vst.msk [vmem:[#allocation2 + $0x9] sm:$0xff] %vm283, %v282
      %v286 = vld [vmem:[#allocation2] sm:$0xff]
      %v287 = vld [vmem:[#allocation2 + $0x8] sm:$0xff]
      %v288 = vpack.c.bf16 %v287, %v286
      %v289 = vld [vmem:[%s1] sm:$0xf]
      %v290 = vld [vmem:[%s1 + $0x4] sm:$0xf]
      %v291 = vld [vmem:[%s1 + $0x8] sm:$0xf]
      %v292 = vld [vmem:[%s1 + $0xc] sm:$0xf]
      %v293 = vld [vmem:[%s1 + $0x10] sm:$0xf]
      %v294 = vld [vmem:[%s1 + $0x14] sm:$0xf]
      %v295 = vld [vmem:[#allocation2 + $0x1] sm:$0xff]
      %v296 = vld [vmem:[#allocation2 + $0x9] sm:$0xff]
      %v297 = vpack.c.bf16 %v296, %v295
      %s298 = scalar_lea.vmem %s1, 24
      %v299 = vld [vmem:[%s298] sm:$0xf]
      %v300 = vld [vmem:[%s298 + $0x4] sm:$0xf]
      %v301 = vld [vmem:[%s298 + $0x8] sm:$0xf]
      %v302 = vld [vmem:[%s298 + $0xc] sm:$0xf]
      %v303 = vld [vmem:[%s298 + $0x10] sm:$0xf]
      %v304 = vld [vmem:[%s298 + $0x14] sm:$0xf]
      %v311 = vunpack.c.l.b16 %v299
      %v312 = vunpack.c.l.b16 %v300
      %v313 = vunpack.c.l.b16 %v301
      %v314 = vunpack.c.l.b16 %v302
      %v315 = vunpack.c.l.b16 %v303
      %v316 = vunpack.c.l.b16 %v304
      %v317 = vpack.c.b16 %v312, %v311
      %v318 = vpack.c.b16 %v314, %v313
      %v319 = vpack.c.b16 %v316, %v315
      %v324 = vsel %vm283, %v297, 0
      %326 = vmatprep.subr.bf16.mxu0 0
      %327 = vmatpush1.bf16.msra.mxu0 %v317
      %328 = vmatprep.subr.bf16.mxu0 0
      %329 = vmatpush1.bf16.msra.mxu0 %v318
      %330 = vmatprep.subr.bf16.mxu0 0
      %331 = vmatpush1.bf16.msra.mxu0 %v319
      %332 = vmatprep.subr.bf16.mxu0 0
      %333 = vmatpush1.bf16.msra.mxu0 0
      %334 = vmatprep.subr.bf16.mxu0 0
      %335 = vmatpush1.bf16.msra.mxu0 0
      %336 = vmatprep.subr.bf16.mxu0 0
      %337 = vmatpush1.bf16.msra.mxu0 0
      %338 = vmatprep.subr.bf16.mxu0 0
      %339 = vmatpush1.bf16.msra.mxu0 0
      %340 = vmatprep.subr.bf16.mxu0 0
      %341 = vmatpush1.bf16.msra.mxu0 0
      %342 = vmatprep.subr.bf16.mxu0 0
      %343 = vmatpush1.bf16.msra.mxu0 0
      %344 = vmatprep.subr.bf16.mxu0 0
      %345 = vmatpush1.bf16.msra.mxu0 0
      %346 = vmatprep.subr.bf16.mxu0 0
      %347 = vmatpush1.bf16.msra.mxu0 0
      %348 = vmatprep.subr.bf16.mxu0 0
      %349 = vmatpush1.bf16.msra.mxu0 0
      %350 = vmatprep.subr.bf16.mxu0 0
      %351 = vmatpush1.bf16.msra.mxu0 0
      %352 = vmatprep.subr.bf16.mxu0 0
      %353 = vmatpush1.bf16.msra.mxu0 0
      %354 = vmatprep.subr.bf16.mxu0 0
      %355 = vmatpush1.bf16.msra.mxu0 0
      %356 = vmatprep.subr.bf16.mxu0 0
      %357 = vmatpush1.bf16.msra.mxu0 0
      %358 = vmatprep.mubr.bf16.mxu0 0
      %359 = vmatmul.mubr.bf16.gmra.mrb[0].mxu0 %v324
      %v360 = vpop.f32.mrb[0].mxu0
      %v361 = vadd.f32 0.0, %v360
      %v362 = vpop.f32.mrb[0].mxu0
      %v363 = vpop.f32.mrb[0].mxu0
      %v364 = vadd.f32 0.0, %v363
      %v365 = vpop.f32.mrb[0].mxu0
      %366 = vdwg.mxu0
      %v373 = vunpack.c.l.b16 %v289
      %v374 = vunpack.c.l.b16 %v290
      %v375 = vunpack.c.l.b16 %v291
      %v376 = vunpack.c.l.b16 %v292
      %v377 = vunpack.c.l.b16 %v293
      %v378 = vunpack.c.l.b16 %v294
      %v379 = vpack.c.b16 %v374, %v373
      %v380 = vpack.c.b16 %v376, %v375
      %v381 = vpack.c.b16 %v378, %v377
      %v386 = vsel %vm283, %v288, 0
      %388 = vmatprep.subr.bf16.mxu0 0
      %389 = vmatpush1.bf16.msra.mxu0 %v379
      %390 = vmatprep.subr.bf16.mxu0 0
      %391 = vmatpush1.bf16.msra.mxu0 %v380
      %392 = vmatprep.subr.bf16.mxu0 0
      %393 = vmatpush1.bf16.msra.mxu0 %v381
      %394 = vmatprep.subr.bf16.mxu0 0
      %395 = vmatpush1.bf16.msra.mxu0 0
      %396 = vmatprep.subr.bf16.mxu0 0
      %397 = vmatpush1.bf16.msra.mxu0 0
      %398 = vmatprep.subr.bf16.mxu0 0
      %399 = vmatpush1.bf16.msra.mxu0 0
      %400 = vmatprep.subr.bf16.mxu0 0
      %401 = vmatpush1.bf16.msra.mxu0 0
      %402 = vmatprep.subr.bf16.mxu0 0
      %403 = vmatpush1.bf16.msra.mxu0 0
      %404 = vmatprep.subr.bf16.mxu0 0
      %405 = vmatpush1.bf16.msra.mxu0 0
      %406 = vmatprep.subr.bf16.mxu0 0
      %407 = vmatpush1.bf16.msra.mxu0 0
      %408 = vmatprep.subr.bf16.mxu0 0
      %409 = vmatpush1.bf16.msra.mxu0 0
      %410 = vmatprep.subr.bf16.mxu0 0
      %411 = vmatpush1.bf16.msra.mxu0 0
      %412 = vmatprep.subr.bf16.mxu0 0
      %413 = vmatpush1.bf16.msra.mxu0 0
      %414 = vmatprep.subr.bf16.mxu0 0
      %415 = vmatpush1.bf16.msra.mxu0 0
      %416 = vmatprep.subr.bf16.mxu0 0
      %417 = vmatpush1.bf16.msra.mxu0 0
      %418 = vmatprep.subr.bf16.mxu0 0
      %419 = vmatpush1.bf16.msra.mxu0 0
      %420 = vmatprep.mubr.bf16.mxu0 0
      %421 = vmatmul.mubr.bf16.gmra.mrb[0].mxu0 %v386
      %v422 = vpop.f32.mrb[0].mxu0
      %v423 = vadd.f32 %v361, %v422
      %v424 = vpop.f32.mrb[0].mxu0
      %v425 = vpop.f32.mrb[0].mxu0
      %v426 = vadd.f32 %v364, %v425
      %v427 = vpop.f32.mrb[0].mxu0
      %428 = vdwg.mxu0
      %v429 = vld [vmem:[#allocation2 + $0x2] sm:$0xff]
      %v430 = vld [vmem:[#allocation2 + $0xa] sm:$0xff]
      %v431 = vpack.c.bf16 %v430, %v429
      %s432 = scalar_lea.vmem %s1, 48
      %v433 = vld [vmem:[%s432] sm:$0xf]
      %v434 = vld [vmem:[%s432 + $0x4] sm:$0xf]
      %v435 = vld [vmem:[%s432 + $0x8] sm:$0xf]
      %v436 = vld [vmem:[%s432 + $0xc] sm:$0xf]
      %v437 = vld [vmem:[%s432 + $0x10] sm:$0xf]
      %v438 = vld [vmem:[%s432 + $0x14] sm:$0xf]
      %v445 = vunpack.c.l.b16 %v433
      %v446 = vunpack.c.l.b16 %v434
      %v447 = vunpack.c.l.b16 %v435
      %v448 = vunpack.c.l.b16 %v436
      %v449 = vunpack.c.l.b16 %v437
      %v450 = vunpack.c.l.b16 %v438
      %v451 = vpack.c.b16 %v446, %v445
      %v452 = vpack.c.b16 %v448, %v447
      %v453 = vpack.c.b16 %v450, %v449
      %v458 = vsel %vm283, %v431, 0
      %460 = vmatprep.subr.bf16.mxu0 0
      %461 = vmatpush1.bf16.msra.mxu0 %v451
      %462 = vmatprep.subr.bf16.mxu0 0
      %463 = vmatpush1.bf16.msra.mxu0 %v452
      %464 = vmatprep.subr.bf16.mxu0 0
      %465 = vmatpush1.bf16.msra.mxu0 %v453
      %466 = vmatprep.subr.bf16.mxu0 0
      %467 = vmatpush1.bf16.msra.mxu0 0
      %468 = vmatprep.subr.bf16.mxu0 0
      %469 = vmatpush1.bf16.msra.mxu0 0
      %470 = vmatprep.subr.bf16.mxu0 0
      %471 = vmatpush1.bf16.msra.mxu0 0
      %472 = vmatprep.subr.bf16.mxu0 0
      %473 = vmatpush1.bf16.msra.mxu0 0
      %474 = vmatprep.subr.bf16.mxu0 0
      %475 = vmatpush1.bf16.msra.mxu0 0
      %476 = vmatprep.subr.bf16.mxu0 0
      %477 = vmatpush1.bf16.msra.mxu0 0
      %478 = vmatprep.subr.bf16.mxu0 0
      %479 = vmatpush1.bf16.msra.mxu0 0
      %480 = vmatprep.subr.bf16.mxu0 0
      %481 = vmatpush1.bf16.msra.mxu0 0
      %482 = vmatprep.subr.bf16.mxu0 0
      %483 = vmatpush1.bf16.msra.mxu0 0
      %484 = vmatprep.subr.bf16.mxu0 0
      %485 = vmatpush1.bf16.msra.mxu0 0
      %486 = vmatprep.subr.bf16.mxu0 0
      %487 = vmatpush1.bf16.msra.mxu0 0
      %488 = vmatprep.subr.bf16.mxu0 0
      %489 = vmatpush1.bf16.msra.mxu0 0
      %490 = vmatprep.subr.bf16.mxu0 0
      %491 = vmatpush1.bf16.msra.mxu0 0
      %492 = vmatprep.mubr.bf16.mxu0 0
      %493 = vmatmul.mubr.bf16.gmra.mrb[0].mxu0 %v458
      %v494 = vpop.f32.mrb[0].mxu0
      %v495 = vadd.f32 0.0, %v494
      %v496 = vpop.f32.mrb[0].mxu0
      %v497 = vpop.f32.mrb[0].mxu0
      %v498 = vadd.f32 0.0, %v497
      %v499 = vpop.f32.mrb[0].mxu0
      %500 = vdwg.mxu0
      %v501 = vadd.f32 %v423, %v495
      %v502 = vadd.f32 %v426, %v498
      %v503 = vld [vmem:[%s2] sm:$0x1]
      %v505 = vlaneseq
      %v506 = vshrl.u32 %v505, 7
      %v507 = vsub.s32 0, %v506
      %v508 = vrot.slane %v503, %v507
      %v510 = vadd.f32 %v501, %v508
      %v511 = vadd.f32 %v502, %v508
      %vm512 = vcmp.ge.f32.partialorder %v510, 0.0
      %vm513 = vcmp.ge.f32.partialorder %v511, 0.0
      %v514 = vmul.f32 %v510, 0.2
      %v515 = vmul.f32 %v511, 0.2
      %v516 = vsel %vm512, %v510, %v514
      %v517 = vsel %vm513, %v511, %v515
      %v518 = vlaneseq
      %v519 = vand.u32 %v518, 127
      %v520 = vlaneseq
      %v521 = vshrl.u32 %v520, 7
      %v522 = vmul.u32 %v521, 2
      %vm523 = vcmp.eq.s32.totalorder %v519, %v522
      %v524 = vsel %vm523, 1, 0
      %v525 = vcvt.s32.f32 %v524
      %vm526 = vcmask 130048
      %v528 = vsel %vm526, %v525, 0
      %530 = vmatprep.subr.mxu0 0.0
      %531 = vmatpush1.msra.mxu0 %v516
      %532 = vmatprep.subr.mxu0 0.0
      %533 = vmatpush1.msra.mxu0 %v517
      %534 = vmatprep.subr.mxu0 0.0
      %535 = vmatpush1.msra.mxu0 0.0
      %536 = vmatprep.subr.mxu0 0.0
      %537 = vmatpush1.msra.mxu0 0.0
      %538 = vmatprep.subr.mxu0 0.0
      %539 = vmatpush1.msra.mxu0 0.0
      %540 = vmatprep.subr.mxu0 0.0
      %541 = vmatpush1.msra.mxu0 0.0
      %542 = vmatprep.subr.mxu0 0.0
      %543 = vmatpush1.msra.mxu0 0.0
      %544 = vmatprep.subr.mxu0 0.0
      %545 = vmatpush1.msra.mxu0 0.0
      %546 = vmatprep.subr.mxu0 0.0
      %547 = vmatpush1.msra.mxu0 0.0
      %548 = vmatprep.subr.mxu0 0.0
      %549 = vmatpush1.msra.mxu0 0.0
      %550 = vmatprep.subr.mxu0 0.0
      %551 = vmatpush1.msra.mxu0 0.0
      %552 = vmatprep.subr.mxu0 0.0
      %553 = vmatpush1.msra.mxu0 0.0
      %554 = vmatprep.subr.mxu0 0.0
      %555 = vmatpush1.msra.mxu0 0.0
      %556 = vmatprep.subr.mxu0 0.0
      %557 = vmatpush1.msra.mxu0 0.0
      %558 = vmatprep.subr.mxu0 0.0
      %559 = vmatpush1.msra.mxu0 0.0
      %560 = vmatprep.subr.mxu0 0.0
      %561 = vmatpush1.msra.mxu0 0.0
      %562 = vmatprep.subr.mxu0 0.0
      %563 = vmatpush1.msra.mxu0 0.0
      %564 = vmatprep.subr.mxu0 0.0
      %565 = vmatpush1.msra.mxu0 0.0
      %566 = vmatprep.subr.mxu0 0.0
      %567 = vmatpush1.msra.mxu0 0.0
      %568 = vmatprep.subr.mxu0 0.0
      %569 = vmatpush1.msra.mxu0 0.0
      %570 = vmatprep.subr.mxu0 0.0
      %571 = vmatpush1.msra.mxu0 0.0
      %572 = vmatprep.subr.mxu0 0.0
      %573 = vmatpush1.msra.mxu0 0.0
      %574 = vmatprep.subr.mxu0 0.0
      %575 = vmatpush1.msra.mxu0 0.0
      %576 = vmatprep.subr.mxu0 0.0
      %577 = vmatpush1.msra.mxu0 0.0
      %578 = vmatprep.subr.mxu0 0.0
      %579 = vmatpush1.msra.mxu0 0.0
      %580 = vmatprep.subr.mxu0 0.0
      %581 = vmatpush1.msra.mxu0 0.0
      %582 = vmatprep.subr.mxu0 0.0
      %583 = vmatpush1.msra.mxu0 0.0
      %584 = vmatprep.subr.mxu0 0.0
      %585 = vmatpush1.msra.mxu0 0.0
      %586 = vmatprep.subr.mxu0 0.0
      %587 = vmatpush1.msra.mxu0 0.0
      %588 = vmatprep.subr.mxu0 0.0
      %589 = vmatpush1.msra.mxu0 0.0
      %590 = vmatprep.subr.mxu0 0.0
      %591 = vmatpush1.msra.mxu0 0.0
      %592 = vmatprep.subr.mxu0 0.0
      %593 = vmatpush1.msra.mxu0 0.0
      %594 = vmatprep.mubr.f32.mxu0 0.0
      %595 = vmatmul.mubr.f32.gmra.mrb[0].mxu0 %v528
      %v596 = vpop.f32.mrb[0].mxu0
      %v597 = vadd.f32 0.0, %v596
      %v598 = vpop.f32.mrb[0].mxu0
      %599 = vdwg.mxu0
      %600 = vst [vmem:[#allocation2] sm:$0xff] 0.0
      %601 = vst [vmem:[#allocation2 + $0x8] sm:$0xff] 0.0
      %602 = vst [vmem:[#allocation2 + $0x10] sm:$0x3] 0.0
      %vm603 = vcmask 523264
      %604 = vst.msk [vmem:[#allocation2 + $0x1] sm:$0xff] %vm603, %v597
      %v605 = vld [vmem:[#allocation2] sm:$0xff]
      %v606 = vpack.c.bf16 %v605, %v605
      %v607 = vld [vmem:[%s3] sm:$0xf]
      %v608 = vld [vmem:[%s3 + $0x4] sm:$0xf]
      %v609 = vld [vmem:[%s3 + $0x8] sm:$0xf]
      %v610 = vld [vmem:[%s3 + $0xc] sm:$0xf]
      %v611 = vld [vmem:[%s3 + $0x10] sm:$0xf]
      %v612 = vld [vmem:[%s3 + $0x14] sm:$0xf]
      %v613 = vld [vmem:[%s3 + $0x18] sm:$0xf]
      %v614 = vld [vmem:[%s3 + $0x1c] sm:$0xf]
      %v615 = vld [vmem:[#allocation2 + $0x1] sm:$0xff]
      %v616 = vpack.c.bf16 %v615, %v615
      %s617 = scalar_lea.vmem %s3, 32
      %v618 = vld [vmem:[%s617] sm:$0xf]
      %v619 = vld [vmem:[%s617 + $0x4] sm:$0xf]
      %v620 = vld [vmem:[%s617 + $0x8] sm:$0xf]
      %v621 = vld [vmem:[%s617 + $0xc] sm:$0xf]
      %v622 = vld [vmem:[%s617 + $0x10] sm:$0xf]
      %v623 = vld [vmem:[%s617 + $0x14] sm:$0xf]
      %v624 = vld [vmem:[%s617 + $0x18] sm:$0xf]
      %v625 = vld [vmem:[%s617 + $0x1c] sm:$0xf]
      %v634 = vunpack.c.l.b16 %v618
      %v635 = vunpack.c.l.b16 %v619
      %v636 = vunpack.c.l.b16 %v620
      %v637 = vunpack.c.l.b16 %v621
      %v638 = vunpack.c.l.b16 %v622
      %v639 = vunpack.c.l.b16 %v623
      %v640 = vunpack.c.l.b16 %v624
      %v641 = vunpack.c.l.b16 %v625
      %v642 = vpack.c.b16 %v635, %v634
      %v643 = vpack.c.b16 %v637, %v636
      %v644 = vpack.c.b16 %v639, %v638
      %v645 = vpack.c.b16 %v641, %v640
      %v651 = vsel %vm603, %v616, 0
      %653 = vmatprep.subr.bf16.mxu0 0
      %654 = vmatpush1.bf16.msra.mxu0 %v642
      %655 = vmatprep.subr.bf16.mxu0 0
      %656 = vmatpush1.bf16.msra.mxu0 %v643
      %657 = vmatprep.subr.bf16.mxu0 0
      %658 = vmatpush1.bf16.msra.mxu0 %v644
      %659 = vmatprep.subr.bf16.mxu0 0
      %660 = vmatpush1.bf16.msra.mxu0 %v645
      %661 = vmatprep.subr.bf16.mxu0 0
      %662 = vmatpush1.bf16.msra.mxu0 0
      %663 = vmatprep.subr.bf16.mxu0 0
      %664 = vmatpush1.bf16.msra.mxu0 0
      %665 = vmatprep.subr.bf16.mxu0 0
      %666 = vmatpush1.bf16.msra.mxu0 0
      %667 = vmatprep.subr.bf16.mxu0 0
      %668 = vmatpush1.bf16.msra.mxu0 0
      %669 = vmatprep.subr.bf16.mxu0 0
      %670 = vmatpush1.bf16.msra.mxu0 0
      %671 = vmatprep.subr.bf16.mxu0 0
      %672 = vmatpush1.bf16.msra.mxu0 0
      %673 = vmatprep.subr.bf16.mxu0 0
      %674 = vmatpush1.bf16.msra.mxu0 0
      %675 = vmatprep.subr.bf16.mxu0 0
      %676 = vmatpush1.bf16.msra.mxu0 0
      %677 = vmatprep.subr.bf16.mxu0 0
      %678 = vmatpush1.bf16.msra.mxu0 0
      %679 = vmatprep.subr.bf16.mxu0 0
      %680 = vmatpush1.bf16.msra.mxu0 0
      %681 = vmatprep.subr.bf16.mxu0 0
      %682 = vmatpush1.bf16.msra.mxu0 0
      %683 = vmatprep.subr.bf16.mxu0 0
      %684 = vmatpush1.bf16.msra.mxu0 0
      %685 = vmatprep.mubr.bf16.mxu0 0
      %686 = vmatmul.mubr.bf16.gmra.mrb[0].mxu0 %v651
      %v687 = vpop.f32.mrb[0].mxu0
      %v688 = vadd.f32 0.0, %v687
      %v689 = vpop.f32.mrb[0].mxu0
      %v690 = vpop.f32.mrb[0].mxu0
      %v691 = vpop.f32.mrb[0].mxu0
      %692 = vdwg.mxu0
      %v701 = vunpack.c.l.b16 %v607
      %v702 = vunpack.c.l.b16 %v608
      %v703 = vunpack.c.l.b16 %v609
      %v704 = vunpack.c.l.b16 %v610
      %v705 = vunpack.c.l.b16 %v611
      %v706 = vunpack.c.l.b16 %v612
      %v707 = vunpack.c.l.b16 %v613
      %v708 = vunpack.c.l.b16 %v614
      %v709 = vpack.c.b16 %v702, %v701
      %v710 = vpack.c.b16 %v704, %v703
      %v711 = vpack.c.b16 %v706, %v705
      %v712 = vpack.c.b16 %v708, %v707
      %v718 = vsel %vm603, %v606, 0
      %720 = vmatprep.subr.bf16.mxu0 0
      %721 = vmatpush1.bf16.msra.mxu0 %v709
      %722 = vmatprep.subr.bf16.mxu0 0
      %723 = vmatpush1.bf16.msra.mxu0 %v710
      %724 = vmatprep.subr.bf16.mxu0 0
      %725 = vmatpush1.bf16.msra.mxu0 %v711
      %726 = vmatprep.subr.bf16.mxu0 0
      %727 = vmatpush1.bf16.msra.mxu0 %v712
      %728 = vmatprep.subr.bf16.mxu0 0
      %729 = vmatpush1.bf16.msra.mxu0 0
      %730 = vmatprep.subr.bf16.mxu0 0
      %731 = vmatpush1.bf16.msra.mxu0 0
      %732 = vmatprep.subr.bf16.mxu0 0
      %733 = vmatpush1.bf16.msra.mxu0 0
      %734 = vmatprep.subr.bf16.mxu0 0
      %735 = vmatpush1.bf16.msra.mxu0 0
      %736 = vmatprep.subr.bf16.mxu0 0
      %737 = vmatpush1.bf16.msra.mxu0 0
      %738 = vmatprep.subr.bf16.mxu0 0
      %739 = vmatpush1.bf16.msra.mxu0 0
      %740 = vmatprep.subr.bf16.mxu0 0
      %741 = vmatpush1.bf16.msra.mxu0 0
      %742 = vmatprep.subr.bf16.mxu0 0
      %743 = vmatpush1.bf16.msra.mxu0 0
      %744 = vmatprep.subr.bf16.mxu0 0
      %745 = vmatpush1.bf16.msra.mxu0 0
      %746 = vmatprep.subr.bf16.mxu0 0
      %747 = vmatpush1.bf16.msra.mxu0 0
      %748 = vmatprep.subr.bf16.mxu0 0
      %749 = vmatpush1.bf16.msra.mxu0 0
      %750 = vmatprep.subr.bf16.mxu0 0
      %751 = vmatpush1.bf16.msra.mxu0 0
      %752 = vmatprep.mubr.bf16.mxu0 0
      %753 = vmatmul.mubr.bf16.gmra.mrb[0].mxu0 %v718
      %v754 = vpop.f32.mrb[0].mxu0
      %v755 = vadd.f32 %v688, %v754
      %v756 = vpop.f32.mrb[0].mxu0
      %v757 = vpop.f32.mrb[0].mxu0
      %v758 = vpop.f32.mrb[0].mxu0
      %759 = vdwg.mxu0
      %v760 = vld [vmem:[#allocation2 + $0x2] sm:$0xff]
      %v761 = vpack.c.bf16 %v760, %v760
      %s762 = scalar_lea.vmem %s3, 64
      %v763 = vld [vmem:[%s762] sm:$0xf]
      %v764 = vld [vmem:[%s762 + $0x4] sm:$0xf]
      %v765 = vld [vmem:[%s762 + $0x8] sm:$0xf]
      %v766 = vld [vmem:[%s762 + $0xc] sm:$0xf]
      %v767 = vld [vmem:[%s762 + $0x10] sm:$0xf]
      %v768 = vld [vmem:[%s762 + $0x14] sm:$0xf]
      %v769 = vld [vmem:[%s762 + $0x18] sm:$0xf]
      %v770 = vld [vmem:[%s762 + $0x1c] sm:$0xf]
      %v779 = vunpack.c.l.b16 %v763
      %v780 = vunpack.c.l.b16 %v764
      %v781 = vunpack.c.l.b16 %v765
      %v782 = vunpack.c.l.b16 %v766
      %v783 = vunpack.c.l.b16 %v767
      %v784 = vunpack.c.l.b16 %v768
      %v785 = vunpack.c.l.b16 %v769
      %v786 = vunpack.c.l.b16 %v770
      %v787 = vpack.c.b16 %v780, %v779
      %v788 = vpack.c.b16 %v782, %v781
      %v789 = vpack.c.b16 %v784, %v783
      %v790 = vpack.c.b16 %v786, %v785
      %v796 = vsel %vm603, %v761, 0
      %798 = vmatprep.subr.bf16.mxu0 0
      %799 = vmatpush1.bf16.msra.mxu0 %v787
      %800 = vmatprep.subr.bf16.mxu0 0
      %801 = vmatpush1.bf16.msra.mxu0 %v788
      %802 = vmatprep.subr.bf16.mxu0 0
      %803 = vmatpush1.bf16.msra.mxu0 %v789
      %804 = vmatprep.subr.bf16.mxu0 0
      %805 = vmatpush1.bf16.msra.mxu0 %v790
      %806 = vmatprep.subr.bf16.mxu0 0
      %807 = vmatpush1.bf16.msra.mxu0 0
      %808 = vmatprep.subr.bf16.mxu0 0
      %809 = vmatpush1.bf16.msra.mxu0 0
      %810 = vmatprep.subr.bf16.mxu0 0
      %811 = vmatpush1.bf16.msra.mxu0 0
      %812 = vmatprep.subr.bf16.mxu0 0
      %813 = vmatpush1.bf16.msra.mxu0 0
      %814 = vmatprep.subr.bf16.mxu0 0
      %815 = vmatpush1.bf16.msra.mxu0 0
      %816 = vmatprep.subr.bf16.mxu0 0
      %817 = vmatpush1.bf16.msra.mxu0 0
      %818 = vmatprep.subr.bf16.mxu0 0
      %819 = vmatpush1.bf16.msra.mxu0 0
      %820 = vmatprep.subr.bf16.mxu0 0
      %821 = vmatpush1.bf16.msra.mxu0 0
      %822 = vmatprep.subr.bf16.mxu0 0
      %823 = vmatpush1.bf16.msra.mxu0 0
      %824 = vmatprep.subr.bf16.mxu0 0
      %825 = vmatpush1.bf16.msra.mxu0 0
      %826 = vmatprep.subr.bf16.mxu0 0
      %827 = vmatpush1.bf16.msra.mxu0 0
      %828 = vmatprep.subr.bf16.mxu0 0
      %829 = vmatpush1.bf16.msra.mxu0 0
      %830 = vmatprep.mubr.bf16.mxu0 0
      %831 = vmatmul.mubr.bf16.gmra.mrb[0].mxu0 %v796
      %v832 = vpop.f32.mrb[0].mxu0
      %v833 = vadd.f32 0.0, %v832
      %v834 = vpop.f32.mrb[0].mxu0
      %v835 = vpop.f32.mrb[0].mxu0
      %v836 = vpop.f32.mrb[0].mxu0
      %837 = vdwg.mxu0
      %v838 = vadd.f32 %v755, %v833
      %v839 = vld [vmem:[%s4] sm:$0x1]
      %v841 = vlaneseq
      %v842 = vshrl.u32 %v841, 7
      %v843 = vsub.s32 0, %v842
      %v844 = vrot.slane %v839, %v843
      %v846 = vadd.f32 %v838, %v844
      %vm847 = vcmp.ge.f32.partialorder %v846, 0.0
      %v848 = vmul.f32 %v846, 0.2
      %v849 = vsel %vm847, %v846, %v848
      %vm850 = vcmask 64512
      %v851 = vsel %vm850, %v525, 0
      %853 = vmatprep.subr.mxu0 0.0
      %854 = vmatpush1.msra.mxu0 %v849
      %855 = vmatprep.subr.mxu0 0.0
      %856 = vmatpush1.msra.mxu0 0.0
      %857 = vmatprep.subr.mxu0 0.0
      %858 = vmatpush1.msra.mxu0 0.0
      %859 = vmatprep.subr.mxu0 0.0
      %860 = vmatpush1.msra.mxu0 0.0
      %861 = vmatprep.subr.mxu0 0.0
      %862 = vmatpush1.msra.mxu0 0.0
      %863 = vmatprep.subr.mxu0 0.0
      %864 = vmatpush1.msra.mxu0 0.0
      %865 = vmatprep.subr.mxu0 0.0
      %866 = vmatpush1.msra.mxu0 0.0
      %867 = vmatprep.subr.mxu0 0.0
      %868 = vmatpush1.msra.mxu0 0.0
      %869 = vmatprep.subr.mxu0 0.0
      %870 = vmatpush1.msra.mxu0 0.0
      %871 = vmatprep.subr.mxu0 0.0
      %872 = vmatpush1.msra.mxu0 0.0
      %873 = vmatprep.subr.mxu0 0.0
      %874 = vmatpush1.msra.mxu0 0.0
      %875 = vmatprep.subr.mxu0 0.0
      %876 = vmatpush1.msra.mxu0 0.0
      %877 = vmatprep.subr.mxu0 0.0
      %878 = vmatpush1.msra.mxu0 0.0
      %879 = vmatprep.subr.mxu0 0.0
      %880 = vmatpush1.msra.mxu0 0.0
      %881 = vmatprep.subr.mxu0 0.0
      %882 = vmatpush1.msra.mxu0 0.0
      %883 = vmatprep.subr.mxu0 0.0
      %884 = vmatpush1.msra.mxu0 0.0
      %885 = vmatprep.subr.mxu0 0.0
      %886 = vmatpush1.msra.mxu0 0.0
      %887 = vmatprep.subr.mxu0 0.0
      %888 = vmatpush1.msra.mxu0 0.0
      %889 = vmatprep.subr.mxu0 0.0
      %890 = vmatpush1.msra.mxu0 0.0
      %891 = vmatprep.subr.mxu0 0.0
      %892 = vmatpush1.msra.mxu0 0.0
      %893 = vmatprep.subr.mxu0 0.0
      %894 = vmatpush1.msra.mxu0 0.0
      %895 = vmatprep.subr.mxu0 0.0
      %896 = vmatpush1.msra.mxu0 0.0
      %897 = vmatprep.subr.mxu0 0.0
      %898 = vmatpush1.msra.mxu0 0.0
      %899 = vmatprep.subr.mxu0 0.0
      %900 = vmatpush1.msra.mxu0 0.0
      %901 = vmatprep.subr.mxu0 0.0
      %902 = vmatpush1.msra.mxu0 0.0
      %903 = vmatprep.subr.mxu0 0.0
      %904 = vmatpush1.msra.mxu0 0.0
      %905 = vmatprep.subr.mxu0 0.0
      %906 = vmatpush1.msra.mxu0 0.0
      %907 = vmatprep.subr.mxu0 0.0
      %908 = vmatpush1.msra.mxu0 0.0
      %909 = vmatprep.subr.mxu0 0.0
      %910 = vmatpush1.msra.mxu0 0.0
      %911 = vmatprep.subr.mxu0 0.0
      %912 = vmatpush1.msra.mxu0 0.0
      %913 = vmatprep.subr.mxu0 0.0
      %914 = vmatpush1.msra.mxu0 0.0
      %915 = vmatprep.subr.mxu0 0.0
      %916 = vmatpush1.msra.mxu0 0.0
      %917 = vmatprep.mubr.f32.mxu0 0.0
      %918 = vmatmul.mubr.f32.gmra.mrb[0].mxu0 %v851
      %v919 = vpop.f32.mrb[0].mxu0
      %v920 = vadd.f32 0.0, %v919
      %v921 = vpop.f32.mrb[0].mxu0
      %922 = vdwg.mxu0
      %923 = vst [vmem:[#allocation2] sm:$0xff] 0.0
      %924 = vst [vmem:[#allocation2 + $0x8] sm:$0xff] 0.0
      %925 = vst [vmem:[#allocation2 + $0x10] sm:$0x3] 0.0
      %vm926 = vcmask 257024
      %927 = vst.msk [vmem:[#allocation2 + $0x1] sm:$0xf] %vm926, %v920
      %v928 = vld [vmem:[#allocation2 + $0x1] sm:$0xf]
      %v929 = vpack.c.bf16 %v928, %v928
      %v930 = vld [vmem:[%s5] sm:$0xf]
      %v931 = vld [vmem:[%s5 + $0x4] sm:$0xf]
      %v932 = vld [vmem:[%s5 + $0x8] sm:$0xf]
      %v933 = vld [vmem:[%s5 + $0xc] sm:$0xf]
      %v934 = vld [vmem:[%s6] sm:$0x1]
      %v936 = vlaneseq
      %v937 = vshrl.u32 %v936, 7
      %v938 = vsub.s32 0, %v937
      %v939 = vrot.slane %v934, %v938
      %v945 = vunpack.c.l.b16 %v930
      %v946 = vunpack.c.l.b16 %v931
      %v947 = vunpack.c.l.b16 %v932
      %v948 = vunpack.c.l.b16 %v933
      %v949 = vpack.c.b16 %v946, %v945
      %v950 = vpack.c.b16 %v948, %v947
      %vm953 = vcmask 261120
      %v955 = vsel %vm953, %v929, 0
      %957 = vmatprep.subr.bf16.mxu0 0
      %958 = vmatpush1.bf16.msra.mxu0 %v949
      %959 = vmatprep.subr.bf16.mxu0 0
      %960 = vmatpush1.bf16.msra.mxu0 %v950
      %961 = vmatprep.subr.bf16.mxu0 0
      %962 = vmatpush1.bf16.msra.mxu0 0
      %963 = vmatprep.subr.bf16.mxu0 0
      %964 = vmatpush1.bf16.msra.mxu0 0
      %965 = vmatprep.subr.bf16.mxu0 0
      %966 = vmatpush1.bf16.msra.mxu0 0
      %967 = vmatprep.subr.bf16.mxu0 0
      %968 = vmatpush1.bf16.msra.mxu0 0
      %969 = vmatprep.subr.bf16.mxu0 0
      %970 = vmatpush1.bf16.msra.mxu0 0
      %971 = vmatprep.subr.bf16.mxu0 0
      %972 = vmatpush1.bf16.msra.mxu0 0
      %973 = vmatprep.subr.bf16.mxu0 0
      %974 = vmatpush1.bf16.msra.mxu0 0
      %975 = vmatprep.subr.bf16.mxu0 0
      %976 = vmatpush1.bf16.msra.mxu0 0
      %977 = vmatprep.subr.bf16.mxu0 0
      %978 = vmatpush1.bf16.msra.mxu0 0
      %979 = vmatprep.subr.bf16.mxu0 0
      %980 = vmatpush1.bf16.msra.mxu0 0
      %981 = vmatprep.subr.bf16.mxu0 0
      %982 = vmatpush1.bf16.msra.mxu0 0
      %983 = vmatprep.subr.bf16.mxu0 0
      %984 = vmatpush1.bf16.msra.mxu0 0
      %985 = vmatprep.subr.bf16.mxu0 0
      %986 = vmatpush1.bf16.msra.mxu0 0
      %987 = vmatprep.subr.bf16.mxu0 0
      %988 = vmatpush1.bf16.msra.mxu0 0
      %989 = vmatprep.mubr.bf16.mxu0 0
      %990 = vmatmul.mubr.bf16.gmra.mrb[0].mxu0 %v955
      %v991 = vpop.f32.mrb[0].mxu0
      %v992 = vadd.f32 %v939, %v991
      %v993 = vpop.f32.mrb[0].mxu0
      %v994 = vpop.f32.mrb[0].mxu0
      %v995 = vpop.f32.mrb[0].mxu0
      %996 = vdwg.mxu0
      %vm997 = vcmask 27648
      %998 = vst.msk [vmem:[%s276] sm:$0xf] %vm997, %v992
      %p999 = scmp.lt.s32.totalorder %s18, 3
      %s1000 = scalar_select %p999, %s18, 3
      %s1001 = smul.addr %s1000, 4
      %s1002 = scalar_lea.vmem %s7, %s1001
      // Predicated region
      $region49: #{forward.11} parent=47 // pred_check
        %p1003 = pneg %p188
      $region50: #{forward.11} parent=47 // pred_check_branch
        %1005 = sbr.rel (%p1003) target = $region52
      $region51: #{forward.11} parent=47 // pred_region
        _
      $region52: #{forward.11} parent=47 // pred_fallthru
        _
    $region48: #{forward.11} parent=5 // pred_fallthru
      _
    %p1006 = scmp.le.s32.totalorder 2, %s13
    // Predicated region
    $region53: #{forward.11} parent=5 // pred_check
      %p1007 = pneg %p1006
    $region54: #{forward.11} parent=5 // pred_check_branch
      %1009 = sbr.rel (%p1007) target = $region56
    $region55: #{forward.11} parent=5 // pred_region
      %s1010 = ssub.s32 %s13, 2
      // Predicated region
      $region57: #{forward.11} parent=55 // pred_check
        %p1011 = pneg %p194
      $region58: #{forward.11} parent=55 // pred_check_branch
        %1013 = sbr.rel (%p1011) target = $region60
      $region59: #{forward.11} parent=55 // pred_region
        %p1014 = scmp.lt.s32.totalorder %s19, 3
        %s1015 = scalar_select %p1014, %s19, 3
        %s1016 = smul.addr %s1015, 4
        %s1017 = scalar_lea.vmem %s7, %s1016
      $region60: #{forward.11} parent=55 // pred_fallthru
        _
    $region56: #{forward.11} parent=5 // pred_fallthru
      _
  $region6: #{forward.11} parent=0 // loop_footer
    %s17 = sadd.s32 1, %s13
  $region7: #{forward.11} parent=0 // loop_footer_branch
    %12 = sbr.rel target = $region3
  $region8: #{forward.11} parent=0 // loop_exit
    _

// kernel: forward.8
$region0: #{forward.8}
  #allocation0 [shape = 'u32[]', space=smem, size = 0x4, offset = 0x4, fixed_abs, tag = 'smem constant byte address 0x4 - core index']
  #allocation1 [shape = 'u32[144,128]{1,0:T(1,128)}', space=vmem, size = 0x12000, scoped, tag = 'internal scratch']
  #allocation2 [shape = 'f32[18,128]{1,0:T(8,128)}', space=vmem, size = 0x3000, scoped, tag = 'scratch operand']
  %s0 = inlined_call_operand.vmem [shape: f32[2,16,48], index: 0, kind: input, shape index: {}]
  %s1 = inlined_call_operand.vmem [shape: bf16[3,48,128], index: 1, kind: input, shape index: {}]
  %s2 = inlined_call_operand.vmem [shape: f32[1,128], index: 2, kind: input, shape index: {}]
  %s3 = inlined_call_operand.vmem [shape: bf16[3,128,128], index: 3, kind: input, shape index: {}]
  %s4 = inlined_call_operand.vmem [shape: f32[1,128], index: 4, kind: input, shape index: {}]
  %s5 = inlined_call_operand.vmem [shape: bf16[3,128,48], index: 5, kind: input, shape index: {}]
  %s6 = inlined_call_operand.vmem [shape: f32[1,48], index: 6, kind: input, shape index: {}]
  %s7 = inlined_call_operand.vmem [shape: f32[2,16,48], index: 7, kind: output, shape index: {}]
  %s8 = sld [smem:[#allocation0]]
  $region61: #{forward.8} parent=0
    _
  %s10 = ssub.s32 1, %s8
  %s11 = scalar_select 0, %s10, %s8
  loop: start=0, step=1, limit=4
  $region2: #{forward.8} parent=0 // loop_pre_header
    _
  $region3: #{forward.8} parent=0 // loop_header
    %s13 = sphi 0, %s17
    %p14 = scmp.ge.s32.totalorder %s13, 4
    %s23 = sphi 0, %s25
    %s26 = sphi 0, %s23
    %s27 = sphi 0, %s26
    %s43 = sphi 0, %s27
    %s47 = sphi 0, %s47
    %s49 = sphi 0, %s47
    %s50 = sphi 0, %s49
    %s64 = sphi 0, %s50
    %s68 = sphi 0, %s68
    %s70 = sphi 0, %s68
    %s71 = sphi 0, %s70
    %s85 = sphi 0, %s71
    %s89 = sphi 0, %s89
    %s91 = sphi 0, %s89
    %s92 = sphi 0, %s91
    %s106 = sphi 0, %s92
    %s110 = sphi 0, %s110
    %s112 = sphi 0, %s110
    %s113 = sphi 0, %s112
    %s127 = sphi 0, %s113
    %s131 = sphi 0, %s131
    %s133 = sphi 0, %s131
    %s134 = sphi 0, %s133
    %s148 = sphi 0, %s134
    %s152 = sphi 0, %s152
    %s154 = sphi 0, %s152
    %s155 = sphi 0, %s154
    %s169 = sphi 0, %s155
    %s175 = sphi 0, %s177
    %s178 = sphi 0, %s175
    %s179 = sphi 0, %s178
    %s195 = sphi 0, %s179
  $region4: #{forward.8} parent=0 // loop_header_branch
    %16 = sbr.rel (%p14) target = $region8
  $region5: #{forward.8} parent=0 // loop_body
    %s18 = ssub.s32 %s13, 1
    %s19 = ssub.s32 %s13, 2
    %s20 = sadd.s32 %s13, 1
    %s21 = ssub.s32 %s13, %s20
    %p22 = scmp.eq.s32.totalorder %s21, 0
    %s24 = sadd.s32 %s23, 1
    %s25 = scalar_select %p22, %s23, %s24
    %p28 = pneg %p22
    %p29 = scmp.eq.s32.totalorder %s13, 1
    %p30 = por %p28, %p29
    %p31 = scmp.ne.s32.totalorder %s23, %s26
    %p32 = scmp.eq.s32.totalorder %s13, 0
    %p33 = por %p31, %p32
    %p34 = scmp.ne.s32.totalorder %s23, %s26
    %p35 = scmp.eq.s32.totalorder %s18, 1
    %p36 = por %p34, %p35
    %p37 = scmp.ne.s32.totalorder %s26, %s27
    %p38 = scmp.eq.s32.totalorder %s18, 0
    %p39 = por %p37, %p38
    %p40 = scmp.ne.s32.totalorder %s26, %s27
    %p41 = scmp.eq.s32.totalorder %s19, 1
    %p42 = por %p40, %p41
    %p44 = scmp.ne.s32.totalorder %s27, %s43
    %p45 = scmp.eq.s32.totalorder %s19, 0
    %p46 = por %p44, %p45
    %s48 = sadd.s32 %s47, 1
    %p51 = scmp.eq.s32.totalorder %s13, 1
    %p52 = scmp.ne.s32.totalorder %s47, %s49
    %p53 = scmp.eq.s32.totalorder %s13, 0
    %p54 = por %p52, %p53
    %p55 = scmp.ne.s32.totalorder %s47, %s49
    %p56 = scmp.eq.s32.totalorder %s18, 1
    %p57 = por %p55, %p56
    %p58 = scmp.ne.s32.totalorder %s49, %s50
    %p59 = scmp.eq.s32.totalorder %s18, 0
    %p60 = por %p58, %p59
    %p61 = scmp.ne.s32.totalorder %s49, %s50
    %p62 = scmp.eq.s32.totalorder %s19, 1
    %p63 = por %p61, %p62
    %p65 = scmp.ne.s32.totalorder %s50, %s64
    %p66 = scmp.eq.s32.totalorder %s19, 0
    %p67 = por %p65, %p66
    %s69 = sadd.s32 %s68, 1
    %p72 = scmp.eq.s32.totalorder %s13, 1
    %p73 = scmp.ne.s32.totalorder %s68, %s70
    %p74 = scmp.eq.s32.totalorder %s13, 0
    %p75 = por %p73, %p74
    %p76 = scmp.ne.s32.totalorder %s68, %s70
    %p77 = scmp.eq.s32.totalorder %s18, 1
    %p78 = por %p76, %p77
    %p79 = scmp.ne.s32.totalorder %s70, %s71
    %p80 = scmp.eq.s32.totalorder %s18, 0
    %p81 = por %p79, %p80
    %p82 = scmp.ne.s32.totalorder %s70, %s71
    %p83 = scmp.eq.s32.totalorder %s19, 1
    %p84 = por %p82, %p83
    %p86 = scmp.ne.s32.totalorder %s71, %s85
    %p87 = scmp.eq.s32.totalorder %s19, 0
    %p88 = por %p86, %p87
    %s90 = sadd.s32 %s89, 1
    %p93 = scmp.eq.s32.totalorder %s13, 1
    %p94 = scmp.ne.s32.totalorder %s89, %s91
    %p95 = scmp.eq.s32.totalorder %s13, 0
    %p96 = por %p94, %p95
    %p97 = scmp.ne.s32.totalorder %s89, %s91
    %p98 = scmp.eq.s32.totalorder %s18, 1
    %p99 = por %p97, %p98
    %p100 = scmp.ne.s32.totalorder %s91, %s92
    %p101 = scmp.eq.s32.totalorder %s18, 0
    %p102 = por %p100, %p101
    %p103 = scmp.ne.s32.totalorder %s91, %s92
    %p104 = scmp.eq.s32.totalorder %s19, 1
    %p105 = por %p103, %p104
    %p107 = scmp.ne.s32.totalorder %s92, %s106
    %p108 = scmp.eq.s32.totalorder %s19, 0
    %p109 = por %p107, %p108
    %s111 = sadd.s32 %s110, 1
    %p114 = scmp.eq.s32.totalorder %s13, 1
    %p115 = scmp.ne.s32.totalorder %s110, %s112
    %p116 = scmp.eq.s32.totalorder %s13, 0
    %p117 = por %p115, %p116
    %p118 = scmp.ne.s32.totalorder %s110, %s112
    %p119 = scmp.eq.s32.totalorder %s18, 1
    %p120 = por %p118, %p119
    %p121 = scmp.ne.s32.totalorder %s112, %s113
    %p122 = scmp.eq.s32.totalorder %s18, 0
    %p123 = por %p121, %p122
    %p124 = scmp.ne.s32.totalorder %s112, %s113
    %p125 = scmp.eq.s32.totalorder %s19, 1
    %p126 = por %p124, %p125
    %p128 = scmp.ne.s32.totalorder %s113, %s127
    %p129 = scmp.eq.s32.totalorder %s19, 0
    %p130 = por %p128, %p129
    %s132 = sadd.s32 %s131, 1
    %p135 = scmp.eq.s32.totalorder %s13, 1
    %p136 = scmp.ne.s32.totalorder %s131, %s133
    %p137 = scmp.eq.s32.totalorder %s13, 0
    %p138 = por %p136, %p137
    %p139 = scmp.ne.s32.totalorder %s131, %s133
    %p140 = scmp.eq.s32.totalorder %s18, 1
    %p141 = por %p139, %p140
    %p142 = scmp.ne.s32.totalorder %s133, %s134
    %p143 = scmp.eq.s32.totalorder %s18, 0
    %p144 = por %p142, %p143
    %p145 = scmp.ne.s32.totalorder %s133, %s134
    %p146 = scmp.eq.s32.totalorder %s19, 1
    %p147 = por %p145, %p146
    %p149 = scmp.ne.s32.totalorder %s134, %s148
    %p150 = scmp.eq.s32.totalorder %s19, 0
    %p151 = por %p149, %p150
    %s153 = sadd.s32 %s152, 1
    %p156 = scmp.eq.s32.totalorder %s13, 1
    %p157 = scmp.ne.s32.totalorder %s152, %s154
    %p158 = scmp.eq.s32.totalorder %s13, 0
    %p159 = por %p157, %p158
    %p160 = scmp.ne.s32.totalorder %s152, %s154
    %p161 = scmp.eq.s32.totalorder %s18, 1
    %p162 = por %p160, %p161
    %p163 = scmp.ne.s32.totalorder %s154, %s155
    %p164 = scmp.eq.s32.totalorder %s18, 0
    %p165 = por %p163, %p164
    %p166 = scmp.ne.s32.totalorder %s154, %s155
    %p167 = scmp.eq.s32.totalorder %s19, 1
    %p168 = por %p166, %p167
    %p170 = scmp.ne.s32.totalorder %s155, %s169
    %p171 = scmp.eq.s32.totalorder %s19, 0
    %p172 = por %p170, %p171
    %s173 = ssub.s32 %s13, %s20
    %p174 = scmp.eq.s32.totalorder %s173, 0
    %s176 = sadd.s32 %s175, 1
    %s177 = scalar_select %p174, %s175, %s176
    %p180 = pneg %p174
    %p181 = scmp.eq.s32.totalorder %s13, 1
    %p182 = por %p180, %p181
    %p183 = scmp.ne.s32.totalorder %s175, %s178
    %p184 = scmp.eq.s32.totalorder %s13, 0
    %p185 = por %p183, %p184
    %p186 = scmp.ne.s32.totalorder %s175, %s178
    %p187 = scmp.eq.s32.totalorder %s18, 1
    %p188 = por %p186, %p187
    %p189 = scmp.ne.s32.totalorder %s178, %s179
    %p190 = scmp.eq.s32.totalorder %s18, 0
    %p191 = por %p189, %p190
    %p192 = scmp.ne.s32.totalorder %s178, %s179
    %p193 = scmp.eq.s32.totalorder %s19, 1
    %p194 = por %p192, %p193
    %p196 = scmp.ne.s32.totalorder %s179, %s195
    %p197 = scmp.eq.s32.totalorder %s19, 0
    %p198 = por %p196, %p197
    %p199 = scmp.le.s32.totalorder 1, %s13
    %p200 = scmp.lt.s32.totalorder %s13, 3
    %p201 = pnand %p199, %p200
    %p202 = pneg %p201
    // Predicated region
    $region9: #{forward.8} parent=5 // pred_check
      _
    $region10: #{forward.8} parent=5 // pred_check_branch
      %204 = sbr.rel (%p201) target = $region12
    $region11: #{forward.8} parent=5 // pred_region
      %s205 = ssub.s32 %s13, 1
      // Predicated region
      $region13: #{forward.8} parent=11 // pred_check
        %p206 = pneg %p60
      $region14: #{forward.8} parent=11 // pred_check_branch
        %208 = sbr.rel (%p206) target = $region16
      $region15: #{forward.8} parent=11 // pred_region
        _
      $region16: #{forward.8} parent=11 // pred_fallthru
        _
      // Predicated region
      $region17: #{forward.8} parent=11 // pred_check
        %p209 = pneg %p81
      $region18: #{forward.8} parent=11 // pred_check_branch
        %211 = sbr.rel (%p209) target = $region20
      $region19: #{forward.8} parent=11 // pred_region
        _
      $region20: #{forward.8} parent=11 // pred_fallthru
        _
      // Predicated region
      $region21: #{forward.8} parent=11 // pred_check
        %p212 = pneg %p102
      $region22: #{forward.8} parent=11 // pred_check_branch
        %214 = sbr.rel (%p212) target = $region24
      $region23: #{forward.8} parent=11 // pred_region
        _
      $region24: #{forward.8} parent=11 // pred_fallthru
        _
      // Predicated region
      $region25: #{forward.8} parent=11 // pred_check
        %p215 = pneg %p123
      $region26: #{forward.8} parent=11 // pred_check_branch
        %217 = sbr.rel (%p215) target = $region28
      $region27: #{forward.8} parent=11 // pred_region
        _
      $region28: #{forward.8} parent=11 // pred_fallthru
        _
      // Predicated region
      $region29: #{forward.8} parent=11 // pred_check
        %p218 = pneg %p144
      $region30: #{forward.8} parent=11 // pred_check_branch
        %220 = sbr.rel (%p218) target = $region32
      $region31: #{forward.8} parent=11 // pred_region
        _
      $region32: #{forward.8} parent=11 // pred_fallthru
        _
      // Predicated region
      $region33: #{forward.8} parent=11 // pred_check
        %p221 = pneg %p165
      $region34: #{forward.8} parent=11 // pred_check_branch
        %223 = sbr.rel (%p221) target = $region36
      $region35: #{forward.8} parent=11 // pred_region
        _
      $region36: #{forward.8} parent=11 // pred_fallthru
        _
    $region12: #{forward.8} parent=5 // pred_fallthru
      _
    %p224 = scmp.lt.s32.totalorder %s13, 2
    // Predicated region
    $region37: #{forward.8} parent=5 // pred_check
      %p225 = pneg %p224
    $region38: #{forward.8} parent=5 // pred_check_branch
      %227 = sbr.rel (%p225) target = $region40
    $region39: #{forward.8} parent=5 // pred_region
      // Predicated region
      $region41: #{forward.8} parent=39 // pred_check
        %p228 = pneg %p33
      $region42: #{forward.8} parent=39 // pred_check_branch
        %230 = sbr.rel (%p228) target = $region44
      $region43: #{forward.8} parent=39 // pred_region
        %p231 = scmp.lt.s32.totalorder %s13, 1
        %s232 = scalar_select %p231, %s13, 1
        %s233 = smul.addr %s232, 2
        %s234 = smul.addr %s233, 8
        %s235 = scalar_lea.vmem %s0, %s234
      $region44: #{forward.8} parent=39 // pred_fallthru
        _
    $region40: #{forward.8} parent=5 // pred_fallthru
      _
    %p236 = scmp.le.s32.totalorder 1, %s13
    %p237 = scmp.lt.s32.totalorder %s13, 3
    %p238 = pnand %p236, %p237
    %p239 = pneg %p238
    // Predicated region
    $region45: #{forward.8} parent=5 // pred_check
      _
    $region46: #{forward.8} parent=5 // pred_check_branch
      %241 = sbr.rel (%p238) target = $region48
    $region47: #{forward.8} parent=5 // pred_region
      %s242 = ssub.s32 %s13, 1
      %p243 = scmp.lt.s32.totalorder %s18, 1
      %s244 = scalar_select %p243, %s18, 1
      %s245 = smul.addr %s244, 2
      %s246 = smul.addr %s245, 8
      %s247 = scalar_lea.vmem %s0, %s246
      %p248 = pneg %p39
      %p249 = pneg %p36
      %p250 = pneg %p60
      %p251 = pneg %p57
      %p252 = pneg %p81
      %p253 = pneg %p78
      %p254 = pneg %p102
      %p255 = pneg %p99
      %p256 = pneg %p123
      %p257 = pneg %p120
      %p258 = pneg %p144
      %p259 = pneg %p141
      %p260 = pneg %p165
      %p261 = pneg %p162
      %p262 = pneg %p191
      %p263 = pneg %p188
      %p264 = scmp.lt.s32.totalorder %s18, 1
      %s265 = scalar_select %p264, %s18, 1
      %s266 = smul.addr %s265, 2
      %s267 = smul.addr %s266, 8
      %s268 = scalar_lea.vmem %s7, %s267
      %p269 = scmp.lt.s32.totalorder %s18, 1
      %s270 = scalar_select %p269, %s18, 1
      %s271 = smul.addr %s270, 2
      %s272 = smul.addr %s271, 8
      %s273 = scalar_lea.vmem %s0, %s272
      %p274 = scmp.lt.s32.totalorder %s18, 1
      %s275 = scalar_select %p274, %s18, 1
      %s276 = smul.addr %s275, 2
      %s277 = smul.addr %s276, 8
      %s278 = scalar_lea.vmem %s7, %s277
      %280 = vst [vmem:[#allocation2] sm:$0xff] 0.0
      %281 = vst [vmem:[#allocation2 + $0x8] sm:$0xff] 0.0
      %282 = vst [vmem:[#allocation2 + $0x10] sm:$0x3] 0.0
      %v283 = vld [vmem:[%s273] sm:$0xff]
      %v284 = vld [vmem:[%s273 + $0x8] sm:$0xff]
      %vm285 = vcmask 392192
      %286 = vst.msk [vmem:[#allocation2 + $0x1] sm:$0xff] %vm285, %v283
      %287 = vst.msk [vmem:[#allocation2 + $0x9] sm:$0xff] %vm285, %v284
      %v288 = vld [vmem:[#allocation2] sm:$0xff]
      %v289 = vld [vmem:[#allocation2 + $0x8] sm:$0xff]
      %v290 = vpack.c.bf16 %v289, %v288
      %v291 = vld [vmem:[%s1] sm:$0xf]
      %v292 = vld [vmem:[%s1 + $0x4] sm:$0xf]
      %v293 = vld [vmem:[%s1 + $0x8] sm:$0xf]
      %v294 = vld [vmem:[%s1 + $0xc] sm:$0xf]
      %v295 = vld [vmem:[%s1 + $0x10] sm:$0xf]
      %v296 = vld [vmem:[%s1 + $0x14] sm:$0xf]
      %v297 = vld [vmem:[#allocation2 + $0x1] sm:$0xff]
      %v298 = vld [vmem:[#allocation2 + $0x9] sm:$0xff]
      %v299 = vpack.c.bf16 %v298, %v297
      %s300 = scalar_lea.vmem %s1, 24
      %v301 = vld [vmem:[%s300] sm:$0xf]
      %v302 = vld [vmem:[%s300 + $0x4] sm:$0xf]
      %v303 = vld [vmem:[%s300 + $0x8] sm:$0xf]
      %v304 = vld [vmem:[%s300 + $0xc] sm:$0xf]
      %v305 = vld [vmem:[%s300 + $0x10] sm:$0xf]
      %v306 = vld [vmem:[%s300 + $0x14] sm:$0xf]
      %v313 = vunpack.c.l.b16 %v301
      %v314 = vunpack.c.l.b16 %v302
      %v315 = vunpack.c.l.b16 %v303
      %v316 = vunpack.c.l.b16 %v304
      %v317 = vunpack.c.l.b16 %v305
      %v318 = vunpack.c.l.b16 %v306
      %v319 = vpack.c.b16 %v314, %v313
      %v320 = vpack.c.b16 %v316, %v315
      %v321 = vpack.c.b16 %v318, %v317
      %v326 = vsel %vm285, %v299, 0
      %328 = vmatprep.subr.bf16.mxu0 0
      %329 = vmatpush1.bf16.msra.mxu0 %v319
      %330 = vmatprep.subr.bf16.mxu0 0
      %331 = vmatpush1.bf16.msra.mxu0 %v320
      %332 = vmatprep.subr.bf16.mxu0 0
      %333 = vmatpush1.bf16.msra.mxu0 %v321
      %334 = vmatprep.subr.bf16.mxu0 0
      %335 = vmatpush1.bf16.msra.mxu0 0
      %336 = vmatprep.subr.bf16.mxu0 0
      %337 = vmatpush1.bf16.msra.mxu0 0
      %338 = vmatprep.subr.bf16.mxu0 0
      %339 = vmatpush1.bf16.msra.mxu0 0
      %340 = vmatprep.subr.bf16.mxu0 0
      %341 = vmatpush1.bf16.msra.mxu0 0
      %342 = vmatprep.subr.bf16.mxu0 0
      %343 = vmatpush1.bf16.msra.mxu0 0
      %344 = vmatprep.subr.bf16.mxu0 0
      %345 = vmatpush1.bf16.msra.mxu0 0
      %346 = vmatprep.subr.bf16.mxu0 0
      %347 = vmatpush1.bf16.msra.mxu0 0
      %348 = vmatprep.subr.bf16.mxu0 0
      %349 = vmatpush1.bf16.msra.mxu0 0
      %350 = vmatprep.subr.bf16.mxu0 0
      %351 = vmatpush1.bf16.msra.mxu0 0
      %352 = vmatprep.subr.bf16.mxu0 0
      %353 = vmatpush1.bf16.msra.mxu0 0
      %354 = vmatprep.subr.bf16.mxu0 0
      %355 = vmatpush1.bf16.msra.mxu0 0
      %356 = vmatprep.subr.bf16.mxu0 0
      %357 = vmatpush1.bf16.msra.mxu0 0
      %358 = vmatprep.subr.bf16.mxu0 0
      %359 = vmatpush1.bf16.msra.mxu0 0
      %360 = vmatprep.mubr.bf16.mxu0 0
      %361 = vmatmul.mubr.bf16.gmra.mrb[0].mxu0 %v326
      %v362 = vpop.f32.mrb[0].mxu0
      %v363 = vadd.f32 0.0, %v362
      %v364 = vpop.f32.mrb[0].mxu0
      %v365 = vpop.f32.mrb[0].mxu0
      %v366 = vadd.f32 0.0, %v365
      %v367 = vpop.f32.mrb[0].mxu0
      %368 = vdwg.mxu0
      %v375 = vunpack.c.l.b16 %v291
      %v376 = vunpack.c.l.b16 %v292
      %v377 = vunpack.c.l.b16 %v293
      %v378 = vunpack.c.l.b16 %v294
      %v379 = vunpack.c.l.b16 %v295
      %v380 = vunpack.c.l.b16 %v296
      %v381 = vpack.c.b16 %v376, %v375
      %v382 = vpack.c.b16 %v378, %v377
      %v383 = vpack.c.b16 %v380, %v379
      %v388 = vsel %vm285, %v290, 0
      %390 = vmatprep.subr.bf16.mxu0 0
      %391 = vmatpush1.bf16.msra.mxu0 %v381
      %392 = vmatprep.subr.bf16.mxu0 0
      %393 = vmatpush1.bf16.msra.mxu0 %v382
      %394 = vmatprep.subr.bf16.mxu0 0
      %395 = vmatpush1.bf16.msra.mxu0 %v383
      %396 = vmatprep.subr.bf16.mxu0 0
      %397 = vmatpush1.bf16.msra.mxu0 0
      %398 = vmatprep.subr.bf16.mxu0 0
      %399 = vmatpush1.bf16.msra.mxu0 0
      %400 = vmatprep.subr.bf16.mxu0 0
      %401 = vmatpush1.bf16.msra.mxu0 0
      %402 = vmatprep.subr.bf16.mxu0 0
      %403 = vmatpush1.bf16.msra.mxu0 0
      %404 = vmatprep.subr.bf16.mxu0 0
      %405 = vmatpush1.bf16.msra.mxu0 0
      %406 = vmatprep.subr.bf16.mxu0 0
      %407 = vmatpush1.bf16.msra.mxu0 0
      %408 = vmatprep.subr.bf16.mxu0 0
      %409 = vmatpush1.bf16.msra.mxu0 0
      %410 = vmatprep.subr.bf16.mxu0 0
      %411 = vmatpush1.bf16.msra.mxu0 0
      %412 = vmatprep.subr.bf16.mxu0 0
      %413 = vmatpush1.bf16.msra.mxu0 0
      %414 = vmatprep.subr.bf16.mxu0 0
      %415 = vmatpush1.bf16.msra.mxu0 0
      %416 = vmatprep.subr.bf16.mxu0 0
      %417 = vmatpush1.bf16.msra.mxu0 0
      %418 = vmatprep.subr.bf16.mxu0 0
      %419 = vmatpush1.bf16.msra.mxu0 0
      %420 = vmatprep.subr.bf16.mxu0 0
      %421 = vmatpush1.bf16.msra.mxu0 0
      %422 = vmatprep.mubr.bf16.mxu0 0
      %423 = vmatmul.mubr.bf16.gmra.mrb[0].mxu0 %v388
      %v424 = vpop.f32.mrb[0].mxu0
      %v425 = vadd.f32 %v363, %v424
      %v426 = vpop.f32.mrb[0].mxu0
      %v427 = vpop.f32.mrb[0].mxu0
      %v428 = vadd.f32 %v366, %v427
      %v429 = vpop.f32.mrb[0].mxu0
      %430 = vdwg.mxu0
      %v431 = vld [vmem:[#allocation2 + $0x2] sm:$0xff]
      %v432 = vld [vmem:[#allocation2 + $0xa] sm:$0xff]
      %v433 = vpack.c.bf16 %v432, %v431
      %s434 = scalar_lea.vmem %s1, 48
      %v435 = vld [vmem:[%s434] sm:$0xf]
      %v436 = vld [vmem:[%s434 + $0x4] sm:$0xf]
      %v437 = vld [vmem:[%s434 + $0x8] sm:$0xf]
      %v438 = vld [vmem:[%s434 + $0xc] sm:$0xf]
      %v439 = vld [vmem:[%s434 + $0x10] sm:$0xf]
      %v440 = vld [vmem:[%s434 + $0x14] sm:$0xf]
      %v447 = vunpack.c.l.b16 %v435
      %v448 = vunpack.c.l.b16 %v436
      %v449 = vunpack.c.l.b16 %v437
      %v450 = vunpack.c.l.b16 %v438
      %v451 = vunpack.c.l.b16 %v439
      %v452 = vunpack.c.l.b16 %v440
      %v453 = vpack.c.b16 %v448, %v447
      %v454 = vpack.c.b16 %v450, %v449
      %v455 = vpack.c.b16 %v452, %v451
      %v460 = vsel %vm285, %v433, 0
      %462 = vmatprep.subr.bf16.mxu0 0
      %463 = vmatpush1.bf16.msra.mxu0 %v453
      %464 = vmatprep.subr.bf16.mxu0 0
      %465 = vmatpush1.bf16.msra.mxu0 %v454
      %466 = vmatprep.subr.bf16.mxu0 0
      %467 = vmatpush1.bf16.msra.mxu0 %v455
      %468 = vmatprep.subr.bf16.mxu0 0
      %469 = vmatpush1.bf16.msra.mxu0 0
      %470 = vmatprep.subr.bf16.mxu0 0
      %471 = vmatpush1.bf16.msra.mxu0 0
      %472 = vmatprep.subr.bf16.mxu0 0
      %473 = vmatpush1.bf16.msra.mxu0 0
      %474 = vmatprep.subr.bf16.mxu0 0
      %475 = vmatpush1.bf16.msra.mxu0 0
      %476 = vmatprep.subr.bf16.mxu0 0
      %477 = vmatpush1.bf16.msra.mxu0 0
      %478 = vmatprep.subr.bf16.mxu0 0
      %479 = vmatpush1.bf16.msra.mxu0 0
      %480 = vmatprep.subr.bf16.mxu0 0
      %481 = vmatpush1.bf16.msra.mxu0 0
      %482 = vmatprep.subr.bf16.mxu0 0
      %483 = vmatpush1.bf16.msra.mxu0 0
      %484 = vmatprep.subr.bf16.mxu0 0
      %485 = vmatpush1.bf16.msra.mxu0 0
      %486 = vmatprep.subr.bf16.mxu0 0
      %487 = vmatpush1.bf16.msra.mxu0 0
      %488 = vmatprep.subr.bf16.mxu0 0
      %489 = vmatpush1.bf16.msra.mxu0 0
      %490 = vmatprep.subr.bf16.mxu0 0
      %491 = vmatpush1.bf16.msra.mxu0 0
      %492 = vmatprep.subr.bf16.mxu0 0
      %493 = vmatpush1.bf16.msra.mxu0 0
      %494 = vmatprep.mubr.bf16.mxu0 0
      %495 = vmatmul.mubr.bf16.gmra.mrb[0].mxu0 %v460
      %v496 = vpop.f32.mrb[0].mxu0
      %v497 = vadd.f32 0.0, %v496
      %v498 = vpop.f32.mrb[0].mxu0
      %v499 = vpop.f32.mrb[0].mxu0
      %v500 = vadd.f32 0.0, %v499
      %v501 = vpop.f32.mrb[0].mxu0
      %502 = vdwg.mxu0
      %v503 = vadd.f32 %v425, %v497
      %v504 = vadd.f32 %v428, %v500
      %v505 = vld [vmem:[%s2] sm:$0x1]
      %v507 = vlaneseq
      %v508 = vshrl.u32 %v507, 7
      %v509 = vsub.s32 0, %v508
      %v510 = vrot.slane %v505, %v509
      %v512 = vadd.f32 %v503, %v510
      %v513 = vadd.f32 %v504, %v510
      %v514 = vmax.f32 %v512, 0.0
      %v515 = vmax.f32 %v513, 0.0
      %516 = vst [vmem:[#allocation2] sm:$0xff] 0.0
      %517 = vst [vmem:[#allocation2 + $0x8] sm:$0xff] 0.0
      %518 = vst [vmem:[#allocation2 + $0x10] sm:$0x3] 0.0
      %519 = vst [vmem:[#allocation2 + $0x1] sm:$0xff] %v514
      %520 = vst [vmem:[#allocation2 + $0x9] sm:$0xff] %v515
      %v521 = vld [vmem:[#allocation2] sm:$0xff]
      %v522 = vld [vmem:[#allocation2 + $0x8] sm:$0xff]
      %v523 = vpack.c.bf16 %v522, %v521
      %v524 = vld [vmem:[%s3] sm:$0xf]
      %v525 = vld [vmem:[%s3 + $0x4] sm:$0xf]
      %v526 = vld [vmem:[%s3 + $0x8] sm:$0xf]
      %v527 = vld [vmem:[%s3 + $0xc] sm:$0xf]
      %v528 = vld [vmem:[%s3 + $0x10] sm:$0xf]
      %v529 = vld [vmem:[%s3 + $0x14] sm:$0xf]
      %v530 = vld [vmem:[%s3 + $0x18] sm:$0xf]
      %v531 = vld [vmem:[%s3 + $0x1c] sm:$0xf]
      %v532 = vld [vmem:[%s3 + $0x20] sm:$0xf]
      %v533 = vld [vmem:[%s3 + $0x24] sm:$0xf]
      %v534 = vld [vmem:[%s3 + $0x28] sm:$0xf]
      %v535 = vld [vmem:[%s3 + $0x2c] sm:$0xf]
      %v536 = vld [vmem:[%s3 + $0x30] sm:$0xf]
      %v537 = vld [vmem:[%s3 + $0x34] sm:$0xf]
      %v538 = vld [vmem:[%s3 + $0x38] sm:$0xf]
      %v539 = vld [vmem:[%s3 + $0x3c] sm:$0xf]
      %v540 = vld [vmem:[#allocation2 + $0x1] sm:$0xff]
      %v541 = vld [vmem:[#allocation2 + $0x9] sm:$0xff]
      %v542 = vpack.c.bf16 %v541, %v540
      %s543 = scalar_lea.vmem %s3, 64
      %v544 = vld [vmem:[%s543] sm:$0xf]
      %v545 = vld [vmem:[%s543 + $0x4] sm:$0xf]
      %v546 = vld [vmem:[%s543 + $0x8] sm:$0xf]
      %v547 = vld [vmem:[%s543 + $0xc] sm:$0xf]
      %v548 = vld [vmem:[%s543 + $0x10] sm:$0xf]
      %v549 = vld [vmem:[%s543 + $0x14] sm:$0xf]
      %v550 = vld [vmem:[%s543 + $0x18] sm:$0xf]
      %v551 = vld [vmem:[%s543 + $0x1c] sm:$0xf]
      %v552 = vld [vmem:[%s543 + $0x20] sm:$0xf]
      %v553 = vld [vmem:[%s543 + $0x24] sm:$0xf]
      %v554 = vld [vmem:[%s543 + $0x28] sm:$0xf]
      %v555 = vld [vmem:[%s543 + $0x2c] sm:$0xf]
      %v556 = vld [vmem:[%s543 + $0x30] sm:$0xf]
      %v557 = vld [vmem:[%s543 + $0x34] sm:$0xf]
      %v558 = vld [vmem:[%s543 + $0x38] sm:$0xf]
      %v559 = vld [vmem:[%s543 + $0x3c] sm:$0xf]
      %v576 = vunpack.c.l.b16 %v544
      %v577 = vunpack.c.l.b16 %v545
      %v578 = vunpack.c.l.b16 %v546
      %v579 = vunpack.c.l.b16 %v547
      %v580 = vunpack.c.l.b16 %v548
      %v581 = vunpack.c.l.b16 %v549
      %v582 = vunpack.c.l.b16 %v550
      %v583 = vunpack.c.l.b16 %v551
      %v584 = vunpack.c.l.b16 %v552
      %v585 = vunpack.c.l.b16 %v553
      %v586 = vunpack.c.l.b16 %v554
      %v587 = vunpack.c.l.b16 %v555
      %v588 = vunpack.c.l.b16 %v556
      %v589 = vunpack.c.l.b16 %v557
      %v590 = vunpack.c.l.b16 %v558
      %v591 = vunpack.c.l.b16 %v559
      %v592 = vpack.c.b16 %v577, %v576
      %v593 = vpack.c.b16 %v579, %v578
      %v594 = vpack.c.b16 %v581, %v580
      %v595 = vpack.c.b16 %v583, %v582
      %v596 = vpack.c.b16 %v585, %v584
      %v597 = vpack.c.b16 %v587, %v586
      %v598 = vpack.c.b16 %v589, %v588
      %v599 = vpack.c.b16 %v591, %v590
      %608 = vmatprep.subr.bf16.mxu0 0
      %609 = vmatpush1.bf16.msra.mxu0 %v592
      %610 = vmatprep.subr.bf16.mxu0 0
      %611 = vmatpush1.bf16.msra.mxu0 %v593
      %612 = vmatprep.subr.bf16.mxu0 0
      %613 = vmatpush1.bf16.msra.mxu0 %v594
      %614 = vmatprep.subr.bf16.mxu0 0
      %615 = vmatpush1.bf16.msra.mxu0 %v595
      %616 = vmatprep.subr.bf16.mxu0 0
      %617 = vmatpush1.bf16.msra.mxu0 %v596
      %618 = vmatprep.subr.bf16.mxu0 0
      %619 = vmatpush1.bf16.msra.mxu0 %v597
      %620 = vmatprep.subr.bf16.mxu0 0
      %621 = vmatpush1.bf16.msra.mxu0 %v598
      %622 = vmatprep.subr.bf16.mxu0 0
      %623 = vmatpush1.bf16.msra.mxu0 %v599
      %624 = vmatprep.subr.bf16.mxu0 0
      %625 = vmatpush1.bf16.msra.mxu0 0
      %626 = vmatprep.subr.bf16.mxu0 0
      %627 = vmatpush1.bf16.msra.mxu0 0
      %628 = vmatprep.subr.bf16.mxu0 0
      %629 = vmatpush1.bf16.msra.mxu0 0
      %630 = vmatprep.subr.bf16.mxu0 0
      %631 = vmatpush1.bf16.msra.mxu0 0
      %632 = vmatprep.subr.bf16.mxu0 0
      %633 = vmatpush1.bf16.msra.mxu0 0
      %634 = vmatprep.subr.bf16.mxu0 0
      %635 = vmatpush1.bf16.msra.mxu0 0
      %636 = vmatprep.subr.bf16.mxu0 0
      %637 = vmatpush1.bf16.msra.mxu0 0
      %638 = vmatprep.subr.bf16.mxu0 0
      %639 = vmatpush1.bf16.msra.mxu0 0
      %640 = vmatprep.mubr.bf16.mxu0 0
      %641 = vmatmul.mubr.bf16.gmra.mrb[0].mxu0 %v542
      %v642 = vpop.f32.mrb[0].mxu0
      %v643 = vadd.f32 0.0, %v642
      %v644 = vpop.f32.mrb[0].mxu0
      %v645 = vpop.f32.mrb[0].mxu0
      %v646 = vadd.f32 0.0, %v645
      %v647 = vpop.f32.mrb[0].mxu0
      %648 = vdwg.mxu0
      %v665 = vunpack.c.l.b16 %v524
      %v666 = vunpack.c.l.b16 %v525
      %v667 = vunpack.c.l.b16 %v526
      %v668 = vunpack.c.l.b16 %v527
      %v669 = vunpack.c.l.b16 %v528
      %v670 = vunpack.c.l.b16 %v529
      %v671 = vunpack.c.l.b16 %v530
      %v672 = vunpack.c.l.b16 %v531
      %v673 = vunpack.c.l.b16 %v532
      %v674 = vunpack.c.l.b16 %v533
      %v675 = vunpack.c.l.b16 %v534
      %v676 = vunpack.c.l.b16 %v535
      %v677 = vunpack.c.l.b16 %v536
      %v678 = vunpack.c.l.b16 %v537
      %v679 = vunpack.c.l.b16 %v538
      %v680 = vunpack.c.l.b16 %v539
      %v681 = vpack.c.b16 %v666, %v665
      %v682 = vpack.c.b16 %v668, %v667
      %v683 = vpack.c.b16 %v670, %v669
      %v684 = vpack.c.b16 %v672, %v671
      %v685 = vpack.c.b16 %v674, %v673
      %v686 = vpack.c.b16 %v676, %v675
      %v687 = vpack.c.b16 %v678, %v677
      %v688 = vpack.c.b16 %v680, %v679
      %697 = vmatprep.subr.bf16.mxu0 0
      %698 = vmatpush1.bf16.msra.mxu0 %v681
      %699 = vmatprep.subr.bf16.mxu0 0
      %700 = vmatpush1.bf16.msra.mxu0 %v682
      %701 = vmatprep.subr.bf16.mxu0 0
      %702 = vmatpush1.bf16.msra.mxu0 %v683
      %703 = vmatprep.subr.bf16.mxu0 0
      %704 = vmatpush1.bf16.msra.mxu0 %v684
      %705 = vmatprep.subr.bf16.mxu0 0
      %706 = vmatpush1.bf16.msra.mxu0 %v685
      %707 = vmatprep.subr.bf16.mxu0 0
      %708 = vmatpush1.bf16.msra.mxu0 %v686
      %709 = vmatprep.subr.bf16.mxu0 0
      %710 = vmatpush1.bf16.msra.mxu0 %v687
      %711 = vmatprep.subr.bf16.mxu0 0
      %712 = vmatpush1.bf16.msra.mxu0 %v688
      %713 = vmatprep.subr.bf16.mxu0 0
      %714 = vmatpush1.bf16.msra.mxu0 0
      %715 = vmatprep.subr.bf16.mxu0 0
      %716 = vmatpush1.bf16.msra.mxu0 0
      %717 = vmatprep.subr.bf16.mxu0 0
      %718 = vmatpush1.bf16.msra.mxu0 0
      %719 = vmatprep.subr.bf16.mxu0 0
      %720 = vmatpush1.bf16.msra.mxu0 0
      %721 = vmatprep.subr.bf16.mxu0 0
      %722 = vmatpush1.bf16.msra.mxu0 0
      %723 = vmatprep.subr.bf16.mxu0 0
      %724 = vmatpush1.bf16.msra.mxu0 0
      %725 = vmatprep.subr.bf16.mxu0 0
      %726 = vmatpush1.bf16.msra.mxu0 0
      %727 = vmatprep.subr.bf16.mxu0 0
      %728 = vmatpush1.bf16.msra.mxu0 0
      %729 = vmatprep.mubr.bf16.mxu0 0
      %730 = vmatmul.mubr.bf16.gmra.mrb[0].mxu0 %v523
      %v731 = vpop.f32.mrb[0].mxu0
      %v732 = vadd.f32 %v643, %v731
      %v733 = vpop.f32.mrb[0].mxu0
      %v734 = vpop.f32.mrb[0].mxu0
      %v735 = vadd.f32 %v646, %v734
      %v736 = vpop.f32.mrb[0].mxu0
      %737 = vdwg.mxu0
      %v738 = vld [vmem:[#allocation2 + $0x2] sm:$0xff]
      %v739 = vld [vmem:[#allocation2 + $0xa] sm:$0xff]
      %v740 = vpack.c.bf16 %v739, %v738
      %s741 = scalar_lea.vmem %s3, 128
      %v742 = vld [vmem:[%s741] sm:$0xf]
      %v743 = vld [vmem:[%s741 + $0x4] sm:$0xf]
      %v744 = vld [vmem:[%s741 + $0x8] sm:$0xf]
      %v745 = vld [vmem:[%s741 + $0xc] sm:$0xf]
      %v746 = vld [vmem:[%s741 + $0x10] sm:$0xf]
      %v747 = vld [vmem:[%s741 + $0x14] sm:$0xf]
      %v748 = vld [vmem:[%s741 + $0x18] sm:$0xf]
      %v749 = vld [vmem:[%s741 + $0x1c] sm:$0xf]
      %v750 = vld [vmem:[%s741 + $0x20] sm:$0xf]
      %v751 = vld [vmem:[%s741 + $0x24] sm:$0xf]
      %v752 = vld [vmem:[%s741 + $0x28] sm:$0xf]
      %v753 = vld [vmem:[%s741 + $0x2c] sm:$0xf]
      %v754 = vld [vmem:[%s741 + $0x30] sm:$0xf]
      %v755 = vld [vmem:[%s741 + $0x34] sm:$0xf]
      %v756 = vld [vmem:[%s741 + $0x38] sm:$0xf]
      %v757 = vld [vmem:[%s741 + $0x3c] sm:$0xf]
      %v774 = vunpack.c.l.b16 %v742
      %v775 = vunpack.c.l.b16 %v743
      %v776 = vunpack.c.l.b16 %v744
      %v777 = vunpack.c.l.b16 %v745
      %v778 = vunpack.c.l.b16 %v746
      %v779 = vunpack.c.l.b16 %v747
      %v780 = vunpack.c.l.b16 %v748
      %v781 = vunpack.c.l.b16 %v749
      %v782 = vunpack.c.l.b16 %v750
      %v783 = vunpack.c.l.b16 %v751
      %v784 = vunpack.c.l.b16 %v752
      %v785 = vunpack.c.l.b16 %v753
      %v786 = vunpack.c.l.b16 %v754
      %v787 = vunpack.c.l.b16 %v755
      %v788 = vunpack.c.l.b16 %v756
      %v789 = vunpack.c.l.b16 %v757
      %v790 = vpack.c.b16 %v775, %v774
      %v791 = vpack.c.b16 %v777, %v776
      %v792 = vpack.c.b16 %v779, %v778
      %v793 = vpack.c.b16 %v781, %v780
      %v794 = vpack.c.b16 %v783, %v782
      %v795 = vpack.c.b16 %v785, %v784
      %v796 = vpack.c.b16 %v787, %v786
      %v797 = vpack.c.b16 %v789, %v788
      %806 = vmatprep.subr.bf16.mxu0 0
      %807 = vmatpush1.bf16.msra.mxu0 %v790
      %808 = vmatprep.subr.bf16.mxu0 0
      %809 = vmatpush1.bf16.msra.mxu0 %v791
      %810 = vmatprep.subr.bf16.mxu0 0
      %811 = vmatpush1.bf16.msra.mxu0 %v792
      %812 = vmatprep.subr.bf16.mxu0 0
      %813 = vmatpush1.bf16.msra.mxu0 %v793
      %814 = vmatprep.subr.bf16.mxu0 0
      %815 = vmatpush1.bf16.msra.mxu0 %v794
      %816 = vmatprep.subr.bf16.mxu0 0
      %817 = vmatpush1.bf16.msra.mxu0 %v795
      %818 = vmatprep.subr.bf16.mxu0 0
      %819 = vmatpush1.bf16.msra.mxu0 %v796
      %820 = vmatprep.subr.bf16.mxu0 0
      %821 = vmatpush1.bf16.msra.mxu0 %v797
      %822 = vmatprep.subr.bf16.mxu0 0
      %823 = vmatpush1.bf16.msra.mxu0 0
      %824 = vmatprep.subr.bf16.mxu0 0
      %825 = vmatpush1.bf16.msra.mxu0 0
      %826 = vmatprep.subr.bf16.mxu0 0
      %827 = vmatpush1.bf16.msra.mxu0 0
      %828 = vmatprep.subr.bf16.mxu0 0
      %829 = vmatpush1.bf16.msra.mxu0 0
      %830 = vmatprep.subr.bf16.mxu0 0
      %831 = vmatpush1.bf16.msra.mxu0 0
      %832 = vmatprep.subr.bf16.mxu0 0
      %833 = vmatpush1.bf16.msra.mxu0 0
      %834 = vmatprep.subr.bf16.mxu0 0
      %835 = vmatpush1.bf16.msra.mxu0 0
      %836 = vmatprep.subr.bf16.mxu0 0
      %837 = vmatpush1.bf16.msra.mxu0 0
      %838 = vmatprep.mubr.bf16.mxu0 0
      %839 = vmatmul.mubr.bf16.gmra.mrb[0].mxu0 %v740
      %v840 = vpop.f32.mrb[0].mxu0
      %v841 = vadd.f32 0.0, %v840
      %v842 = vpop.f32.mrb[0].mxu0
      %v843 = vpop.f32.mrb[0].mxu0
      %v844 = vadd.f32 0.0, %v843
      %v845 = vpop.f32.mrb[0].mxu0
      %846 = vdwg.mxu0
      %v847 = vadd.f32 %v732, %v841
      %v848 = vadd.f32 %v735, %v844
      %v849 = vld [vmem:[%s4] sm:$0x1]
      %v851 = vlaneseq
      %v852 = vshrl.u32 %v851, 7
      %v853 = vsub.s32 0, %v852
      %v854 = vrot.slane %v849, %v853
      %v856 = vadd.f32 %v847, %v854
      %v857 = vadd.f32 %v848, %v854
      %v858 = vmax.f32 %v856, 0.0
      %v859 = vmax.f32 %v857, 0.0
      %860 = vst [vmem:[#allocation2] sm:$0xff] 0.0
      %861 = vst [vmem:[#allocation2 + $0x8] sm:$0xff] 0.0
      %862 = vst [vmem:[#allocation2 + $0x10] sm:$0x3] 0.0
      %863 = vst [vmem:[#allocation2 + $0x1] sm:$0xff] %v858
      %864 = vst [vmem:[#allocation2 + $0x9] sm:$0xff] %v859
      %v865 = vld [vmem:[#allocation2] sm:$0xff]
      %v866 = vld [vmem:[#allocation2 + $0x8] sm:$0xff]
      %v867 = vpack.c.bf16 %v866, %v865
      %v868 = vld [vmem:[%s5] sm:$0xf]
      %v869 = vld [vmem:[%s5 + $0x4] sm:$0xf]
      %v870 = vld [vmem:[%s5 + $0x8] sm:$0xf]
      %v871 = vld [vmem:[%s5 + $0xc] sm:$0xf]
      %v872 = vld [vmem:[%s5 + $0x10] sm:$0xf]
      %v873 = vld [vmem:[%s5 + $0x14] sm:$0xf]
      %v874 = vld [vmem:[%s5 + $0x18] sm:$0xf]
      %v875 = vld [vmem:[%s5 + $0x1c] sm:$0xf]
      %v876 = vld [vmem:[%s5 + $0x20] sm:$0xf]
      %v877 = vld [vmem:[%s5 + $0x24] sm:$0xf]
      %v878 = vld [vmem:[%s5 + $0x28] sm:$0xf]
      %v879 = vld [vmem:[%s5 + $0x2c] sm:$0xf]
      %v880 = vld [vmem:[%s5 + $0x30] sm:$0xf]
      %v881 = vld [vmem:[%s5 + $0x34] sm:$0xf]
      %v882 = vld [vmem:[%s5 + $0x38] sm:$0xf]
      %v883 = vld [vmem:[%s5 + $0x3c] sm:$0xf]
      %v884 = vld [vmem:[#allocation2 + $0x1] sm:$0xff]
      %v885 = vld [vmem:[#allocation2 + $0x9] sm:$0xff]
      %v886 = vpack.c.bf16 %v885, %v884
      %s887 = scalar_lea.vmem %s5, 64
      %v888 = vld [vmem:[%s887] sm:$0xf]
      %v889 = vld [vmem:[%s887 + $0x4] sm:$0xf]
      %v890 = vld [vmem:[%s887 + $0x8] sm:$0xf]
      %v891 = vld [vmem:[%s887 + $0xc] sm:$0xf]
      %v892 = vld [vmem:[%s887 + $0x10] sm:$0xf]
      %v893 = vld [vmem:[%s887 + $0x14] sm:$0xf]
      %v894 = vld [vmem:[%s887 + $0x18] sm:$0xf]
      %v895 = vld [vmem:[%s887 + $0x1c] sm:$0xf]
      %v896 = vld [vmem:[%s887 + $0x20] sm:$0xf]
      %v897 = vld [vmem:[%s887 + $0x24] sm:$0xf]
      %v898 = vld [vmem:[%s887 + $0x28] sm:$0xf]
      %v899 = vld [vmem:[%s887 + $0x2c] sm:$0xf]
      %v900 = vld [vmem:[%s887 + $0x30] sm:$0xf]
      %v901 = vld [vmem:[%s887 + $0x34] sm:$0xf]
      %v902 = vld [vmem:[%s887 + $0x38] sm:$0xf]
      %v903 = vld [vmem:[%s887 + $0x3c] sm:$0xf]
      %v920 = vunpack.c.l.b16 %v888
      %v921 = vunpack.c.l.b16 %v889
      %v922 = vunpack.c.l.b16 %v890
      %v923 = vunpack.c.l.b16 %v891
      %v924 = vunpack.c.l.b16 %v892
      %v925 = vunpack.c.l.b16 %v893
      %v926 = vunpack.c.l.b16 %v894
      %v927 = vunpack.c.l.b16 %v895
      %v928 = vunpack.c.l.b16 %v896
      %v929 = vunpack.c.l.b16 %v897
      %v930 = vunpack.c.l.b16 %v898
      %v931 = vunpack.c.l.b16 %v899
      %v932 = vunpack.c.l.b16 %v900
      %v933 = vunpack.c.l.b16 %v901
      %v934 = vunpack.c.l.b16 %v902
      %v935 = vunpack.c.l.b16 %v903
      %v936 = vpack.c.b16 %v921, %v920
      %v937 = vpack.c.b16 %v923, %v922
      %v938 = vpack.c.b16 %v925, %v924
      %v939 = vpack.c.b16 %v927, %v926
      %v940 = vpack.c.b16 %v929, %v928
      %v941 = vpack.c.b16 %v931, %v930
      %v942 = vpack.c.b16 %v933, %v932
      %v943 = vpack.c.b16 %v935, %v934
      %952 = vmatprep.subr.bf16.mxu0 0
      %953 = vmatpush1.bf16.msra.mxu0 %v936
      %954 = vmatprep.subr.bf16.mxu0 0
      %955 = vmatpush1.bf16.msra.mxu0 %v937
      %956 = vmatprep.subr.bf16.mxu0 0
      %957 = vmatpush1.bf16.msra.mxu0 %v938
      %958 = vmatprep.subr.bf16.mxu0 0
      %959 = vmatpush1.bf16.msra.mxu0 %v939
      %960 = vmatprep.subr.bf16.mxu0 0
      %961 = vmatpush1.bf16.msra.mxu0 %v940
      %962 = vmatprep.subr.bf16.mxu0 0
      %963 = vmatpush1.bf16.msra.mxu0 %v941
      %964 = vmatprep.subr.bf16.mxu0 0
      %965 = vmatpush1.bf16.msra.mxu0 %v942
      %966 = vmatprep.subr.bf16.mxu0 0
      %967 = vmatpush1.bf16.msra.mxu0 %v943
      %968 = vmatprep.subr.bf16.mxu0 0
      %969 = vmatpush1.bf16.msra.mxu0 0
      %970 = vmatprep.subr.bf16.mxu0 0
      %971 = vmatpush1.bf16.msra.mxu0 0
      %972 = vmatprep.subr.bf16.mxu0 0
      %973 = vmatpush1.bf16.msra.mxu0 0
      %974 = vmatprep.subr.bf16.mxu0 0
      %975 = vmatpush1.bf16.msra.mxu0 0
      %976 = vmatprep.subr.bf16.mxu0 0
      %977 = vmatpush1.bf16.msra.mxu0 0
      %978 = vmatprep.subr.bf16.mxu0 0
      %979 = vmatpush1.bf16.msra.mxu0 0
      %980 = vmatprep.subr.bf16.mxu0 0
      %981 = vmatpush1.bf16.msra.mxu0 0
      %982 = vmatprep.subr.bf16.mxu0 0
      %983 = vmatpush1.bf16.msra.mxu0 0
      %984 = vmatprep.mubr.bf16.mxu0 0
      %985 = vmatmul.mubr.bf16.gmra.mrb[0].mxu0 %v886
      %v986 = vpop.f32.mrb[0].mxu0
      %v987 = vadd.f32 0.0, %v986
      %v988 = vpop.f32.mrb[0].mxu0
      %v989 = vpop.f32.mrb[0].mxu0
      %v990 = vadd.f32 0.0, %v989
      %v991 = vpop.f32.mrb[0].mxu0
      %992 = vdwg.mxu0
      %v1009 = vunpack.c.l.b16 %v868
      %v1010 = vunpack.c.l.b16 %v869
      %v1011 = vunpack.c.l.b16 %v870
      %v1012 = vunpack.c.l.b16 %v871
      %v1013 = vunpack.c.l.b16 %v872
      %v1014 = vunpack.c.l.b16 %v873
      %v1015 = vunpack.c.l.b16 %v874
      %v1016 = vunpack.c.l.b16 %v875
      %v1017 = vunpack.c.l.b16 %v876
      %v1018 = vunpack.c.l.b16 %v877
      %v1019 = vunpack.c.l.b16 %v878
      %v1020 = vunpack.c.l.b16 %v879
      %v1021 = vunpack.c.l.b16 %v880
      %v1022 = vunpack.c.l.b16 %v881
      %v1023 = vunpack.c.l.b16 %v882
      %v1024 = vunpack.c.l.b16 %v883
      %v1025 = vpack.c.b16 %v1010, %v1009
      %v1026 = vpack.c.b16 %v1012, %v1011
      %v1027 = vpack.c.b16 %v1014, %v1013
      %v1028 = vpack.c.b16 %v1016, %v1015
      %v1029 = vpack.c.b16 %v1018, %v1017
      %v1030 = vpack.c.b16 %v1020, %v1019
      %v1031 = vpack.c.b16 %v1022, %v1021
      %v1032 = vpack.c.b16 %v1024, %v1023
      %1041 = vmatprep.subr.bf16.mxu0 0
      %1042 = vmatpush1.bf16.msra.mxu0 %v1025
      %1043 = vmatprep.subr.bf16.mxu0 0
      %1044 = vmatpush1.bf16.msra.mxu0 %v1026
      %1045 = vmatprep.subr.bf16.mxu0 0
      %1046 = vmatpush1.bf16.msra.mxu0 %v1027
      %1047 = vmatprep.subr.bf16.mxu0 0
      %1048 = vmatpush1.bf16.msra.mxu0 %v1028
      %1049 = vmatprep.subr.bf16.mxu0 0
      %1050 = vmatpush1.bf16.msra.mxu0 %v1029
      %1051 = vmatprep.subr.bf16.mxu0 0
      %1052 = vmatpush1.bf16.msra.mxu0 %v1030
      %1053 = vmatprep.subr.bf16.mxu0 0
      %1054 = vmatpush1.bf16.msra.mxu0 %v1031
      %1055 = vmatprep.subr.bf16.mxu0 0
      %1056 = vmatpush1.bf16.msra.mxu0 %v1032
      %1057 = vmatprep.subr.bf16.mxu0 0
      %1058 = vmatpush1.bf16.msra.mxu0 0
      %1059 = vmatprep.subr.bf16.mxu0 0
      %1060 = vmatpush1.bf16.msra.mxu0 0
      %1061 = vmatprep.subr.bf16.mxu0 0
      %1062 = vmatpush1.bf16.msra.mxu0 0
      %1063 = vmatprep.subr.bf16.mxu0 0
      %1064 = vmatpush1.bf16.msra.mxu0 0
      %1065 = vmatprep.subr.bf16.mxu0 0
      %1066 = vmatpush1.bf16.msra.mxu0 0
      %1067 = vmatprep.subr.bf16.mxu0 0
      %1068 = vmatpush1.bf16.msra.mxu0 0
      %1069 = vmatprep.subr.bf16.mxu0 0
      %1070 = vmatpush1.bf16.msra.mxu0 0
      %1071 = vmatprep.subr.bf16.mxu0 0
      %1072 = vmatpush1.bf16.msra.mxu0 0
      %1073 = vmatprep.mubr.bf16.mxu0 0
      %1074 = vmatmul.mubr.bf16.gmra.mrb[0].mxu0 %v867
      %v1075 = vpop.f32.mrb[0].mxu0
      %v1076 = vadd.f32 %v987, %v1075
      %v1077 = vpop.f32.mrb[0].mxu0
      %v1078 = vpop.f32.mrb[0].mxu0
      %v1079 = vadd.f32 %v990, %v1078
      %v1080 = vpop.f32.mrb[0].mxu0
      %1081 = vdwg.mxu0
      %v1082 = vld [vmem:[#allocation2 + $0x2] sm:$0xff]
      %v1083 = vld [vmem:[#allocation2 + $0xa] sm:$0xff]
      %v1084 = vpack.c.bf16 %v1083, %v1082
      %s1085 = scalar_lea.vmem %s5, 128
      %v1086 = vld [vmem:[%s1085] sm:$0xf]
      %v1087 = vld [vmem:[%s1085 + $0x4] sm:$0xf]
      %v1088 = vld [vmem:[%s1085 + $0x8] sm:$0xf]
      %v1089 = vld [vmem:[%s1085 + $0xc] sm:$0xf]
      %v1090 = vld [vmem:[%s1085 + $0x10] sm:$0xf]
      %v1091 = vld [vmem:[%s1085 + $0x14] sm:$0xf]
      %v1092 = vld [vmem:[%s1085 + $0x18] sm:$0xf]
      %v1093 = vld [vmem:[%s1085 + $0x1c] sm:$0xf]
      %v1094 = vld [vmem:[%s1085 + $0x20] sm:$0xf]
      %v1095 = vld [vmem:[%s1085 + $0x24] sm:$0xf]
      %v1096 = vld [vmem:[%s1085 + $0x28] sm:$0xf]
      %v1097 = vld [vmem:[%s1085 + $0x2c] sm:$0xf]
      %v1098 = vld [vmem:[%s1085 + $0x30] sm:$0xf]
      %v1099 = vld [vmem:[%s1085 + $0x34] sm:$0xf]
      %v1100 = vld [vmem:[%s1085 + $0x38] sm:$0xf]
      %v1101 = vld [vmem:[%s1085 + $0x3c] sm:$0xf]
      %v1118 = vunpack.c.l.b16 %v1086
      %v1119 = vunpack.c.l.b16 %v1087
      %v1120 = vunpack.c.l.b16 %v1088
      %v1121 = vunpack.c.l.b16 %v1089
      %v1122 = vunpack.c.l.b16 %v1090
      %v1123 = vunpack.c.l.b16 %v1091
      %v1124 = vunpack.c.l.b16 %v1092
      %v1125 = vunpack.c.l.b16 %v1093
      %v1126 = vunpack.c.l.b16 %v1094
      %v1127 = vunpack.c.l.b16 %v1095
      %v1128 = vunpack.c.l.b16 %v1096
      %v1129 = vunpack.c.l.b16 %v1097
      %v1130 = vunpack.c.l.b16 %v1098
      %v1131 = vunpack.c.l.b16 %v1099
      %v1132 = vunpack.c.l.b16 %v1100
      %v1133 = vunpack.c.l.b16 %v1101
      %v1134 = vpack.c.b16 %v1119, %v1118
      %v1135 = vpack.c.b16 %v1121, %v1120
      %v1136 = vpack.c.b16 %v1123, %v1122
      %v1137 = vpack.c.b16 %v1125, %v1124
      %v1138 = vpack.c.b16 %v1127, %v1126
      %v1139 = vpack.c.b16 %v1129, %v1128
      %v1140 = vpack.c.b16 %v1131, %v1130
      %v1141 = vpack.c.b16 %v1133, %v1132
      %1150 = vmatprep.subr.bf16.mxu0 0
      %1151 = vmatpush1.bf16.msra.mxu0 %v1134
      %1152 = vmatprep.subr.bf16.mxu0 0
      %1153 = vmatpush1.bf16.msra.mxu0 %v1135
      %1154 = vmatprep.subr.bf16.mxu0 0
      %1155 = vmatpush1.bf16.msra.mxu0 %v1136
      %1156 = vmatprep.subr.bf16.mxu0 0
      %1157 = vmatpush1.bf16.msra.mxu0 %v1137
      %1158 = vmatprep.subr.bf16.mxu0 0
      %1159 = vmatpush1.bf16.msra.mxu0 %v1138
      %1160 = vmatprep.subr.bf16.mxu0 0
      %1161 = vmatpush1.bf16.msra.mxu0 %v1139
      %1162 = vmatprep.subr.bf16.mxu0 0
      %1163 = vmatpush1.bf16.msra.mxu0 %v1140
      %1164 = vmatprep.subr.bf16.mxu0 0
      %1165 = vmatpush1.bf16.msra.mxu0 %v1141
      %1166 = vmatprep.subr.bf16.mxu0 0
      %1167 = vmatpush1.bf16.msra.mxu0 0
      %1168 = vmatprep.subr.bf16.mxu0 0
      %1169 = vmatpush1.bf16.msra.mxu0 0
      %1170 = vmatprep.subr.bf16.mxu0 0
      %1171 = vmatpush1.bf16.msra.mxu0 0
      %1172 = vmatprep.subr.bf16.mxu0 0
      %1173 = vmatpush1.bf16.msra.mxu0 0
      %1174 = vmatprep.subr.bf16.mxu0 0
      %1175 = vmatpush1.bf16.msra.mxu0 0
      %1176 = vmatprep.subr.bf16.mxu0 0
      %1177 = vmatpush1.bf16.msra.mxu0 0
      %1178 = vmatprep.subr.bf16.mxu0 0
      %1179 = vmatpush1.bf16.msra.mxu0 0
      %1180 = vmatprep.subr.bf16.mxu0 0
      %1181 = vmatpush1.bf16.msra.mxu0 0
      %1182 = vmatprep.mubr.bf16.mxu0 0
      %1183 = vmatmul.mubr.bf16.gmra.mrb[0].mxu0 %v1084
      %v1184 = vpop.f32.mrb[0].mxu0
      %v1185 = vadd.f32 0.0, %v1184
      %v1186 = vpop.f32.mrb[0].mxu0
      %v1187 = vpop.f32.mrb[0].mxu0
      %v1188 = vadd.f32 0.0, %v1187
      %v1189 = vpop.f32.mrb[0].mxu0
      %1190 = vdwg.mxu0
      %v1191 = vadd.f32 %v1076, %v1185
      %v1192 = vadd.f32 %v1079, %v1188
      %v1193 = vld [vmem:[%s6] sm:$0x1]
      %v1195 = vlaneseq
      %v1196 = vshrl.u32 %v1195, 7
      %v1197 = vsub.s32 0, %v1196
      %v1198 = vrot.slane %v1193, %v1197
      %v1200 = vadd.f32 %v1191, %v1198
      %v1201 = vadd.f32 %v1192, %v1198
      %v1202 = vtanh.pop %v1200
      %v1203 = vtanh.pop %v1201
      %1204 = vst.msk [vmem:[%s278] sm:$0xff] %vm285, %v1202
      %1205 = vst.msk [vmem:[%s278 + $0x8] sm:$0xff] %vm285, %v1203
      %p1206 = scmp.lt.s32.totalorder %s18, 1
      %s1207 = scalar_select %p1206, %s18, 1
      %s1208 = smul.addr %s1207, 2
      %s1209 = smul.addr %s1208, 8
      %s1210 = scalar_lea.vmem %s7, %s1209
      // Predicated region
      $region49: #{forward.8} parent=47 // pred_check
        %p1211 = pneg %p188
      $region50: #{forward.8} parent=47 // pred_check_branch
        %1213 = sbr.rel (%p1211) target = $region52
      $region51: #{forward.8} parent=47 // pred_region
        _
      $region52: #{forward.8} parent=47 // pred_fallthru
        _
    $region48: #{forward.8} parent=5 // pred_fallthru
      _
    %p1214 = scmp.le.s32.totalorder 2, %s13
    // Predicated region
    $region53: #{forward.8} parent=5 // pred_check
      %p1215 = pneg %p1214
    $region54: #{forward.8} parent=5 // pred_check_branch
      %1217 = sbr.rel (%p1215) target = $region56
    $region55: #{forward.8} parent=5 // pred_region
      %s1218 = ssub.s32 %s13, 2
      // Predicated region
      $region57: #{forward.8} parent=55 // pred_check
        %p1219 = pneg %p194
      $region58: #{forward.8} parent=55 // pred_check_branch
        %1221 = sbr.rel (%p1219) target = $region60
      $region59: #{forward.8} parent=55 // pred_region
        %p1222 = scmp.lt.s32.totalorder %s19, 1
        %s1223 = scalar_select %p1222, %s19, 1
        %s1224 = smul.addr %s1223, 2
        %s1225 = smul.addr %s1224, 8
        %s1226 = scalar_lea.vmem %s7, %s1225
      $region60: #{forward.8} parent=55 // pred_fallthru
        _
    $region56: #{forward.8} parent=5 // pred_fallthru
      _
  $region6: #{forward.8} parent=0 // loop_footer
    %s17 = sadd.s32 1, %s13
  $region7: #{forward.8} parent=0 // loop_footer_branch
    %12 = sbr.rel target = $region3
  $region8: #{forward.8} parent=0 // loop_exit
    _

</llo_original>
